<compile_context>
chip_gen: v6e
topology: v6e:2x2x1
jax: 0.10.0
libtpu: 0.0.40
codegen_flags: <defaults>
</compile_context>

<pallas_src>
import functools

import jax
import jax.numpy as jnp
from jax.experimental import pallas as pl
from jax.experimental.pallas import tpu as pltpu

SLACK = 8     # spare zero rows so boundary taps never read undefined memory
CH = 32       # output channels of every conv layer


def _encoder_kernel(x_ref, w1_ref, b1_ref, w2_ref, b2_ref,
                    w3_ref, b3_ref, w4_ref, b4_ref,
                    out_ref,
                    a1_ref, a2_ref, a3_ref,
                    *, Wr, M1, M2, M3, M4, NB):
    f32 = jnp.float32
    bf16 = jnp.bfloat16

    def fused_conv3x3(prev_ref, w_ref, b_ref, m_out):
        """3x3 stride-1 conv on a flat (spatial, channel) activation with row
        stride Wr.  dy is folded into K (aligned row-shifted views concatenated
        on the channel axis), dx into N (96-wide weights); one MXU matmul,
        then two shifted adds + bias + ReLU in f32."""
        mg = m_out + SLACK                                     # multiple of 8
        lhs = jnp.concatenate(
            [prev_ref[0:mg, :],
             prev_ref[Wr:Wr + mg, :],
             prev_ref[2 * Wr:2 * Wr + mg, :]], axis=1).astype(bf16)   # (mg,96)
        g = jnp.dot(lhs, w_ref[...], preferred_element_type=f32)       # (mg,96)
        out = (g[0:m_out, 0:CH]
               + g[1:m_out + 1, CH:2 * CH]
               + g[2:m_out + 2, 2 * CH:3 * CH]
               + b_ref[...])
        return jnp.maximum(out, 0.0)

    zeros_slack = jnp.zeros((SLACK, CH), f32)

    for bb in range(NB):                     # unrolled; scratch is reused
        # ---- layer 1: single im2col matmul (norm folded into w1/b1) -------
        g1 = jnp.dot(x_ref[bb, 0:M1, :], w1_ref[...],
                     preferred_element_type=f32)
        a1_ref[0:M1, :] = jnp.maximum(g1 + b1_ref[...], 0.0)
        a1_ref[M1:M1 + SLACK, :] = zeros_slack

        # ---- layers 2-4 ----------------------------------------------------
        a2_ref[0:M2, :] = fused_conv3x3(a1_ref, w2_ref, b2_ref, M2)
        a2_ref[M2:M2 + SLACK, :] = zeros_slack
        a3_ref[0:M3, :] = fused_conv3x3(a2_ref, w3_ref, b3_ref, M3)
        a3_ref[M3:M3 + SLACK, :] = zeros_slack
        out_ref[bb] = fused_conv3x3(a3_ref, w4_ref, b4_ref, M4)


@jax.jit
def encoder_forward(obs, params):
    """obs: (B, C0, S, S) float32 with values in [0, 255].
    Returns (B, 32*H4*W4) matching the PyTorch Encoder (NCHW flatten)."""
    (w1, b1, w2, b2, w3, b3, w4, b4) = params   # w: (3,3,cin,cout), b: (1,32)
    B, C0, S, S2 = obs.shape
    assert S == S2 and S % 2 == 0, "spatial size must be even (drqv2 uses 84)"

    Wp = S // 2
    Wr = ((Wp + 7) // 8) * 8            # 8-aligned flat row stride
    H1 = W1 = Wp - 1                    # conv1 output h/w = (S-3)//2 + 1
    H2, H3, H4 = H1 - 2, H1 - 4, H1 - 6
    W4v = W1 - 6
    assert H4 >= 1 and W4v >= 1, "input too small for four valid 3x3 convs"
    M1, M2, M3, M4 = H1 * Wr, H2 * Wr, H3 * Wr, H4 * Wr
    K1 = 9 * C0

    # --- parameter prep (tiny, one-time): fold /255-0.5 into conv1, pack the
    #     3x3 taps into MXU-friendly matrices, cast operands to bf16 ---------
    w1k = (w1.reshape(K1, CH) / 255.0).astype(jnp.bfloat16)       # (9*C0, 32)
    b1k = (b1 - 0.5 * jnp.sum(w1, axis=(0, 1, 2))[None, :]).astype(jnp.float32)

    def pack96(w):      # (3,3,32,32) -> (96,96): rows dy*32+ci, cols dx*32+co
        return jnp.transpose(w, (0, 2, 1, 3)).reshape(3 * CH, 3 * CH) \
                  .astype(jnp.bfloat16)

    w2k, w3k, w4k = pack96(w2), pack96(w3), pack96(w4)
    b2k, b3k, b4k = (b2.astype(jnp.float32), b3.astype(jnp.float32),
                     b4.astype(jnp.float32))

    # --- layout plumbing (no compute): stride-2 3x3 im2col, pad the row
    #     width W1 -> Wr, pad SLACK zero rows, cast to bf16 ------------------
    xh = jnp.transpose(obs.astype(jnp.float32), (0, 2, 3, 1))    # (B,S,S,C0)
    taps = [xh[:, dy:dy + 2 * H1:2, dx:dx + 2 * W1:2, :]
            for dy in range(3) for dx in range(3)]               # 9x (B,H1,W1,C0)
    pat = jnp.stack(taps, axis=3).reshape(B, H1, W1, K1)
    pat = jnp.pad(pat, ((0, 0), (0, 0), (0, Wr - W1), (0, 0)))
    pat = pat.reshape(B, M1, K1)
    pat = jnp.pad(pat, ((0, 0), (0, SLACK), (0, 0))).astype(jnp.bfloat16)

    # batch block: several elements per grid step (VMEM scratch is reused).
    NB = 1
    for cand in (4, 2, 1):
        if B % cand == 0:
            NB = cand
            break

    kernel = functools.partial(_encoder_kernel, Wr=Wr, M1=M1, M2=M2,
                               M3=M3, M4=M4, NB=NB)

    wspec96 = pl.BlockSpec((3 * CH, 3 * CH), lambda b: (0, 0))   # resident
    bspec = pl.BlockSpec((1, CH), lambda b: (0, 0))              # resident

    out_flat = pl.pallas_call(
        kernel,
        out_shape=jax.ShapeDtypeStruct((B, M4, CH), jnp.float32),
        grid=(B // NB,),
        in_specs=[
            pl.BlockSpec((NB, M1 + SLACK, K1), lambda b: (b, 0, 0)),
            pl.BlockSpec((K1, CH), lambda b: (0, 0)),            # resident
            bspec, wspec96, bspec, wspec96, bspec, wspec96, bspec,
        ],
        out_specs=pl.BlockSpec((NB, M4, CH), lambda b: (b, 0, 0)),
        scratch_shapes=[pltpu.VMEM((M1 + SLACK, CH), jnp.float32),
                        pltpu.VMEM((M2 + SLACK, CH), jnp.float32),
                        pltpu.VMEM((M3 + SLACK, CH), jnp.float32)],
        compiler_params=pltpu.CompilerParams(
            dimension_semantics=("parallel",)),
    )(pat, w1k, b1k, w2k, b2k, w3k, b3k, w4k, b4k)

    # crop the padded columns, flatten in PyTorch NCHW order
    h = out_flat.reshape(B, H4, Wr, CH)[:, :, :W4v, :]           # (B,H4,W4,32)
    h = jnp.transpose(h, (0, 3, 1, 2)).reshape(B, CH * H4 * W4v)
    return h


def init_params(key, in_ch):
    """Deterministic synthetic init (stand-in for utils.weight_init).
    Conv weights are (3, 3, C_in, C_out) (HWIO); biases are (1, C_out)."""
    ks = jax.random.split(key, 8)
    params = []
    cin = in_ch
    for i in range(4):
        fan_in = 9 * cin
        w = jax.random.normal(ks[2 * i], (3, 3, cin, CH), jnp.float32)
        w = w / jnp.sqrt(float(fan_in))
        b = jax.random.normal(ks[2 * i + 1], (1, CH), jnp.float32) * 0.01
        params += [w, b]
        cin = CH
    return tuple(params)


def encoder_reference(obs, params):
    """Pure-JAX reference for the correctness check."""
    (w1, b1, w2, b2, w3, b3, w4, b4) = params
    x = jnp.transpose(obs.astype(jnp.float32), (0, 2, 3, 1)) / 255.0 - 0.5
    layers = ((w1, b1, (2, 2)), (w2, b2, (1, 1)),
              (w3, b3, (1, 1)), (w4, b4, (1, 1)))
    for w, b, s in layers:
        x = jax.lax.conv_general_dilated(
            x, w, window_strides=s, padding="VALID",
            dimension_numbers=("NHWC", "HWIO", "NHWC"),
            precision=jax.lax.Precision.HIGHEST)
        x = jnp.maximum(x + b.reshape(1, 1, 1, -1), 0.0)
    x = jnp.transpose(x, (0, 3, 1, 2))        # NCHW to match torch .view(B,-1)
    return x.reshape(x.shape[0], -1)


if __name__ == "__main__":
    # Small shapes consistent with the module; real drqv2 is (B, 9, 84, 84).
    B, C0, S = 2, 4, 24
    key = jax.random.PRNGKey(0)
    k_obs, k_par = jax.random.split(key)
    obs = jax.random.uniform(k_obs, (B, C0, S, S), jnp.float32, 0.0, 255.0)
    params = init_params(k_par, C0)

    h = jax.block_until_ready(encoder_forward(obs, params))
    h_ref = encoder_reference(obs, params)

    H4 = W4 = S // 2 - 7                      # -> 5 for S=24 (35 for S=84)
    assert h.shape == (B, CH * H4 * W4), h.shape
    err = float(jnp.max(jnp.abs(h - h_ref)))
    # bf16 MXU operands (per perf review) -> relaxed tolerance vs f32 reference
    assert jnp.allclose(h, h_ref, atol=5e-2, rtol=5e-2), f"max abs err {err}"
    print("KERNEL_OK")
</pallas_src>

<mosaic_0001>
module attributes {stable_mosaic.version = 11 : i64} {
  func.func @_encoder_kernel(%arg0: i32, %arg1: memref<2x184x36xbf16, #tpu.memory_space<vmem>>, %arg2: memref<36x32xbf16, #tpu.memory_space<vmem>>, %arg3: memref<1x32xf32, #tpu.memory_space<vmem>>, %arg4: memref<96x96xbf16, #tpu.memory_space<vmem>>, %arg5: memref<1x32xf32, #tpu.memory_space<vmem>>, %arg6: memref<96x96xbf16, #tpu.memory_space<vmem>>, %arg7: memref<1x32xf32, #tpu.memory_space<vmem>>, %arg8: memref<96x96xbf16, #tpu.memory_space<vmem>>, %arg9: memref<1x32xf32, #tpu.memory_space<vmem>>, %arg10: memref<2x80x32xf32, #tpu.memory_space<vmem>>, %arg11: memref<184x32xf32, #tpu.memory_space<vmem>>, %arg12: memref<152x32xf32, #tpu.memory_space<vmem>>, %arg13: memref<120x32xf32, #tpu.memory_space<vmem>>) attributes {dimension_semantics = [#tpu.dimension_semantics<parallel>], iteration_bounds = array<i64: 1>, scalar_prefetch = 0 : i64, scratch_operands = 3 : i64, tpu.core_type = #tpu.core_type<tc>, window_params = [{transform_indices = @transform_0, window_bounds = array<i64: 2, 184, 36>}, {pipeline_mode = #tpu.pipeline_mode<synchronous>, transform_indices = @transform_1, window_bounds = array<i64: 36, 32>}, {pipeline_mode = #tpu.pipeline_mode<synchronous>, transform_indices = @transform_2, window_bounds = array<i64: 1, 32>}, {pipeline_mode = #tpu.pipeline_mode<synchronous>, transform_indices = @transform_3, window_bounds = array<i64: 96, 96>}, {pipeline_mode = #tpu.pipeline_mode<synchronous>, transform_indices = @transform_4, window_bounds = array<i64: 1, 32>}, {pipeline_mode = #tpu.pipeline_mode<synchronous>, transform_indices = @transform_5, window_bounds = array<i64: 96, 96>}, {pipeline_mode = #tpu.pipeline_mode<synchronous>, transform_indices = @transform_6, window_bounds = array<i64: 1, 32>}, {pipeline_mode = #tpu.pipeline_mode<synchronous>, transform_indices = @transform_7, window_bounds = array<i64: 96, 96>}, {pipeline_mode = #tpu.pipeline_mode<synchronous>, transform_indices = @transform_8, window_bounds = array<i64: 1, 32>}, {transform_indices = @transform_9, window_bounds = array<i64: 2, 80, 32>}]} {
    %cst = arith.constant 0.000000e+00 : f32
    %0 = vector.broadcast %cst : f32 to vector<8x32xf32>
    %c0 = arith.constant 0 : index
    %c0_0 = arith.constant 0 : index
    %c0_1 = arith.constant 0 : index
    %1 = vector.load %arg1[%c0, %c0_0, %c0_1] : memref<2x184x36xbf16, #tpu.memory_space<vmem>>, vector<1x176x36xbf16>
    %2 = vector.shape_cast %1 : vector<1x176x36xbf16> to vector<176x36xbf16>
    %c0_2 = arith.constant 0 : index
    %c0_3 = arith.constant 0 : index
    %3 = vector.load %arg2[%c0_2, %c0_3] : memref<36x32xbf16, #tpu.memory_space<vmem>>, vector<36x32xbf16>
    %cst_4 = arith.constant dense<0.000000e+00> : vector<176x32xf32>
    %4 = tpu.matmul %2, %3, %cst_4 {dimension_numbers = #tpu.dot_dimension_numbers<[1], [0], [0], [1], [0, 0, 1, 1], [], []>} : vector<176x36xbf16>, vector<36x32xbf16>, vector<176x32xf32> -> vector<176x32xf32>
    %c0_5 = arith.constant 0 : index
    %c0_6 = arith.constant 0 : index
    %5 = vector.load %arg3[%c0_5, %c0_6] : memref<1x32xf32, #tpu.memory_space<vmem>>, vector<1x32xf32>
    %6 = vector.broadcast %5 : vector<1x32xf32> to vector<176x32xf32>
    %7 = arith.addf %4, %6 : vector<176x32xf32>
    %cst_7 = arith.constant 0.000000e+00 : f32
    %8 = vector.broadcast %cst_7 : f32 to vector<176x32xf32>
    %9 = arith.maximumf %7, %8 : vector<176x32xf32>
    %c0_8 = arith.constant 0 : index
    %c0_9 = arith.constant 0 : index
    %10 = vector.load %arg11[%c0_8, %c0_9] : memref<184x32xf32, #tpu.memory_space<vmem>>, vector<176x32xf32>
    tpu.vector_store %arg11[%c0_8, %c0_9], %9 {strides = array<i32>} : memref<184x32xf32, #tpu.memory_space<vmem>>, vector<176x32xf32>,
    %c176 = arith.constant 176 : index
    %c0_10 = arith.constant 0 : index
    %11 = vector.load %arg11[%c176, %c0_10] : memref<184x32xf32, #tpu.memory_space<vmem>>, vector<8x32xf32>
    tpu.vector_store %arg11[%c176, %c0_10], %0 {strides = array<i32>} : memref<184x32xf32, #tpu.memory_space<vmem>>, vector<8x32xf32>,
    %c0_11 = arith.constant 0 : index
    %c0_12 = arith.constant 0 : index
    %12 = vector.load %arg11[%c0_11, %c0_12] : memref<184x32xf32, #tpu.memory_space<vmem>>, vector<152x32xf32>
    %c16 = arith.constant 16 : index
    %c0_13 = arith.constant 0 : index
    %13 = vector.load %arg11[%c16, %c0_13] : memref<184x32xf32, #tpu.memory_space<vmem>>, vector<152x32xf32>
    %c32 = arith.constant 32 : index
    %c0_14 = arith.constant 0 : index
    %14 = vector.load %arg11[%c32, %c0_14] : memref<184x32xf32, #tpu.memory_space<vmem>>, vector<152x32xf32>
    %15 = tpu.concatenate %12, %13, %14 in 1 : vector<152x32xf32>, vector<152x32xf32>, vector<152x32xf32> -> vector<152x96xf32>
    %16 = arith.truncf %15 : vector<152x96xf32> to vector<152x96xbf16>
    %c0_15 = arith.constant 0 : index
    %c0_16 = arith.constant 0 : index
    %17 = vector.load %arg4[%c0_15, %c0_16] : memref<96x96xbf16, #tpu.memory_space<vmem>>, vector<96x96xbf16>
    %cst_17 = arith.constant dense<0.000000e+00> : vector<152x96xf32>
    %18 = tpu.matmul %16, %17, %cst_17 {dimension_numbers = #tpu.dot_dimension_numbers<[1], [0], [0], [1], [0, 0, 1, 1], [], []>} : vector<152x96xbf16>, vector<96x96xbf16>, vector<152x96xf32> -> vector<152x96xf32>
    %19 = vector.extract_strided_slice %18 {offsets = [0, 0], sizes = [144, 32], strides = [1, 1]} : vector<152x96xf32> to vector<144x32xf32>
    %20 = vector.extract_strided_slice %18 {offsets = [1, 32], sizes = [144, 32], strides = [1, 1]} : vector<152x96xf32> to vector<144x32xf32>
    %21 = arith.addf %19, %20 : vector<144x32xf32>
    %22 = vector.extract_strided_slice %18 {offsets = [2, 64], sizes = [144, 32], strides = [1, 1]} : vector<152x96xf32> to vector<144x32xf32>
    %23 = arith.addf %21, %22 : vector<144x32xf32>
    %c0_18 = arith.constant 0 : index
    %c0_19 = arith.constant 0 : index
    %24 = vector.load %arg5[%c0_18, %c0_19] : memref<1x32xf32, #tpu.memory_space<vmem>>, vector<1x32xf32>
    %25 = vector.broadcast %24 : vector<1x32xf32> to vector<144x32xf32>
    %26 = arith.addf %23, %25 : vector<144x32xf32>
    %cst_20 = arith.constant 0.000000e+00 : f32
    %27 = vector.broadcast %cst_20 : f32 to vector<144x32xf32>
    %28 = arith.maximumf %26, %27 : vector<144x32xf32>
    %c0_21 = arith.constant 0 : index
    %c0_22 = arith.constant 0 : index
    %29 = vector.load %arg12[%c0_21, %c0_22] : memref<152x32xf32, #tpu.memory_space<vmem>>, vector<144x32xf32>
    tpu.vector_store %arg12[%c0_21, %c0_22], %28 {strides = array<i32>} : memref<152x32xf32, #tpu.memory_space<vmem>>, vector<144x32xf32>,
    %c144 = arith.constant 144 : index
    %c0_23 = arith.constant 0 : index
    %30 = vector.load %arg12[%c144, %c0_23] : memref<152x32xf32, #tpu.memory_space<vmem>>, vector<8x32xf32>
    tpu.vector_store %arg12[%c144, %c0_23], %0 {strides = array<i32>} : memref<152x32xf32, #tpu.memory_space<vmem>>, vector<8x32xf32>,
    %c0_24 = arith.constant 0 : index
    %c0_25 = arith.constant 0 : index
    %31 = vector.load %arg12[%c0_24, %c0_25] : memref<152x32xf32, #tpu.memory_space<vmem>>, vector<120x32xf32>
    %c16_26 = arith.constant 16 : index
    %c0_27 = arith.constant 0 : index
    %32 = vector.load %arg12[%c16_26, %c0_27] : memref<152x32xf32, #tpu.memory_space<vmem>>, vector<120x32xf32>
    %c32_28 = arith.constant 32 : index
    %c0_29 = arith.constant 0 : index
    %33 = vector.load %arg12[%c32_28, %c0_29] : memref<152x32xf32, #tpu.memory_space<vmem>>, vector<120x32xf32>
    %34 = tpu.concatenate %31, %32, %33 in 1 : vector<120x32xf32>, vector<120x32xf32>, vector<120x32xf32> -> vector<120x96xf32>
    %35 = arith.truncf %34 : vector<120x96xf32> to vector<120x96xbf16>
    %c0_30 = arith.constant 0 : index
    %c0_31 = arith.constant 0 : index
    %36 = vector.load %arg6[%c0_30, %c0_31] : memref<96x96xbf16, #tpu.memory_space<vmem>>, vector<96x96xbf16>
    %cst_32 = arith.constant dense<0.000000e+00> : vector<120x96xf32>
    %37 = tpu.matmul %35, %36, %cst_32 {dimension_numbers = #tpu.dot_dimension_numbers<[1], [0], [0], [1], [0, 0, 1, 1], [], []>} : vector<120x96xbf16>, vector<96x96xbf16>, vector<120x96xf32> -> vector<120x96xf32>
    %38 = vector.extract_strided_slice %37 {offsets = [0, 0], sizes = [112, 32], strides = [1, 1]} : vector<120x96xf32> to vector<112x32xf32>
    %39 = vector.extract_strided_slice %37 {offsets = [1, 32], sizes = [112, 32], strides = [1, 1]} : vector<120x96xf32> to vector<112x32xf32>
    %40 = arith.addf %38, %39 : vector<112x32xf32>
    %41 = vector.extract_strided_slice %37 {offsets = [2, 64], sizes = [112, 32], strides = [1, 1]} : vector<120x96xf32> to vector<112x32xf32>
    %42 = arith.addf %40, %41 : vector<112x32xf32>
    %c0_33 = arith.constant 0 : index
    %c0_34 = arith.constant 0 : index
    %43 = vector.load %arg7[%c0_33, %c0_34] : memref<1x32xf32, #tpu.memory_space<vmem>>, vector<1x32xf32>
    %44 = vector.broadcast %43 : vector<1x32xf32> to vector<112x32xf32>
    %45 = arith.addf %42, %44 : vector<112x32xf32>
    %cst_35 = arith.constant 0.000000e+00 : f32
    %46 = vector.broadcast %cst_35 : f32 to vector<112x32xf32>
    %47 = arith.maximumf %45, %46 : vector<112x32xf32>
    %c0_36 = arith.constant 0 : index
    %c0_37 = arith.constant 0 : index
    %48 = vector.load %arg13[%c0_36, %c0_37] : memref<120x32xf32, #tpu.memory_space<vmem>>, vector<112x32xf32>
    tpu.vector_store %arg13[%c0_36, %c0_37], %47 {strides = array<i32>} : memref<120x32xf32, #tpu.memory_space<vmem>>, vector<112x32xf32>,
    %c112 = arith.constant 112 : index
    %c0_38 = arith.constant 0 : index
    %49 = vector.load %arg13[%c112, %c0_38] : memref<120x32xf32, #tpu.memory_space<vmem>>, vector<8x32xf32>
    tpu.vector_store %arg13[%c112, %c0_38], %0 {strides = array<i32>} : memref<120x32xf32, #tpu.memory_space<vmem>>, vector<8x32xf32>,
    %c0_39 = arith.constant 0 : index
    %c0_40 = arith.constant 0 : index
    %50 = vector.load %arg13[%c0_39, %c0_40] : memref<120x32xf32, #tpu.memory_space<vmem>>, vector<88x32xf32>
    %c16_41 = arith.constant 16 : index
    %c0_42 = arith.constant 0 : index
    %51 = vector.load %arg13[%c16_41, %c0_42] : memref<120x32xf32, #tpu.memory_space<vmem>>, vector<88x32xf32>
    %c32_43 = arith.constant 32 : index
    %c0_44 = arith.constant 0 : index
    %52 = vector.load %arg13[%c32_43, %c0_44] : memref<120x32xf32, #tpu.memory_space<vmem>>, vector<88x32xf32>
    %53 = tpu.concatenate %50, %51, %52 in 1 : vector<88x32xf32>, vector<88x32xf32>, vector<88x32xf32> -> vector<88x96xf32>
    %54 = arith.truncf %53 : vector<88x96xf32> to vector<88x96xbf16>
    %c0_45 = arith.constant 0 : index
    %c0_46 = arith.constant 0 : index
    %55 = vector.load %arg8[%c0_45, %c0_46] : memref<96x96xbf16, #tpu.memory_space<vmem>>, vector<96x96xbf16>
    %cst_47 = arith.constant dense<0.000000e+00> : vector<88x96xf32>
    %56 = tpu.matmul %54, %55, %cst_47 {dimension_numbers = #tpu.dot_dimension_numbers<[1], [0], [0], [1], [0, 0, 1, 1], [], []>} : vector<88x96xbf16>, vector<96x96xbf16>, vector<88x96xf32> -> vector<88x96xf32>
    %57 = vector.extract_strided_slice %56 {offsets = [0, 0], sizes = [80, 32], strides = [1, 1]} : vector<88x96xf32> to vector<80x32xf32>
    %58 = vector.extract_strided_slice %56 {offsets = [1, 32], sizes = [80, 32], strides = [1, 1]} : vector<88x96xf32> to vector<80x32xf32>
    %59 = arith.addf %57, %58 : vector<80x32xf32>
    %60 = vector.extract_strided_slice %56 {offsets = [2, 64], sizes = [80, 32], strides = [1, 1]} : vector<88x96xf32> to vector<80x32xf32>
    %61 = arith.addf %59, %60 : vector<80x32xf32>
    %c0_48 = arith.constant 0 : index
    %c0_49 = arith.constant 0 : index
    %62 = vector.load %arg9[%c0_48, %c0_49] : memref<1x32xf32, #tpu.memory_space<vmem>>, vector<1x32xf32>
    %63 = vector.broadcast %62 : vector<1x32xf32> to vector<80x32xf32>
    %64 = arith.addf %61, %63 : vector<80x32xf32>
    %cst_50 = arith.constant 0.000000e+00 : f32
    %65 = vector.broadcast %cst_50 : f32 to vector<80x32xf32>
    %66 = arith.maximumf %64, %65 : vector<80x32xf32>
    %c0_51 = arith.constant 0 : index
    %c0_52 = arith.constant 0 : index
    %c0_53 = arith.constant 0 : index
    %67 = vector.load %arg10[%c0_51, %c0_52, %c0_53] : memref<2x80x32xf32, #tpu.memory_space<vmem>>, vector<1x80x32xf32>
    %68 = vector.shape_cast %67 : vector<1x80x32xf32> to vector<80x32xf32>
    %69 = vector.shape_cast %66 : vector<80x32xf32> to vector<1x80x32xf32>
    tpu.vector_store %arg10[%c0_51, %c0_52, %c0_53], %69 {strides = array<i32>} : memref<2x80x32xf32, #tpu.memory_space<vmem>>, vector<1x80x32xf32>,
    %c1 = arith.constant 1 : index
    %c0_54 = arith.constant 0 : index
    %c0_55 = arith.constant 0 : index
    %70 = vector.load %arg1[%c1, %c0_54, %c0_55] : memref<2x184x36xbf16, #tpu.memory_space<vmem>>, vector<1x176x36xbf16>
    %71 = vector.shape_cast %70 : vector<1x176x36xbf16> to vector<176x36xbf16>
    %c0_56 = arith.constant 0 : index
    %c0_57 = arith.constant 0 : index
    %72 = vector.load %arg2[%c0_56, %c0_57] : memref<36x32xbf16, #tpu.memory_space<vmem>>, vector<36x32xbf16>
    %cst_58 = arith.constant dense<0.000000e+00> : vector<176x32xf32>
    %73 = tpu.matmul %71, %72, %cst_58 {dimension_numbers = #tpu.dot_dimension_numbers<[1], [0], [0], [1], [0, 0, 1, 1], [], []>} : vector<176x36xbf16>, vector<36x32xbf16>, vector<176x32xf32> -> vector<176x32xf32>
    %c0_59 = arith.constant 0 : index
    %c0_60 = arith.constant 0 : index
    %74 = vector.load %arg3[%c0_59, %c0_60] : memref<1x32xf32, #tpu.memory_space<vmem>>, vector<1x32xf32>
    %75 = vector.broadcast %74 : vector<1x32xf32> to vector<176x32xf32>
    %76 = arith.addf %73, %75 : vector<176x32xf32>
    %cst_61 = arith.constant 0.000000e+00 : f32
    %77 = vector.broadcast %cst_61 : f32 to vector<176x32xf32>
    %78 = arith.maximumf %76, %77 : vector<176x32xf32>
    %c0_62 = arith.constant 0 : index
    %c0_63 = arith.constant 0 : index
    %79 = vector.load %arg11[%c0_62, %c0_63] : memref<184x32xf32, #tpu.memory_space<vmem>>, vector<176x32xf32>
    tpu.vector_store %arg11[%c0_62, %c0_63], %78 {strides = array<i32>} : memref<184x32xf32, #tpu.memory_space<vmem>>, vector<176x32xf32>,
    %c176_64 = arith.constant 176 : index
    %c0_65 = arith.constant 0 : index
    %80 = vector.load %arg11[%c176_64, %c0_65] : memref<184x32xf32, #tpu.memory_space<vmem>>, vector<8x32xf32>
    tpu.vector_store %arg11[%c176_64, %c0_65], %0 {strides = array<i32>} : memref<184x32xf32, #tpu.memory_space<vmem>>, vector<8x32xf32>,
    %c0_66 = arith.constant 0 : index
    %c0_67 = arith.constant 0 : index
    %81 = vector.load %arg11[%c0_66, %c0_67] : memref<184x32xf32, #tpu.memory_space<vmem>>, vector<152x32xf32>
    %c16_68 = arith.constant 16 : index
    %c0_69 = arith.constant 0 : index
    %82 = vector.load %arg11[%c16_68, %c0_69] : memref<184x32xf32, #tpu.memory_space<vmem>>, vector<152x32xf32>
    %c32_70 = arith.constant 32 : index
    %c0_71 = arith.constant 0 : index
    %83 = vector.load %arg11[%c32_70, %c0_71] : memref<184x32xf32, #tpu.memory_space<vmem>>, vector<152x32xf32>
    %84 = tpu.concatenate %81, %82, %83 in 1 : vector<152x32xf32>, vector<152x32xf32>, vector<152x32xf32> -> vector<152x96xf32>
    %85 = arith.truncf %84 : vector<152x96xf32> to vector<152x96xbf16>
    %c0_72 = arith.constant 0 : index
    %c0_73 = arith.constant 0 : index
    %86 = vector.load %arg4[%c0_72, %c0_73] : memref<96x96xbf16, #tpu.memory_space<vmem>>, vector<96x96xbf16>
    %cst_74 = arith.constant dense<0.000000e+00> : vector<152x96xf32>
    %87 = tpu.matmul %85, %86, %cst_74 {dimension_numbers = #tpu.dot_dimension_numbers<[1], [0], [0], [1], [0, 0, 1, 1], [], []>} : vector<152x96xbf16>, vector<96x96xbf16>, vector<152x96xf32> -> vector<152x96xf32>
    %88 = vector.extract_strided_slice %87 {offsets = [0, 0], sizes = [144, 32], strides = [1, 1]} : vector<152x96xf32> to vector<144x32xf32>
    %89 = vector.extract_strided_slice %87 {offsets = [1, 32], sizes = [144, 32], strides = [1, 1]} : vector<152x96xf32> to vector<144x32xf32>
    %90 = arith.addf %88, %89 : vector<144x32xf32>
    %91 = vector.extract_strided_slice %87 {offsets = [2, 64], sizes = [144, 32], strides = [1, 1]} : vector<152x96xf32> to vector<144x32xf32>
    %92 = arith.addf %90, %91 : vector<144x32xf32>
    %c0_75 = arith.constant 0 : index
    %c0_76 = arith.constant 0 : index
    %93 = vector.load %arg5[%c0_75, %c0_76] : memref<1x32xf32, #tpu.memory_space<vmem>>, vector<1x32xf32>
    %94 = vector.broadcast %93 : vector<1x32xf32> to vector<144x32xf32>
    %95 = arith.addf %92, %94 : vector<144x32xf32>
    %cst_77 = arith.constant 0.000000e+00 : f32
    %96 = vector.broadcast %cst_77 : f32 to vector<144x32xf32>
    %97 = arith.maximumf %95, %96 : vector<144x32xf32>
    %c0_78 = arith.constant 0 : index
    %c0_79 = arith.constant 0 : index
    %98 = vector.load %arg12[%c0_78, %c0_79] : memref<152x32xf32, #tpu.memory_space<vmem>>, vector<144x32xf32>
    tpu.vector_store %arg12[%c0_78, %c0_79], %97 {strides = array<i32>} : memref<152x32xf32, #tpu.memory_space<vmem>>, vector<144x32xf32>,
    %c144_80 = arith.constant 144 : index
    %c0_81 = arith.constant 0 : index
    %99 = vector.load %arg12[%c144_80, %c0_81] : memref<152x32xf32, #tpu.memory_space<vmem>>, vector<8x32xf32>
    tpu.vector_store %arg12[%c144_80, %c0_81], %0 {strides = array<i32>} : memref<152x32xf32, #tpu.memory_space<vmem>>, vector<8x32xf32>,
    %c0_82 = arith.constant 0 : index
    %c0_83 = arith.constant 0 : index
    %100 = vector.load %arg12[%c0_82, %c0_83] : memref<152x32xf32, #tpu.memory_space<vmem>>, vector<120x32xf32>
    %c16_84 = arith.constant 16 : index
    %c0_85 = arith.constant 0 : index
    %101 = vector.load %arg12[%c16_84, %c0_85] : memref<152x32xf32, #tpu.memory_space<vmem>>, vector<120x32xf32>
    %c32_86 = arith.constant 32 : index
    %c0_87 = arith.constant 0 : index
    %102 = vector.load %arg12[%c32_86, %c0_87] : memref<152x32xf32, #tpu.memory_space<vmem>>, vector<120x32xf32>
    %103 = tpu.concatenate %100, %101, %102 in 1 : vector<120x32xf32>, vector<120x32xf32>, vector<120x32xf32> -> vector<120x96xf32>
    %104 = arith.truncf %103 : vector<120x96xf32> to vector<120x96xbf16>
    %c0_88 = arith.constant 0 : index
    %c0_89 = arith.constant 0 : index
    %105 = vector.load %arg6[%c0_88, %c0_89] : memref<96x96xbf16, #tpu.memory_space<vmem>>, vector<96x96xbf16>
    %cst_90 = arith.constant dense<0.000000e+00> : vector<120x96xf32>
    %106 = tpu.matmul %104, %105, %cst_90 {dimension_numbers = #tpu.dot_dimension_numbers<[1], [0], [0], [1], [0, 0, 1, 1], [], []>} : vector<120x96xbf16>, vector<96x96xbf16>, vector<120x96xf32> -> vector<120x96xf32>
    %107 = vector.extract_strided_slice %106 {offsets = [0, 0], sizes = [112, 32], strides = [1, 1]} : vector<120x96xf32> to vector<112x32xf32>
    %108 = vector.extract_strided_slice %106 {offsets = [1, 32], sizes = [112, 32], strides = [1, 1]} : vector<120x96xf32> to vector<112x32xf32>
    %109 = arith.addf %107, %108 : vector<112x32xf32>
    %110 = vector.extract_strided_slice %106 {offsets = [2, 64], sizes = [112, 32], strides = [1, 1]} : vector<120x96xf32> to vector<112x32xf32>
    %111 = arith.addf %109, %110 : vector<112x32xf32>
    %c0_91 = arith.constant 0 : index
    %c0_92 = arith.constant 0 : index
    %112 = vector.load %arg7[%c0_91, %c0_92] : memref<1x32xf32, #tpu.memory_space<vmem>>, vector<1x32xf32>
    %113 = vector.broadcast %112 : vector<1x32xf32> to vector<112x32xf32>
    %114 = arith.addf %111, %113 : vector<112x32xf32>
    %cst_93 = arith.constant 0.000000e+00 : f32
    %115 = vector.broadcast %cst_93 : f32 to vector<112x32xf32>
    %116 = arith.maximumf %114, %115 : vector<112x32xf32>
    %c0_94 = arith.constant 0 : index
    %c0_95 = arith.constant 0 : index
    %117 = vector.load %arg13[%c0_94, %c0_95] : memref<120x32xf32, #tpu.memory_space<vmem>>, vector<112x32xf32>
    tpu.vector_store %arg13[%c0_94, %c0_95], %116 {strides = array<i32>} : memref<120x32xf32, #tpu.memory_space<vmem>>, vector<112x32xf32>,
    %c112_96 = arith.constant 112 : index
    %c0_97 = arith.constant 0 : index
    %118 = vector.load %arg13[%c112_96, %c0_97] : memref<120x32xf32, #tpu.memory_space<vmem>>, vector<8x32xf32>
    tpu.vector_store %arg13[%c112_96, %c0_97], %0 {strides = array<i32>} : memref<120x32xf32, #tpu.memory_space<vmem>>, vector<8x32xf32>,
    %c0_98 = arith.constant 0 : index
    %c0_99 = arith.constant 0 : index
    %119 = vector.load %arg13[%c0_98, %c0_99] : memref<120x32xf32, #tpu.memory_space<vmem>>, vector<88x32xf32>
    %c16_100 = arith.constant 16 : index
    %c0_101 = arith.constant 0 : index
    %120 = vector.load %arg13[%c16_100, %c0_101] : memref<120x32xf32, #tpu.memory_space<vmem>>, vector<88x32xf32>
    %c32_102 = arith.constant 32 : index
    %c0_103 = arith.constant 0 : index
    %121 = vector.load %arg13[%c32_102, %c0_103] : memref<120x32xf32, #tpu.memory_space<vmem>>, vector<88x32xf32>
    %122 = tpu.concatenate %119, %120, %121 in 1 : vector<88x32xf32>, vector<88x32xf32>, vector<88x32xf32> -> vector<88x96xf32>
    %123 = arith.truncf %122 : vector<88x96xf32> to vector<88x96xbf16>
    %c0_104 = arith.constant 0 : index
    %c0_105 = arith.constant 0 : index
    %124 = vector.load %arg8[%c0_104, %c0_105] : memref<96x96xbf16, #tpu.memory_space<vmem>>, vector<96x96xbf16>
    %cst_106 = arith.constant dense<0.000000e+00> : vector<88x96xf32>
    %125 = tpu.matmul %123, %124, %cst_106 {dimension_numbers = #tpu.dot_dimension_numbers<[1], [0], [0], [1], [0, 0, 1, 1], [], []>} : vector<88x96xbf16>, vector<96x96xbf16>, vector<88x96xf32> -> vector<88x96xf32>
    %126 = vector.extract_strided_slice %125 {offsets = [0, 0], sizes = [80, 32], strides = [1, 1]} : vector<88x96xf32> to vector<80x32xf32>
    %127 = vector.extract_strided_slice %125 {offsets = [1, 32], sizes = [80, 32], strides = [1, 1]} : vector<88x96xf32> to vector<80x32xf32>
    %128 = arith.addf %126, %127 : vector<80x32xf32>
    %129 = vector.extract_strided_slice %125 {offsets = [2, 64], sizes = [80, 32], strides = [1, 1]} : vector<88x96xf32> to vector<80x32xf32>
    %130 = arith.addf %128, %129 : vector<80x32xf32>
    %c0_107 = arith.constant 0 : index
    %c0_108 = arith.constant 0 : index
    %131 = vector.load %arg9[%c0_107, %c0_108] : memref<1x32xf32, #tpu.memory_space<vmem>>, vector<1x32xf32>
    %132 = vector.broadcast %131 : vector<1x32xf32> to vector<80x32xf32>
    %133 = arith.addf %130, %132 : vector<80x32xf32>
    %cst_109 = arith.constant 0.000000e+00 : f32
    %134 = vector.broadcast %cst_109 : f32 to vector<80x32xf32>
    %135 = arith.maximumf %133, %134 : vector<80x32xf32>
    %c1_110 = arith.constant 1 : index
    %c0_111 = arith.constant 0 : index
    %c0_112 = arith.constant 0 : index
    %136 = vector.load %arg10[%c1_110, %c0_111, %c0_112] : memref<2x80x32xf32, #tpu.memory_space<vmem>>, vector<1x80x32xf32>
    %137 = vector.shape_cast %136 : vector<1x80x32xf32> to vector<80x32xf32>
    %138 = vector.shape_cast %135 : vector<80x32xf32> to vector<1x80x32xf32>
    tpu.vector_store %arg10[%c1_110, %c0_111, %c0_112], %138 {strides = array<i32>} : memref<2x80x32xf32, #tpu.memory_space<vmem>>, vector<1x80x32xf32>,
    return
  }
  func.func @transform_0(%arg0: i32) -> (i32, i32, i32) {
    %c0_i32 = arith.constant 0 : i32
    %c0_i32_0 = arith.constant 0 : i32
    %c0_i32_1 = arith.constant 0 : i32
    return %arg0, %c0_i32, %c0_i32_0 : i32, i32, i32
  }
  func.func @transform_1(%arg0: i32) -> (i32, i32) {
    %c0_i32 = arith.constant 0 : i32
    %c0_i32_0 = arith.constant 0 : i32
    %c0_i32_1 = arith.constant 0 : i32
    return %c0_i32, %c0_i32_0 : i32, i32
  }
  func.func @transform_2(%arg0: i32) -> (i32, i32) {
    %c0_i32 = arith.constant 0 : i32
    %c0_i32_0 = arith.constant 0 : i32
    %c0_i32_1 = arith.constant 0 : i32
    return %c0_i32, %c0_i32_0 : i32, i32
  }
  func.func @transform_3(%arg0: i32) -> (i32, i32) {
    %c0_i32 = arith.constant 0 : i32
    %c0_i32_0 = arith.constant 0 : i32
    %c0_i32_1 = arith.constant 0 : i32
    return %c0_i32, %c0_i32_0 : i32, i32
  }
  func.func @transform_4(%arg0: i32) -> (i32, i32) {
    %c0_i32 = arith.constant 0 : i32
    %c0_i32_0 = arith.constant 0 : i32
    %c0_i32_1 = arith.constant 0 : i32
    return %c0_i32, %c0_i32_0 : i32, i32
  }
  func.func @transform_5(%arg0: i32) -> (i32, i32) {
    %c0_i32 = arith.constant 0 : i32
    %c0_i32_0 = arith.constant 0 : i32
    %c0_i32_1 = arith.constant 0 : i32
    return %c0_i32, %c0_i32_0 : i32, i32
  }
  func.func @transform_6(%arg0: i32) -> (i32, i32) {
    %c0_i32 = arith.constant 0 : i32
    %c0_i32_0 = arith.constant 0 : i32
    %c0_i32_1 = arith.constant 0 : i32
    return %c0_i32, %c0_i32_0 : i32, i32
  }
  func.func @transform_7(%arg0: i32) -> (i32, i32) {
    %c0_i32 = arith.constant 0 : i32
    %c0_i32_0 = arith.constant 0 : i32
    %c0_i32_1 = arith.constant 0 : i32
    return %c0_i32, %c0_i32_0 : i32, i32
  }
  func.func @transform_8(%arg0: i32) -> (i32, i32) {
    %c0_i32 = arith.constant 0 : i32
    %c0_i32_0 = arith.constant 0 : i32
    %c0_i32_1 = arith.constant 0 : i32
    return %c0_i32, %c0_i32_0 : i32, i32
  }
  func.func @transform_9(%arg0: i32) -> (i32, i32, i32) {
    %c0_i32 = arith.constant 0 : i32
    %c0_i32_0 = arith.constant 0 : i32
    %c0_i32_1 = arith.constant 0 : i32
    return %arg0, %c0_i32, %c0_i32_0 : i32, i32, i32
  }
}

</mosaic_0001>

<llo_original>
// kernel: encoder_forward.1
$region0: #{encoder_forward.1}
  #allocation0 [shape = 'u32[]', space=smem, size = 0x4, offset = 0x4, fixed_abs, tag = 'smem constant byte address 0x4 - core index']
  #allocation1 [shape = 'u32[144,128]{1,0:T(1,128)}', space=vmem, size = 0x12000, scoped, tag = 'internal scratch']
  #allocation2 [shape = 'f32[184,32]{1,0:T(8,128)}', space=vmem, size = 0x17000, scoped, tag = 'scratch operand']
  #allocation3 [shape = 'f32[152,32]{1,0:T(8,128)}', space=vmem, size = 0x13000, scoped, tag = 'scratch operand']
  #allocation4 [shape = 'f32[120,32]{1,0:T(8,128)}', space=vmem, size = 0xf000, scoped, tag = 'scratch operand']
  %s0 = inlined_call_operand.vmem [shape: bf16[2,184,36], index: 0, kind: input, shape index: {}]
  %s1 = inlined_call_operand.vmem [shape: bf16[36,32], index: 1, kind: input, shape index: {}]
  %s2 = inlined_call_operand.vmem [shape: f32[1,32], index: 2, kind: input, shape index: {}]
  %s3 = inlined_call_operand.vmem [shape: bf16[96,96], index: 3, kind: input, shape index: {}]
  %s4 = inlined_call_operand.vmem [shape: f32[1,32], index: 4, kind: input, shape index: {}]
  %s5 = inlined_call_operand.vmem [shape: bf16[96,96], index: 5, kind: input, shape index: {}]
  %s6 = inlined_call_operand.vmem [shape: f32[1,32], index: 6, kind: input, shape index: {}]
  %s7 = inlined_call_operand.vmem [shape: bf16[96,96], index: 7, kind: input, shape index: {}]
  %s8 = inlined_call_operand.vmem [shape: f32[1,32], index: 8, kind: input, shape index: {}]
  %s9 = inlined_call_operand.vmem [shape: f32[2,80,32], index: 9, kind: output, shape index: {}]
  %s10 = sld [smem:[#allocation0]]
  $region46: #{encoder_forward.1} parent=0
    _
  %s12 = ssub.s32 1, %s10
  %s13 = scalar_select 0, %s12, %s10
  // Predicated region
  $region2: #{encoder_forward.1} parent=0 // pred_check
    _
  $region3: #{encoder_forward.1} parent=0 // pred_check_branch
    %15 = sbr.rel (0) target = $region5
  $region4: #{encoder_forward.1} parent=0 // pred_region
    _
  $region5: #{encoder_forward.1} parent=0 // pred_fallthru
    _
  // Predicated region
  $region6: #{encoder_forward.1} parent=0 // pred_check
    _
  $region7: #{encoder_forward.1} parent=0 // pred_check_branch
    %17 = sbr.rel (0) target = $region9
  $region8: #{encoder_forward.1} parent=0 // pred_region
    _
  $region9: #{encoder_forward.1} parent=0 // pred_fallthru
    _
  // Predicated region
  $region10: #{encoder_forward.1} parent=0 // pred_check
    _
  $region11: #{encoder_forward.1} parent=0 // pred_check_branch
    %19 = sbr.rel (0) target = $region13
  $region12: #{encoder_forward.1} parent=0 // pred_region
    _
  $region13: #{encoder_forward.1} parent=0 // pred_fallthru
    _
  // Predicated region
  $region14: #{encoder_forward.1} parent=0 // pred_check
    _
  $region15: #{encoder_forward.1} parent=0 // pred_check_branch
    %21 = sbr.rel (0) target = $region17
  $region16: #{encoder_forward.1} parent=0 // pred_region
    _
  $region17: #{encoder_forward.1} parent=0 // pred_fallthru
    _
  // Predicated region
  $region18: #{encoder_forward.1} parent=0 // pred_check
    _
  $region19: #{encoder_forward.1} parent=0 // pred_check_branch
    %23 = sbr.rel (0) target = $region21
  $region20: #{encoder_forward.1} parent=0 // pred_region
    _
  $region21: #{encoder_forward.1} parent=0 // pred_fallthru
    _
  // Predicated region
  $region22: #{encoder_forward.1} parent=0 // pred_check
    _
  $region23: #{encoder_forward.1} parent=0 // pred_check_branch
    %25 = sbr.rel (0) target = $region25
  $region24: #{encoder_forward.1} parent=0 // pred_region
    _
  $region25: #{encoder_forward.1} parent=0 // pred_fallthru
    _
  // Predicated region
  $region26: #{encoder_forward.1} parent=0 // pred_check
    _
  $region27: #{encoder_forward.1} parent=0 // pred_check_branch
    %27 = sbr.rel (0) target = $region29
  $region28: #{encoder_forward.1} parent=0 // pred_region
    _
  $region29: #{encoder_forward.1} parent=0 // pred_fallthru
    _
  // Predicated region
  $region30: #{encoder_forward.1} parent=0 // pred_check
    _
  $region31: #{encoder_forward.1} parent=0 // pred_check_branch
    %29 = sbr.rel (0) target = $region33
  $region32: #{encoder_forward.1} parent=0 // pred_region
    _
  $region33: #{encoder_forward.1} parent=0 // pred_fallthru
    _
  // Predicated region
  $region34: #{encoder_forward.1} parent=0 // pred_check
    _
  $region35: #{encoder_forward.1} parent=0 // pred_check_branch
    %31 = sbr.rel (0) target = $region37
  $region36: #{encoder_forward.1} parent=0 // pred_region
    _
  $region37: #{encoder_forward.1} parent=0 // pred_fallthru
    _
  %v33 = vld [vmem:[%s0] sm:$0xf]
  %v34 = vld [vmem:[%s0 + $0x4] sm:$0xf]
  %v35 = vld [vmem:[%s0 + $0x8] sm:$0xf]
  %v36 = vld [vmem:[%s0 + $0xc] sm:$0xf]
  %v37 = vld [vmem:[%s0 + $0x10] sm:$0xf]
  %v38 = vld [vmem:[%s0 + $0x14] sm:$0xf]
  %v39 = vld [vmem:[%s0 + $0x18] sm:$0xf]
  %v40 = vld [vmem:[%s0 + $0x1c] sm:$0xf]
  %v41 = vld [vmem:[%s0 + $0x20] sm:$0xf]
  %v42 = vld [vmem:[%s0 + $0x24] sm:$0xf]
  %v43 = vld [vmem:[%s0 + $0x28] sm:$0xf]
  %v44 = vld [vmem:[%s0 + $0x2c] sm:$0xf]
  %v45 = vld [vmem:[%s0 + $0x30] sm:$0xf]
  %v46 = vld [vmem:[%s0 + $0x34] sm:$0xf]
  %v47 = vld [vmem:[%s0 + $0x38] sm:$0xf]
  %v48 = vld [vmem:[%s0 + $0x3c] sm:$0xf]
  %v49 = vld [vmem:[%s0 + $0x40] sm:$0xf]
  %v50 = vld [vmem:[%s0 + $0x44] sm:$0xf]
  %v51 = vld [vmem:[%s0 + $0x48] sm:$0xf]
  %v52 = vld [vmem:[%s0 + $0x4c] sm:$0xf]
  %v53 = vld [vmem:[%s0 + $0x50] sm:$0xf]
  %v54 = vld [vmem:[%s0 + $0x54] sm:$0xf]
  %v55 = vld [vmem:[%s1] sm:$0xf]
  %v56 = vld [vmem:[%s1 + $0x4] sm:$0xf]
  %v57 = vld [vmem:[%s1 + $0x8] sm:$0xf]
  %v58 = vld [vmem:[%s1 + $0xc] sm:$0xf]
  %v59 = vld [vmem:[%s1 + $0x10] sm:$0x3]
  %v60 = vld [vmem:[%s2] sm:$0x1]
  %v62 = vlaneseq
  %v63 = vshrl.u32 %v62, 7
  %v64 = vsub.s32 0, %v63
  %v65 = vrot.slane %v60, %v64
  %v89 = vunpack.c.l.b16 %v33
  %v90 = vunpack.c.l.b16 %v34
  %v91 = vunpack.c.l.b16 %v35
  %v92 = vunpack.c.l.b16 %v36
  %v93 = vunpack.c.l.b16 %v37
  %v94 = vunpack.c.l.b16 %v38
  %v95 = vunpack.c.l.b16 %v39
  %v96 = vunpack.c.l.b16 %v40
  %v97 = vunpack.c.l.b16 %v41
  %v98 = vunpack.c.l.b16 %v42
  %v99 = vunpack.c.l.b16 %v43
  %v100 = vunpack.c.l.b16 %v44
  %v101 = vunpack.c.l.b16 %v45
  %v102 = vunpack.c.l.b16 %v46
  %v103 = vunpack.c.l.b16 %v47
  %v104 = vunpack.c.l.b16 %v48
  %v105 = vunpack.c.l.b16 %v49
  %v106 = vunpack.c.l.b16 %v50
  %v107 = vunpack.c.l.b16 %v51
  %v108 = vunpack.c.l.b16 %v52
  %v109 = vunpack.c.l.b16 %v53
  %v110 = vunpack.c.l.b16 %v54
  %v111 = vpack.c.b16 %v90, %v89
  %v112 = vpack.c.b16 %v92, %v91
  %v113 = vpack.c.b16 %v94, %v93
  %v114 = vpack.c.b16 %v96, %v95
  %v115 = vpack.c.b16 %v98, %v97
  %v116 = vpack.c.b16 %v100, %v99
  %v117 = vpack.c.b16 %v102, %v101
  %v118 = vpack.c.b16 %v104, %v103
  %v119 = vpack.c.b16 %v106, %v105
  %v120 = vpack.c.b16 %v108, %v107
  %v121 = vpack.c.b16 %v110, %v109
  %v127 = vunpack.c.l.b16 %v55
  %v128 = vunpack.c.l.b16 %v56
  %v129 = vunpack.c.l.b16 %v57
  %v130 = vunpack.c.l.b16 %v58
  %v131 = vunpack.c.l.b16 %v59
  %v132 = vpack.c.b16 %v128, %v127
  %v133 = vpack.c.b16 %v130, %v129
  %v134 = vpack.c.b16 %v131, %v131
  %vm137 = vcmask 293888
  %v139 = vsel %vm137, %v111, 0
  %v142 = vsel %vm137, %v112, 0
  %v145 = vsel %vm137, %v113, 0
  %v148 = vsel %vm137, %v114, 0
  %v151 = vsel %vm137, %v115, 0
  %v154 = vsel %vm137, %v116, 0
  %v157 = vsel %vm137, %v117, 0
  %v160 = vsel %vm137, %v118, 0
  %v163 = vsel %vm137, %v119, 0
  %v166 = vsel %vm137, %v120, 0
  %v169 = vsel %vm137, %v121, 0
  %vm171 = vcmask 1041408
  %v173 = vsel %vm171, %v134, 0
  %175 = vmatprep.subr.bf16.mxu0 0
  %176 = vmatpush1.bf16.msra.mxu0 0
  %177 = vmatprep.subr.bf16.mxu0 0
  %178 = vmatpush1.bf16.msra.mxu0 0
  %179 = vmatprep.subr.bf16.mxu0 0
  %180 = vmatpush1.bf16.msra.mxu0 0
  %181 = vmatprep.subr.bf16.mxu0 0
  %182 = vmatpush1.bf16.msra.mxu0 0
  %183 = vmatprep.subr.bf16.mxu0 0
  %184 = vmatpush1.bf16.msra.mxu0 0
  %185 = vmatprep.subr.bf16.mxu0 0
  %186 = vmatpush1.bf16.msra.mxu0 %v173
  %187 = vmatprep.subr.bf16.mxu0 0
  %188 = vmatpush1.bf16.msra.mxu0 %v133
  %189 = vmatprep.subr.bf16.mxu0 0
  %190 = vmatpush1.bf16.msra.mxu0 %v132
  %191 = vmatprep.subr.bf16.mxu0 0
  %192 = vmatpush2.bf16.msra.mxu0 0
  %193 = vmatprep.subr.bf16.mxu0 0
  %194 = vmatpush2.bf16.msra.mxu0 0
  %195 = vmatprep.subr.bf16.mxu0 0
  %196 = vmatpush2.bf16.msra.mxu0 0
  %197 = vmatprep.subr.bf16.mxu0 0
  %198 = vmatpush2.bf16.msra.mxu0 0
  %199 = vmatprep.subr.bf16.mxu0 0
  %200 = vmatpush2.bf16.msra.mxu0 0
  %201 = vmatprep.subr.bf16.mxu0 0
  %202 = vmatpush2.bf16.msra.mxu0 0
  %203 = vmatprep.subr.bf16.mxu0 0
  %204 = vmatpush2.bf16.msra.mxu0 0
  %205 = vmatprep.subr.bf16.mxu0 0
  %206 = vmatpush2.bf16.msra.mxu0 0
  %207 = vmatprep.mubr.bf16.mxu0 0
  %208 = vmatmul.mubr.bf16.gmra.mxu0 %v139
  %v209 = vpop.f32.mrf.mxu0
  %v210 = vadd.f32 %v65, %v209
  %v211 = vpop.f32.mrf.mxu0
  %v212 = vpop.f32.mrf.mxu0
  %v213 = vadd.f32 %v65, %v212
  %v214 = vpop.f32.mrf.mxu0
  %215 = vmatprep.mubr.bf16.mxu0 0
  %216 = vmatmul.mubr.bf16.gmra.mxu0 %v142
  %v217 = vpop.f32.mrf.mxu0
  %v218 = vadd.f32 %v65, %v217
  %v219 = vpop.f32.mrf.mxu0
  %v220 = vpop.f32.mrf.mxu0
  %v221 = vadd.f32 %v65, %v220
  %v222 = vpop.f32.mrf.mxu0
  %223 = vmatprep.mubr.bf16.mxu0 0
  %224 = vmatmul.mubr.bf16.gmra.mxu0 %v145
  %v225 = vpop.f32.mrf.mxu0
  %v226 = vadd.f32 %v65, %v225
  %v227 = vpop.f32.mrf.mxu0
  %v228 = vpop.f32.mrf.mxu0
  %v229 = vadd.f32 %v65, %v228
  %v230 = vpop.f32.mrf.mxu0
  %231 = vmatprep.mubr.bf16.mxu0 0
  %232 = vmatmul.mubr.bf16.gmra.mxu0 %v148
  %v233 = vpop.f32.mrf.mxu0
  %v234 = vadd.f32 %v65, %v233
  %v235 = vpop.f32.mrf.mxu0
  %v236 = vpop.f32.mrf.mxu0
  %v237 = vadd.f32 %v65, %v236
  %v238 = vpop.f32.mrf.mxu0
  %239 = vmatprep.mubr.bf16.mxu0 0
  %240 = vmatmul.mubr.bf16.gmra.mxu0 %v151
  %v241 = vpop.f32.mrf.mxu0
  %v242 = vadd.f32 %v65, %v241
  %v243 = vpop.f32.mrf.mxu0
  %v244 = vpop.f32.mrf.mxu0
  %v245 = vadd.f32 %v65, %v244
  %v246 = vpop.f32.mrf.mxu0
  %247 = vmatprep.mubr.bf16.mxu0 0
  %248 = vmatmul.mubr.bf16.gmra.mxu0 %v154
  %v249 = vpop.f32.mrf.mxu0
  %v250 = vadd.f32 %v65, %v249
  %v251 = vpop.f32.mrf.mxu0
  %v252 = vpop.f32.mrf.mxu0
  %v253 = vadd.f32 %v65, %v252
  %v254 = vpop.f32.mrf.mxu0
  %255 = vmatprep.mubr.bf16.mxu0 0
  %256 = vmatmul.mubr.bf16.gmra.mxu0 %v157
  %v257 = vpop.f32.mrf.mxu0
  %v258 = vadd.f32 %v65, %v257
  %v259 = vpop.f32.mrf.mxu0
  %v260 = vpop.f32.mrf.mxu0
  %v261 = vadd.f32 %v65, %v260
  %v262 = vpop.f32.mrf.mxu0
  %263 = vmatprep.mubr.bf16.mxu0 0
  %264 = vmatmul.mubr.bf16.gmra.mxu0 %v160
  %v265 = vpop.f32.mrf.mxu0
  %v266 = vadd.f32 %v65, %v265
  %v267 = vpop.f32.mrf.mxu0
  %v268 = vpop.f32.mrf.mxu0
  %v269 = vadd.f32 %v65, %v268
  %v270 = vpop.f32.mrf.mxu0
  %271 = vmatprep.mubr.bf16.mxu0 0
  %272 = vmatmul.mubr.bf16.gmra.mxu0 %v163
  %v273 = vpop.f32.mrf.mxu0
  %v274 = vadd.f32 %v65, %v273
  %v275 = vpop.f32.mrf.mxu0
  %v276 = vpop.f32.mrf.mxu0
  %v277 = vadd.f32 %v65, %v276
  %v278 = vpop.f32.mrf.mxu0
  %279 = vmatprep.mubr.bf16.mxu0 0
  %280 = vmatmul.mubr.bf16.gmra.mxu0 %v166
  %v281 = vpop.f32.mrf.mxu0
  %v282 = vadd.f32 %v65, %v281
  %v283 = vpop.f32.mrf.mxu0
  %v284 = vpop.f32.mrf.mxu0
  %v285 = vadd.f32 %v65, %v284
  %v286 = vpop.f32.mrf.mxu0
  %287 = vmatprep.mubr.bf16.mxu0 0
  %288 = vmatmul.mubr.bf16.gmra.mxu0 %v169
  %v289 = vpop.f32.mrf.mxu0
  %v290 = vadd.f32 %v65, %v289
  %v291 = vpop.f32.mrf.mxu0
  %v292 = vpop.f32.mrf.mxu0
  %v293 = vadd.f32 %v65, %v292
  %v294 = vpop.f32.mrf.mxu0
  %295 = vdwg.mxu0
  %v296 = vmax.f32 %v210, 0.0
  %v297 = vmax.f32 %v213, 0.0
  %v298 = vmax.f32 %v218, 0.0
  %v299 = vmax.f32 %v221, 0.0
  %v300 = vmax.f32 %v226, 0.0
  %v301 = vmax.f32 %v229, 0.0
  %v302 = vmax.f32 %v234, 0.0
  %v303 = vmax.f32 %v237, 0.0
  %v304 = vmax.f32 %v242, 0.0
  %v305 = vmax.f32 %v245, 0.0
  %v306 = vmax.f32 %v250, 0.0
  %v307 = vmax.f32 %v253, 0.0
  %v308 = vmax.f32 %v258, 0.0
  %v309 = vmax.f32 %v261, 0.0
  %v310 = vmax.f32 %v266, 0.0
  %v311 = vmax.f32 %v269, 0.0
  %v312 = vmax.f32 %v274, 0.0
  %v313 = vmax.f32 %v277, 0.0
  %v314 = vmax.f32 %v282, 0.0
  %v315 = vmax.f32 %v285, 0.0
  %v316 = vmax.f32 %v290, 0.0
  %v317 = vmax.f32 %v293, 0.0
  %vm318 = vcmask 261120
  %319 = vst.msk [vmem:[#allocation2] sm:$0xff] %vm318, %v296
  %320 = vst.msk [vmem:[#allocation2 + $0x8] sm:$0xff] %vm318, %v297
  %321 = vst.msk [vmem:[#allocation2 + $0x10] sm:$0xff] %vm318, %v298
  %322 = vst.msk [vmem:[#allocation2 + $0x18] sm:$0xff] %vm318, %v299
  %323 = vst.msk [vmem:[#allocation2 + $0x20] sm:$0xff] %vm318, %v300
  %324 = vst.msk [vmem:[#allocation2 + $0x28] sm:$0xff] %vm318, %v301
  %325 = vst.msk [vmem:[#allocation2 + $0x30] sm:$0xff] %vm318, %v302
  %326 = vst.msk [vmem:[#allocation2 + $0x38] sm:$0xff] %vm318, %v303
  %327 = vst.msk [vmem:[#allocation2 + $0x40] sm:$0xff] %vm318, %v304
  %328 = vst.msk [vmem:[#allocation2 + $0x48] sm:$0xff] %vm318, %v305
  %329 = vst.msk [vmem:[#allocation2 + $0x50] sm:$0xff] %vm318, %v306
  %330 = vst.msk [vmem:[#allocation2 + $0x58] sm:$0xff] %vm318, %v307
  %331 = vst.msk [vmem:[#allocation2 + $0x60] sm:$0xff] %vm318, %v308
  %332 = vst.msk [vmem:[#allocation2 + $0x68] sm:$0xff] %vm318, %v309
  %333 = vst.msk [vmem:[#allocation2 + $0x70] sm:$0xff] %vm318, %v310
  %334 = vst.msk [vmem:[#allocation2 + $0x78] sm:$0xff] %vm318, %v311
  %335 = vst.msk [vmem:[#allocation2 + $0x80] sm:$0xff] %vm318, %v312
  %336 = vst.msk [vmem:[#allocation2 + $0x88] sm:$0xff] %vm318, %v313
  %337 = vst.msk [vmem:[#allocation2 + $0x90] sm:$0xff] %vm318, %v314
  %338 = vst.msk [vmem:[#allocation2 + $0x98] sm:$0xff] %vm318, %v315
  %339 = vst.msk [vmem:[#allocation2 + $0xa0] sm:$0xff] %vm318, %v316
  %340 = vst.msk [vmem:[#allocation2 + $0xa8] sm:$0xff] %vm318, %v317
  %341 = vst.msk [vmem:[#allocation2 + $0xb0] sm:$0xff] %vm318, 0.0
  %v342 = vld [vmem:[#allocation2] sm:$0xff]
  %v343 = vld [vmem:[#allocation2 + $0x8] sm:$0xff]
  %v344 = vld [vmem:[#allocation2 + $0x10] sm:$0xff]
  %v345 = vld [vmem:[#allocation2 + $0x18] sm:$0xff]
  %v346 = vld [vmem:[#allocation2 + $0x20] sm:$0xff]
  %v347 = vld [vmem:[#allocation2 + $0x28] sm:$0xff]
  %v348 = vld [vmem:[#allocation2 + $0x30] sm:$0xff]
  %v349 = vld [vmem:[#allocation2 + $0x38] sm:$0xff]
  %v350 = vld [vmem:[#allocation2 + $0x40] sm:$0xff]
  %v351 = vld [vmem:[#allocation2 + $0x48] sm:$0xff]
  %v352 = vld [vmem:[#allocation2 + $0x50] sm:$0xff]
  %v353 = vld [vmem:[#allocation2 + $0x58] sm:$0xff]
  %v354 = vld [vmem:[#allocation2 + $0x60] sm:$0xff]
  %v355 = vld [vmem:[#allocation2 + $0x68] sm:$0xff]
  %v356 = vld [vmem:[#allocation2 + $0x70] sm:$0xff]
  %v357 = vld [vmem:[#allocation2 + $0x78] sm:$0xff]
  %v358 = vld [vmem:[#allocation2 + $0x80] sm:$0xff]
  %v359 = vld [vmem:[#allocation2 + $0x88] sm:$0xff]
  %v360 = vld [vmem:[#allocation2 + $0x90] sm:$0xff]
  %v361 = vld [vmem:[#allocation2 + $0x98] sm:$0xff]
  %v362 = vld [vmem:[#allocation2 + $0xa0] sm:$0xff]
  %v363 = vld [vmem:[#allocation2 + $0xa8] sm:$0xff]
  %v364 = vld [vmem:[#allocation2 + $0xb0] sm:$0xff]
  %384 = vrot.lane.b32.xlu0 %v344, 32
  %v385 = vpop.permute.xlu0 %384
  %386 = vrot.lane.b32.xlu0 %v345, 32
  %v387 = vpop.permute.xlu0 %386
  %388 = vrot.lane.b32.xlu0 %v346, 32
  %v389 = vpop.permute.xlu0 %388
  %390 = vrot.lane.b32.xlu0 %v347, 32
  %v391 = vpop.permute.xlu0 %390
  %392 = vrot.lane.b32.xlu0 %v348, 32
  %v393 = vpop.permute.xlu0 %392
  %394 = vrot.lane.b32.xlu0 %v349, 32
  %v395 = vpop.permute.xlu0 %394
  %396 = vrot.lane.b32.xlu0 %v350, 32
  %v397 = vpop.permute.xlu0 %396
  %398 = vrot.lane.b32.xlu0 %v351, 32
  %v399 = vpop.permute.xlu0 %398
  %400 = vrot.lane.b32.xlu0 %v352, 32
  %v401 = vpop.permute.xlu0 %400
  %402 = vrot.lane.b32.xlu0 %v353, 32
  %v403 = vpop.permute.xlu0 %402
  %404 = vrot.lane.b32.xlu0 %v354, 32
  %v405 = vpop.permute.xlu0 %404
  %406 = vrot.lane.b32.xlu0 %v355, 32
  %v407 = vpop.permute.xlu0 %406
  %408 = vrot.lane.b32.xlu0 %v356, 32
  %v409 = vpop.permute.xlu0 %408
  %410 = vrot.lane.b32.xlu0 %v357, 32
  %v411 = vpop.permute.xlu0 %410
  %412 = vrot.lane.b32.xlu0 %v358, 32
  %v413 = vpop.permute.xlu0 %412
  %414 = vrot.lane.b32.xlu0 %v359, 32
  %v415 = vpop.permute.xlu0 %414
  %416 = vrot.lane.b32.xlu0 %v360, 32
  %v417 = vpop.permute.xlu0 %416
  %418 = vrot.lane.b32.xlu0 %v361, 32
  %v419 = vpop.permute.xlu0 %418
  %420 = vrot.lane.b32.xlu0 %v362, 32
  %v421 = vpop.permute.xlu0 %420
  %443 = vrot.lane.b32.xlu0 %v346, 64
  %v444 = vpop.permute.xlu0 %443
  %445 = vrot.lane.b32.xlu0 %v347, 64
  %v446 = vpop.permute.xlu0 %445
  %447 = vrot.lane.b32.xlu0 %v348, 64
  %v448 = vpop.permute.xlu0 %447
  %449 = vrot.lane.b32.xlu0 %v349, 64
  %v450 = vpop.permute.xlu0 %449
  %451 = vrot.lane.b32.xlu0 %v350, 64
  %v452 = vpop.permute.xlu0 %451
  %453 = vrot.lane.b32.xlu0 %v351, 64
  %v454 = vpop.permute.xlu0 %453
  %455 = vrot.lane.b32.xlu0 %v352, 64
  %v456 = vpop.permute.xlu0 %455
  %457 = vrot.lane.b32.xlu0 %v353, 64
  %v458 = vpop.permute.xlu0 %457
  %459 = vrot.lane.b32.xlu0 %v354, 64
  %v460 = vpop.permute.xlu0 %459
  %461 = vrot.lane.b32.xlu0 %v355, 64
  %v462 = vpop.permute.xlu0 %461
  %463 = vrot.lane.b32.xlu0 %v356, 64
  %v464 = vpop.permute.xlu0 %463
  %465 = vrot.lane.b32.xlu0 %v357, 64
  %v466 = vpop.permute.xlu0 %465
  %467 = vrot.lane.b32.xlu0 %v358, 64
  %v468 = vpop.permute.xlu0 %467
  %469 = vrot.lane.b32.xlu0 %v359, 64
  %v470 = vpop.permute.xlu0 %469
  %471 = vrot.lane.b32.xlu0 %v360, 64
  %v472 = vpop.permute.xlu0 %471
  %473 = vrot.lane.b32.xlu0 %v361, 64
  %v474 = vpop.permute.xlu0 %473
  %475 = vrot.lane.b32.xlu0 %v362, 64
  %v476 = vpop.permute.xlu0 %475
  %477 = vrot.lane.b32.xlu0 %v363, 64
  %v478 = vpop.permute.xlu0 %477
  %479 = vrot.lane.b32.xlu0 %v364, 64
  %v480 = vpop.permute.xlu0 %479
  %v500 = vsel %vm318, %v342, %v385
  %v501 = vsel %vm318, %v343, %v387
  %v502 = vsel %vm318, %v344, %v389
  %v503 = vsel %vm318, %v345, %v391
  %v504 = vsel %vm318, %v346, %v393
  %v505 = vsel %vm318, %v347, %v395
  %v506 = vsel %vm318, %v348, %v397
  %v507 = vsel %vm318, %v349, %v399
  %v508 = vsel %vm318, %v350, %v401
  %v509 = vsel %vm318, %v351, %v403
  %v510 = vsel %vm318, %v352, %v405
  %v511 = vsel %vm318, %v353, %v407
  %v512 = vsel %vm318, %v354, %v409
  %v513 = vsel %vm318, %v355, %v411
  %v514 = vsel %vm318, %v356, %v413
  %v515 = vsel %vm318, %v357, %v415
  %v516 = vsel %vm318, %v358, %v417
  %v517 = vsel %vm318, %v359, %v419
  %v518 = vsel %vm318, %v360, %v421
  %vm519 = vcmask 523264
  %v520 = vsel %vm519, %v500, %v444
  %v521 = vsel %vm519, %v501, %v446
  %v522 = vsel %vm519, %v502, %v448
  %v523 = vsel %vm519, %v503, %v450
  %v524 = vsel %vm519, %v504, %v452
  %v525 = vsel %vm519, %v505, %v454
  %v526 = vsel %vm519, %v506, %v456
  %v527 = vsel %vm519, %v507, %v458
  %v528 = vsel %vm519, %v508, %v460
  %v529 = vsel %vm519, %v509, %v462
  %v530 = vsel %vm519, %v510, %v464
  %v531 = vsel %vm519, %v511, %v466
  %v532 = vsel %vm519, %v512, %v468
  %v533 = vsel %vm519, %v513, %v470
  %v534 = vsel %vm519, %v514, %v472
  %v535 = vsel %vm519, %v515, %v474
  %v536 = vsel %vm519, %v516, %v476
  %v537 = vsel %vm519, %v517, %v478
  %v538 = vsel %vm519, %v518, %v480
  %v539 = vpack.c.bf16 %v521, %v520
  %v540 = vpack.c.bf16 %v523, %v522
  %v541 = vpack.c.bf16 %v525, %v524
  %v542 = vpack.c.bf16 %v527, %v526
  %v543 = vpack.c.bf16 %v529, %v528
  %v544 = vpack.c.bf16 %v531, %v530
  %v545 = vpack.c.bf16 %v533, %v532
  %v546 = vpack.c.bf16 %v535, %v534
  %v547 = vpack.c.bf16 %v537, %v536
  %v548 = vpack.c.bf16 %v538, %v538
  %v549 = vld [vmem:[%s3] sm:$0xf]
  %v550 = vld [vmem:[%s3 + $0x4] sm:$0xf]
  %v551 = vld [vmem:[%s3 + $0x8] sm:$0xf]
  %v552 = vld [vmem:[%s3 + $0xc] sm:$0xf]
  %v553 = vld [vmem:[%s3 + $0x10] sm:$0xf]
  %v554 = vld [vmem:[%s3 + $0x14] sm:$0xf]
  %v555 = vld [vmem:[%s3 + $0x18] sm:$0xf]
  %v556 = vld [vmem:[%s3 + $0x1c] sm:$0xf]
  %v557 = vld [vmem:[%s3 + $0x20] sm:$0xf]
  %v558 = vld [vmem:[%s3 + $0x24] sm:$0xf]
  %v559 = vld [vmem:[%s3 + $0x28] sm:$0xf]
  %v560 = vld [vmem:[%s3 + $0x2c] sm:$0xf]
  %v573 = vunpack.c.l.b16 %v549
  %v574 = vunpack.c.l.b16 %v550
  %v575 = vunpack.c.l.b16 %v551
  %v576 = vunpack.c.l.b16 %v552
  %v577 = vunpack.c.l.b16 %v553
  %v578 = vunpack.c.l.b16 %v554
  %v579 = vunpack.c.l.b16 %v555
  %v580 = vunpack.c.l.b16 %v556
  %v581 = vunpack.c.l.b16 %v557
  %v582 = vunpack.c.l.b16 %v558
  %v583 = vunpack.c.l.b16 %v559
  %v584 = vunpack.c.l.b16 %v560
  %v585 = vpack.c.b16 %v574, %v573
  %v586 = vpack.c.b16 %v576, %v575
  %v587 = vpack.c.b16 %v578, %v577
  %v588 = vpack.c.b16 %v580, %v579
  %v589 = vpack.c.b16 %v582, %v581
  %v590 = vpack.c.b16 %v584, %v583
  %vm597 = vcmask 785408
  %v599 = vsel %vm597, %v539, 0
  %v602 = vsel %vm597, %v540, 0
  %v605 = vsel %vm597, %v541, 0
  %v608 = vsel %vm597, %v542, 0
  %v611 = vsel %vm597, %v543, 0
  %v614 = vsel %vm597, %v544, 0
  %v617 = vsel %vm597, %v545, 0
  %v620 = vsel %vm597, %v546, 0
  %v623 = vsel %vm597, %v547, 0
  %v626 = vsel %vm597, %v548, 0
  %628 = vmatprep.subr.bf16.mxu0 0
  %629 = vmatpush1.bf16.msra.mxu0 0
  %630 = vmatprep.subr.bf16.mxu0 0
  %631 = vmatpush1.bf16.msra.mxu0 0
  %632 = vmatprep.subr.bf16.mxu0 0
  %633 = vmatpush1.bf16.msra.mxu0 %v590
  %634 = vmatprep.subr.bf16.mxu0 0
  %635 = vmatpush1.bf16.msra.mxu0 %v589
  %636 = vmatprep.subr.bf16.mxu0 0
  %637 = vmatpush1.bf16.msra.mxu0 %v588
  %638 = vmatprep.subr.bf16.mxu0 0
  %639 = vmatpush1.bf16.msra.mxu0 %v587
  %640 = vmatprep.subr.bf16.mxu0 0
  %641 = vmatpush1.bf16.msra.mxu0 %v586
  %642 = vmatprep.subr.bf16.mxu0 0
  %643 = vmatpush1.bf16.msra.mxu0 %v585
  %644 = vmatprep.subr.bf16.mxu0 0
  %645 = vmatpush2.bf16.msra.mxu0 0
  %646 = vmatprep.subr.bf16.mxu0 0
  %647 = vmatpush2.bf16.msra.mxu0 0
  %648 = vmatprep.subr.bf16.mxu0 0
  %649 = vmatpush2.bf16.msra.mxu0 0
  %650 = vmatprep.subr.bf16.mxu0 0
  %651 = vmatpush2.bf16.msra.mxu0 0
  %652 = vmatprep.subr.bf16.mxu0 0
  %653 = vmatpush2.bf16.msra.mxu0 0
  %654 = vmatprep.subr.bf16.mxu0 0
  %655 = vmatpush2.bf16.msra.mxu0 0
  %656 = vmatprep.subr.bf16.mxu0 0
  %657 = vmatpush2.bf16.msra.mxu0 0
  %658 = vmatprep.subr.bf16.mxu0 0
  %659 = vmatpush2.bf16.msra.mxu0 0
  %660 = vmatprep.mubr.bf16.mxu0 0
  %661 = vmatmul.mubr.bf16.gmra.mxu0 %v599
  %v662 = vpop.f32.mrf.mxu0
  %v663 = vadd.f32 0.0, %v662
  %v664 = vpop.f32.mrf.mxu0
  %v665 = vpop.f32.mrf.mxu0
  %v666 = vadd.f32 0.0, %v665
  %v667 = vpop.f32.mrf.mxu0
  %668 = vmatprep.mubr.bf16.mxu0 0
  %669 = vmatmul.mubr.bf16.gmra.mxu0 %v602
  %v670 = vpop.f32.mrf.mxu0
  %v671 = vadd.f32 0.0, %v670
  %v672 = vpop.f32.mrf.mxu0
  %v673 = vpop.f32.mrf.mxu0
  %v674 = vadd.f32 0.0, %v673
  %v675 = vpop.f32.mrf.mxu0
  %676 = vmatprep.mubr.bf16.mxu0 0
  %677 = vmatmul.mubr.bf16.gmra.mxu0 %v605
  %v678 = vpop.f32.mrf.mxu0
  %v679 = vadd.f32 0.0, %v678
  %v680 = vpop.f32.mrf.mxu0
  %v681 = vpop.f32.mrf.mxu0
  %v682 = vadd.f32 0.0, %v681
  %v683 = vpop.f32.mrf.mxu0
  %684 = vmatprep.mubr.bf16.mxu0 0
  %685 = vmatmul.mubr.bf16.gmra.mxu0 %v608
  %v686 = vpop.f32.mrf.mxu0
  %v687 = vadd.f32 0.0, %v686
  %v688 = vpop.f32.mrf.mxu0
  %v689 = vpop.f32.mrf.mxu0
  %v690 = vadd.f32 0.0, %v689
  %v691 = vpop.f32.mrf.mxu0
  %692 = vmatprep.mubr.bf16.mxu0 0
  %693 = vmatmul.mubr.bf16.gmra.mxu0 %v611
  %v694 = vpop.f32.mrf.mxu0
  %v695 = vadd.f32 0.0, %v694
  %v696 = vpop.f32.mrf.mxu0
  %v697 = vpop.f32.mrf.mxu0
  %v698 = vadd.f32 0.0, %v697
  %v699 = vpop.f32.mrf.mxu0
  %700 = vmatprep.mubr.bf16.mxu0 0
  %701 = vmatmul.mubr.bf16.gmra.mxu0 %v614
  %v702 = vpop.f32.mrf.mxu0
  %v703 = vadd.f32 0.0, %v702
  %v704 = vpop.f32.mrf.mxu0
  %v705 = vpop.f32.mrf.mxu0
  %v706 = vadd.f32 0.0, %v705
  %v707 = vpop.f32.mrf.mxu0
  %708 = vmatprep.mubr.bf16.mxu0 0
  %709 = vmatmul.mubr.bf16.gmra.mxu0 %v617
  %v710 = vpop.f32.mrf.mxu0
  %v711 = vadd.f32 0.0, %v710
  %v712 = vpop.f32.mrf.mxu0
  %v713 = vpop.f32.mrf.mxu0
  %v714 = vadd.f32 0.0, %v713
  %v715 = vpop.f32.mrf.mxu0
  %716 = vmatprep.mubr.bf16.mxu0 0
  %717 = vmatmul.mubr.bf16.gmra.mxu0 %v620
  %v718 = vpop.f32.mrf.mxu0
  %v719 = vadd.f32 0.0, %v718
  %v720 = vpop.f32.mrf.mxu0
  %v721 = vpop.f32.mrf.mxu0
  %v722 = vadd.f32 0.0, %v721
  %v723 = vpop.f32.mrf.mxu0
  %724 = vmatprep.mubr.bf16.mxu0 0
  %725 = vmatmul.mubr.bf16.gmra.mxu0 %v623
  %v726 = vpop.f32.mrf.mxu0
  %v727 = vadd.f32 0.0, %v726
  %v728 = vpop.f32.mrf.mxu0
  %v729 = vpop.f32.mrf.mxu0
  %v730 = vadd.f32 0.0, %v729
  %v731 = vpop.f32.mrf.mxu0
  %732 = vmatprep.mubr.bf16.mxu0 0
  %733 = vmatmul.mubr.bf16.gmra.mxu0 %v626
  %v734 = vpop.f32.mrf.mxu0
  %v735 = vadd.f32 0.0, %v734
  %v736 = vpop.f32.mrf.mxu0
  %v737 = vpop.f32.mrf.mxu0
  %v738 = vpop.f32.mrf.mxu0
  %739 = vdwg.mxu0
  %vm759 = vcmask 1046528
  %v760 = vrot.slane %v663, 1
  %v761 = vrot.slane %v666, 1
  %v762 = vsel %vm759, %v760, %v761
  %v763 = vrot.slane %v671, 1
  %v764 = vsel %vm759, %v761, %v763
  %v765 = vrot.slane %v674, 1
  %v766 = vsel %vm759, %v763, %v765
  %v767 = vrot.slane %v679, 1
  %v768 = vsel %vm759, %v765, %v767
  %v769 = vrot.slane %v682, 1
  %v770 = vsel %vm759, %v767, %v769
  %v771 = vrot.slane %v687, 1
  %v772 = vsel %vm759, %v769, %v771
  %v773 = vrot.slane %v690, 1
  %v774 = vsel %vm759, %v771, %v773
  %v775 = vrot.slane %v695, 1
  %v776 = vsel %vm759, %v773, %v775
  %v777 = vrot.slane %v698, 1
  %v778 = vsel %vm759, %v775, %v777
  %v779 = vrot.slane %v703, 1
  %v780 = vsel %vm759, %v777, %v779
  %v781 = vrot.slane %v706, 1
  %v782 = vsel %vm759, %v779, %v781
  %v783 = vrot.slane %v711, 1
  %v784 = vsel %vm759, %v781, %v783
  %v785 = vrot.slane %v714, 1
  %v786 = vsel %vm759, %v783, %v785
  %v787 = vrot.slane %v719, 1
  %v788 = vsel %vm759, %v785, %v787
  %v789 = vrot.slane %v722, 1
  %v790 = vsel %vm759, %v787, %v789
  %v791 = vrot.slane %v727, 1
  %v792 = vsel %vm759, %v789, %v791
  %v793 = vrot.slane %v730, 1
  %v794 = vsel %vm759, %v791, %v793
  %v795 = vrot.slane %v735, 1
  %v796 = vsel %vm759, %v793, %v795
  %797 = vrot.lane.b32.xlu0 %v762, 96
  %v798 = vpop.permute.xlu0 %797
  %799 = vrot.lane.b32.xlu0 %v764, 96
  %v800 = vpop.permute.xlu0 %799
  %801 = vrot.lane.b32.xlu0 %v766, 96
  %v802 = vpop.permute.xlu0 %801
  %803 = vrot.lane.b32.xlu0 %v768, 96
  %v804 = vpop.permute.xlu0 %803
  %805 = vrot.lane.b32.xlu0 %v770, 96
  %v806 = vpop.permute.xlu0 %805
  %807 = vrot.lane.b32.xlu0 %v772, 96
  %v808 = vpop.permute.xlu0 %807
  %809 = vrot.lane.b32.xlu0 %v774, 96
  %v810 = vpop.permute.xlu0 %809
  %811 = vrot.lane.b32.xlu0 %v776, 96
  %v812 = vpop.permute.xlu0 %811
  %813 = vrot.lane.b32.xlu0 %v778, 96
  %v814 = vpop.permute.xlu0 %813
  %815 = vrot.lane.b32.xlu0 %v780, 96
  %v816 = vpop.permute.xlu0 %815
  %817 = vrot.lane.b32.xlu0 %v782, 96
  %v818 = vpop.permute.xlu0 %817
  %819 = vrot.lane.b32.xlu0 %v784, 96
  %v820 = vpop.permute.xlu0 %819
  %821 = vrot.lane.b32.xlu0 %v786, 96
  %v822 = vpop.permute.xlu0 %821
  %823 = vrot.lane.b32.xlu0 %v788, 96
  %v824 = vpop.permute.xlu0 %823
  %825 = vrot.lane.b32.xlu0 %v790, 96
  %v826 = vpop.permute.xlu0 %825
  %827 = vrot.lane.b32.xlu0 %v792, 96
  %v828 = vpop.permute.xlu0 %827
  %829 = vrot.lane.b32.xlu0 %v794, 96
  %v830 = vpop.permute.xlu0 %829
  %831 = vrot.lane.b32.xlu0 %v796, 96
  %v832 = vpop.permute.xlu0 %831
  %v851 = vadd.f32 %v663, %v798
  %v852 = vadd.f32 %v666, %v800
  %v853 = vadd.f32 %v671, %v802
  %v854 = vadd.f32 %v674, %v804
  %v855 = vadd.f32 %v679, %v806
  %v856 = vadd.f32 %v682, %v808
  %v857 = vadd.f32 %v687, %v810
  %v858 = vadd.f32 %v690, %v812
  %v859 = vadd.f32 %v695, %v814
  %v860 = vadd.f32 %v698, %v816
  %v861 = vadd.f32 %v703, %v818
  %v862 = vadd.f32 %v706, %v820
  %v863 = vadd.f32 %v711, %v822
  %v864 = vadd.f32 %v714, %v824
  %v865 = vadd.f32 %v719, %v826
  %v866 = vadd.f32 %v722, %v828
  %v867 = vadd.f32 %v727, %v830
  %v868 = vadd.f32 %v730, %v832
  %vm869 = vcmask 1045504
  %v870 = vrot.slane %v663, 2
  %v871 = vrot.slane %v666, 2
  %v872 = vsel %vm869, %v870, %v871
  %v873 = vrot.slane %v671, 2
  %v874 = vsel %vm869, %v871, %v873
  %v875 = vrot.slane %v674, 2
  %v876 = vsel %vm869, %v873, %v875
  %v877 = vrot.slane %v679, 2
  %v878 = vsel %vm869, %v875, %v877
  %v879 = vrot.slane %v682, 2
  %v880 = vsel %vm869, %v877, %v879
  %v881 = vrot.slane %v687, 2
  %v882 = vsel %vm869, %v879, %v881
  %v883 = vrot.slane %v690, 2
  %v884 = vsel %vm869, %v881, %v883
  %v885 = vrot.slane %v695, 2
  %v886 = vsel %vm869, %v883, %v885
  %v887 = vrot.slane %v698, 2
  %v888 = vsel %vm869, %v885, %v887
  %v889 = vrot.slane %v703, 2
  %v890 = vsel %vm869, %v887, %v889
  %v891 = vrot.slane %v706, 2
  %v892 = vsel %vm869, %v889, %v891
  %v893 = vrot.slane %v711, 2
  %v894 = vsel %vm869, %v891, %v893
  %v895 = vrot.slane %v714, 2
  %v896 = vsel %vm869, %v893, %v895
  %v897 = vrot.slane %v719, 2
  %v898 = vsel %vm869, %v895, %v897
  %v899 = vrot.slane %v722, 2
  %v900 = vsel %vm869, %v897, %v899
  %v901 = vrot.slane %v727, 2
  %v902 = vsel %vm869, %v899, %v901
  %v903 = vrot.slane %v730, 2
  %v904 = vsel %vm869, %v901, %v903
  %v905 = vrot.slane %v735, 2
  %v906 = vsel %vm869, %v903, %v905
  %907 = vrot.lane.b32.xlu0 %v872, 64
  %v908 = vpop.permute.xlu0 %907
  %909 = vrot.lane.b32.xlu0 %v874, 64
  %v910 = vpop.permute.xlu0 %909
  %911 = vrot.lane.b32.xlu0 %v876, 64
  %v912 = vpop.permute.xlu0 %911
  %913 = vrot.lane.b32.xlu0 %v878, 64
  %v914 = vpop.permute.xlu0 %913
  %915 = vrot.lane.b32.xlu0 %v880, 64
  %v916 = vpop.permute.xlu0 %915
  %917 = vrot.lane.b32.xlu0 %v882, 64
  %v918 = vpop.permute.xlu0 %917
  %919 = vrot.lane.b32.xlu0 %v884, 64
  %v920 = vpop.permute.xlu0 %919
  %921 = vrot.lane.b32.xlu0 %v886, 64
  %v922 = vpop.permute.xlu0 %921
  %923 = vrot.lane.b32.xlu0 %v888, 64
  %v924 = vpop.permute.xlu0 %923
  %925 = vrot.lane.b32.xlu0 %v890, 64
  %v926 = vpop.permute.xlu0 %925
  %927 = vrot.lane.b32.xlu0 %v892, 64
  %v928 = vpop.permute.xlu0 %927
  %929 = vrot.lane.b32.xlu0 %v894, 64
  %v930 = vpop.permute.xlu0 %929
  %931 = vrot.lane.b32.xlu0 %v896, 64
  %v932 = vpop.permute.xlu0 %931
  %933 = vrot.lane.b32.xlu0 %v898, 64
  %v934 = vpop.permute.xlu0 %933
  %935 = vrot.lane.b32.xlu0 %v900, 64
  %v936 = vpop.permute.xlu0 %935
  %937 = vrot.lane.b32.xlu0 %v902, 64
  %v938 = vpop.permute.xlu0 %937
  %939 = vrot.lane.b32.xlu0 %v904, 64
  %v940 = vpop.permute.xlu0 %939
  %941 = vrot.lane.b32.xlu0 %v906, 64
  %v942 = vpop.permute.xlu0 %941
  %v961 = vadd.f32 %v851, %v908
  %v962 = vadd.f32 %v852, %v910
  %v963 = vadd.f32 %v853, %v912
  %v964 = vadd.f32 %v854, %v914
  %v965 = vadd.f32 %v855, %v916
  %v966 = vadd.f32 %v856, %v918
  %v967 = vadd.f32 %v857, %v920
  %v968 = vadd.f32 %v858, %v922
  %v969 = vadd.f32 %v859, %v924
  %v970 = vadd.f32 %v860, %v926
  %v971 = vadd.f32 %v861, %v928
  %v972 = vadd.f32 %v862, %v930
  %v973 = vadd.f32 %v863, %v932
  %v974 = vadd.f32 %v864, %v934
  %v975 = vadd.f32 %v865, %v936
  %v976 = vadd.f32 %v866, %v938
  %v977 = vadd.f32 %v867, %v940
  %v978 = vadd.f32 %v868, %v942
  %v979 = vld [vmem:[%s4] sm:$0x1]
  %v981 = vlaneseq
  %v982 = vshrl.u32 %v981, 7
  %v983 = vsub.s32 0, %v982
  %v984 = vrot.slane %v979, %v983
  %v986 = vadd.f32 %v961, %v984
  %v987 = vadd.f32 %v962, %v984
  %v988 = vadd.f32 %v963, %v984
  %v989 = vadd.f32 %v964, %v984
  %v990 = vadd.f32 %v965, %v984
  %v991 = vadd.f32 %v966, %v984
  %v992 = vadd.f32 %v967, %v984
  %v993 = vadd.f32 %v968, %v984
  %v994 = vadd.f32 %v969, %v984
  %v995 = vadd.f32 %v970, %v984
  %v996 = vadd.f32 %v971, %v984
  %v997 = vadd.f32 %v972, %v984
  %v998 = vadd.f32 %v973, %v984
  %v999 = vadd.f32 %v974, %v984
  %v1000 = vadd.f32 %v975, %v984
  %v1001 = vadd.f32 %v976, %v984
  %v1002 = vadd.f32 %v977, %v984
  %v1003 = vadd.f32 %v978, %v984
  %v1004 = vmax.f32 %v986, 0.0
  %v1005 = vmax.f32 %v987, 0.0
  %v1006 = vmax.f32 %v988, 0.0
  %v1007 = vmax.f32 %v989, 0.0
  %v1008 = vmax.f32 %v990, 0.0
  %v1009 = vmax.f32 %v991, 0.0
  %v1010 = vmax.f32 %v992, 0.0
  %v1011 = vmax.f32 %v993, 0.0
  %v1012 = vmax.f32 %v994, 0.0
  %v1013 = vmax.f32 %v995, 0.0
  %v1014 = vmax.f32 %v996, 0.0
  %v1015 = vmax.f32 %v997, 0.0
  %v1016 = vmax.f32 %v998, 0.0
  %v1017 = vmax.f32 %v999, 0.0
  %v1018 = vmax.f32 %v1000, 0.0
  %v1019 = vmax.f32 %v1001, 0.0
  %v1020 = vmax.f32 %v1002, 0.0
  %v1021 = vmax.f32 %v1003, 0.0
  %1022 = vst.msk [vmem:[#allocation3] sm:$0xff] %vm318, %v1004
  %1023 = vst.msk [vmem:[#allocation3 + $0x8] sm:$0xff] %vm318, %v1005
  %1024 = vst.msk [vmem:[#allocation3 + $0x10] sm:$0xff] %vm318, %v1006
  %1025 = vst.msk [vmem:[#allocation3 + $0x18] sm:$0xff] %vm318, %v1007
  %1026 = vst.msk [vmem:[#allocation3 + $0x20] sm:$0xff] %vm318, %v1008
  %1027 = vst.msk [vmem:[#allocation3 + $0x28] sm:$0xff] %vm318, %v1009
  %1028 = vst.msk [vmem:[#allocation3 + $0x30] sm:$0xff] %vm318, %v1010
  %1029 = vst.msk [vmem:[#allocation3 + $0x38] sm:$0xff] %vm318, %v1011
  %1030 = vst.msk [vmem:[#allocation3 + $0x40] sm:$0xff] %vm318, %v1012
  %1031 = vst.msk [vmem:[#allocation3 + $0x48] sm:$0xff] %vm318, %v1013
  %1032 = vst.msk [vmem:[#allocation3 + $0x50] sm:$0xff] %vm318, %v1014
  %1033 = vst.msk [vmem:[#allocation3 + $0x58] sm:$0xff] %vm318, %v1015
  %1034 = vst.msk [vmem:[#allocation3 + $0x60] sm:$0xff] %vm318, %v1016
  %1035 = vst.msk [vmem:[#allocation3 + $0x68] sm:$0xff] %vm318, %v1017
  %1036 = vst.msk [vmem:[#allocation3 + $0x70] sm:$0xff] %vm318, %v1018
  %1037 = vst.msk [vmem:[#allocation3 + $0x78] sm:$0xff] %vm318, %v1019
  %1038 = vst.msk [vmem:[#allocation3 + $0x80] sm:$0xff] %vm318, %v1020
  %1039 = vst.msk [vmem:[#allocation3 + $0x88] sm:$0xff] %vm318, %v1021
  %1040 = vst.msk [vmem:[#allocation3 + $0x90] sm:$0xff] %vm318, 0.0
  %v1041 = vld [vmem:[#allocation3] sm:$0xff]
  %v1042 = vld [vmem:[#allocation3 + $0x8] sm:$0xff]
  %v1043 = vld [vmem:[#allocation3 + $0x10] sm:$0xff]
  %v1044 = vld [vmem:[#allocation3 + $0x18] sm:$0xff]
  %v1045 = vld [vmem:[#allocation3 + $0x20] sm:$0xff]
  %v1046 = vld [vmem:[#allocation3 + $0x28] sm:$0xff]
  %v1047 = vld [vmem:[#allocation3 + $0x30] sm:$0xff]
  %v1048 = vld [vmem:[#allocation3 + $0x38] sm:$0xff]
  %v1049 = vld [vmem:[#allocation3 + $0x40] sm:$0xff]
  %v1050 = vld [vmem:[#allocation3 + $0x48] sm:$0xff]
  %v1051 = vld [vmem:[#allocation3 + $0x50] sm:$0xff]
  %v1052 = vld [vmem:[#allocation3 + $0x58] sm:$0xff]
  %v1053 = vld [vmem:[#allocation3 + $0x60] sm:$0xff]
  %v1054 = vld [vmem:[#allocation3 + $0x68] sm:$0xff]
  %v1055 = vld [vmem:[#allocation3 + $0x70] sm:$0xff]
  %v1056 = vld [vmem:[#allocation3 + $0x78] sm:$0xff]
  %v1057 = vld [vmem:[#allocation3 + $0x80] sm:$0xff]
  %v1058 = vld [vmem:[#allocation3 + $0x88] sm:$0xff]
  %v1059 = vld [vmem:[#allocation3 + $0x90] sm:$0xff]
  %1075 = vrot.lane.b32.xlu0 %v1043, 32
  %v1076 = vpop.permute.xlu0 %1075
  %1077 = vrot.lane.b32.xlu0 %v1044, 32
  %v1078 = vpop.permute.xlu0 %1077
  %1079 = vrot.lane.b32.xlu0 %v1045, 32
  %v1080 = vpop.permute.xlu0 %1079
  %1081 = vrot.lane.b32.xlu0 %v1046, 32
  %v1082 = vpop.permute.xlu0 %1081
  %1083 = vrot.lane.b32.xlu0 %v1047, 32
  %v1084 = vpop.permute.xlu0 %1083
  %1085 = vrot.lane.b32.xlu0 %v1048, 32
  %v1086 = vpop.permute.xlu0 %1085
  %1087 = vrot.lane.b32.xlu0 %v1049, 32
  %v1088 = vpop.permute.xlu0 %1087
  %1089 = vrot.lane.b32.xlu0 %v1050, 32
  %v1090 = vpop.permute.xlu0 %1089
  %1091 = vrot.lane.b32.xlu0 %v1051, 32
  %v1092 = vpop.permute.xlu0 %1091
  %1093 = vrot.lane.b32.xlu0 %v1052, 32
  %v1094 = vpop.permute.xlu0 %1093
  %1095 = vrot.lane.b32.xlu0 %v1053, 32
  %v1096 = vpop.permute.xlu0 %1095
  %1097 = vrot.lane.b32.xlu0 %v1054, 32
  %v1098 = vpop.permute.xlu0 %1097
  %1099 = vrot.lane.b32.xlu0 %v1055, 32
  %v1100 = vpop.permute.xlu0 %1099
  %1101 = vrot.lane.b32.xlu0 %v1056, 32
  %v1102 = vpop.permute.xlu0 %1101
  %1103 = vrot.lane.b32.xlu0 %v1057, 32
  %v1104 = vpop.permute.xlu0 %1103
  %1122 = vrot.lane.b32.xlu0 %v1045, 64
  %v1123 = vpop.permute.xlu0 %1122
  %1124 = vrot.lane.b32.xlu0 %v1046, 64
  %v1125 = vpop.permute.xlu0 %1124
  %1126 = vrot.lane.b32.xlu0 %v1047, 64
  %v1127 = vpop.permute.xlu0 %1126
  %1128 = vrot.lane.b32.xlu0 %v1048, 64
  %v1129 = vpop.permute.xlu0 %1128
  %1130 = vrot.lane.b32.xlu0 %v1049, 64
  %v1131 = vpop.permute.xlu0 %1130
  %1132 = vrot.lane.b32.xlu0 %v1050, 64
  %v1133 = vpop.permute.xlu0 %1132
  %1134 = vrot.lane.b32.xlu0 %v1051, 64
  %v1135 = vpop.permute.xlu0 %1134
  %1136 = vrot.lane.b32.xlu0 %v1052, 64
  %v1137 = vpop.permute.xlu0 %1136
  %1138 = vrot.lane.b32.xlu0 %v1053, 64
  %v1139 = vpop.permute.xlu0 %1138
  %1140 = vrot.lane.b32.xlu0 %v1054, 64
  %v1141 = vpop.permute.xlu0 %1140
  %1142 = vrot.lane.b32.xlu0 %v1055, 64
  %v1143 = vpop.permute.xlu0 %1142
  %1144 = vrot.lane.b32.xlu0 %v1056, 64
  %v1145 = vpop.permute.xlu0 %1144
  %1146 = vrot.lane.b32.xlu0 %v1057, 64
  %v1147 = vpop.permute.xlu0 %1146
  %1148 = vrot.lane.b32.xlu0 %v1058, 64
  %v1149 = vpop.permute.xlu0 %1148
  %1150 = vrot.lane.b32.xlu0 %v1059, 64
  %v1151 = vpop.permute.xlu0 %1150
  %v1167 = vsel %vm318, %v1041, %v1076
  %v1168 = vsel %vm318, %v1042, %v1078
  %v1169 = vsel %vm318, %v1043, %v1080
  %v1170 = vsel %vm318, %v1044, %v1082
  %v1171 = vsel %vm318, %v1045, %v1084
  %v1172 = vsel %vm318, %v1046, %v1086
  %v1173 = vsel %vm318, %v1047, %v1088
  %v1174 = vsel %vm318, %v1048, %v1090
  %v1175 = vsel %vm318, %v1049, %v1092
  %v1176 = vsel %vm318, %v1050, %v1094
  %v1177 = vsel %vm318, %v1051, %v1096
  %v1178 = vsel %vm318, %v1052, %v1098
  %v1179 = vsel %vm318, %v1053, %v1100
  %v1180 = vsel %vm318, %v1054, %v1102
  %v1181 = vsel %vm318, %v1055, %v1104
  %v1182 = vsel %vm519, %v1167, %v1123
  %v1183 = vsel %vm519, %v1168, %v1125
  %v1184 = vsel %vm519, %v1169, %v1127
  %v1185 = vsel %vm519, %v1170, %v1129
  %v1186 = vsel %vm519, %v1171, %v1131
  %v1187 = vsel %vm519, %v1172, %v1133
  %v1188 = vsel %vm519, %v1173, %v1135
  %v1189 = vsel %vm519, %v1174, %v1137
  %v1190 = vsel %vm519, %v1175, %v1139
  %v1191 = vsel %vm519, %v1176, %v1141
  %v1192 = vsel %vm519, %v1177, %v1143
  %v1193 = vsel %vm519, %v1178, %v1145
  %v1194 = vsel %vm519, %v1179, %v1147
  %v1195 = vsel %vm519, %v1180, %v1149
  %v1196 = vsel %vm519, %v1181, %v1151
  %v1197 = vpack.c.bf16 %v1183, %v1182
  %v1198 = vpack.c.bf16 %v1185, %v1184
  %v1199 = vpack.c.bf16 %v1187, %v1186
  %v1200 = vpack.c.bf16 %v1189, %v1188
  %v1201 = vpack.c.bf16 %v1191, %v1190
  %v1202 = vpack.c.bf16 %v1193, %v1192
  %v1203 = vpack.c.bf16 %v1195, %v1194
  %v1204 = vpack.c.bf16 %v1196, %v1196
  %v1205 = vld [vmem:[%s5] sm:$0xf]
  %v1206 = vld [vmem:[%s5 + $0x4] sm:$0xf]
  %v1207 = vld [vmem:[%s5 + $0x8] sm:$0xf]
  %v1208 = vld [vmem:[%s5 + $0xc] sm:$0xf]
  %v1209 = vld [vmem:[%s5 + $0x10] sm:$0xf]
  %v1210 = vld [vmem:[%s5 + $0x14] sm:$0xf]
  %v1211 = vld [vmem:[%s5 + $0x18] sm:$0xf]
  %v1212 = vld [vmem:[%s5 + $0x1c] sm:$0xf]
  %v1213 = vld [vmem:[%s5 + $0x20] sm:$0xf]
  %v1214 = vld [vmem:[%s5 + $0x24] sm:$0xf]
  %v1215 = vld [vmem:[%s5 + $0x28] sm:$0xf]
  %v1216 = vld [vmem:[%s5 + $0x2c] sm:$0xf]
  %v1229 = vunpack.c.l.b16 %v1205
  %v1230 = vunpack.c.l.b16 %v1206
  %v1231 = vunpack.c.l.b16 %v1207
  %v1232 = vunpack.c.l.b16 %v1208
  %v1233 = vunpack.c.l.b16 %v1209
  %v1234 = vunpack.c.l.b16 %v1210
  %v1235 = vunpack.c.l.b16 %v1211
  %v1236 = vunpack.c.l.b16 %v1212
  %v1237 = vunpack.c.l.b16 %v1213
  %v1238 = vunpack.c.l.b16 %v1214
  %v1239 = vunpack.c.l.b16 %v1215
  %v1240 = vunpack.c.l.b16 %v1216
  %v1241 = vpack.c.b16 %v1230, %v1229
  %v1242 = vpack.c.b16 %v1232, %v1231
  %v1243 = vpack.c.b16 %v1234, %v1233
  %v1244 = vpack.c.b16 %v1236, %v1235
  %v1245 = vpack.c.b16 %v1238, %v1237
  %v1246 = vpack.c.b16 %v1240, %v1239
  %v1254 = vsel %vm597, %v1197, 0
  %v1257 = vsel %vm597, %v1198, 0
  %v1260 = vsel %vm597, %v1199, 0
  %v1263 = vsel %vm597, %v1200, 0
  %v1266 = vsel %vm597, %v1201, 0
  %v1269 = vsel %vm597, %v1202, 0
  %v1272 = vsel %vm597, %v1203, 0
  %v1275 = vsel %vm597, %v1204, 0
  %1277 = vmatprep.subr.bf16.mxu0 0
  %1278 = vmatpush1.bf16.msra.mxu0 0
  %1279 = vmatprep.subr.bf16.mxu0 0
  %1280 = vmatpush1.bf16.msra.mxu0 0
  %1281 = vmatprep.subr.bf16.mxu0 0
  %1282 = vmatpush1.bf16.msra.mxu0 %v1246
  %1283 = vmatprep.subr.bf16.mxu0 0
  %1284 = vmatpush1.bf16.msra.mxu0 %v1245
  %1285 = vmatprep.subr.bf16.mxu0 0
  %1286 = vmatpush1.bf16.msra.mxu0 %v1244
  %1287 = vmatprep.subr.bf16.mxu0 0
  %1288 = vmatpush1.bf16.msra.mxu0 %v1243
  %1289 = vmatprep.subr.bf16.mxu0 0
  %1290 = vmatpush1.bf16.msra.mxu0 %v1242
  %1291 = vmatprep.subr.bf16.mxu0 0
  %1292 = vmatpush1.bf16.msra.mxu0 %v1241
  %1293 = vmatprep.subr.bf16.mxu0 0
  %1294 = vmatpush2.bf16.msra.mxu0 0
  %1295 = vmatprep.subr.bf16.mxu0 0
  %1296 = vmatpush2.bf16.msra.mxu0 0
  %1297 = vmatprep.subr.bf16.mxu0 0
  %1298 = vmatpush2.bf16.msra.mxu0 0
  %1299 = vmatprep.subr.bf16.mxu0 0
  %1300 = vmatpush2.bf16.msra.mxu0 0
  %1301 = vmatprep.subr.bf16.mxu0 0
  %1302 = vmatpush2.bf16.msra.mxu0 0
  %1303 = vmatprep.subr.bf16.mxu0 0
  %1304 = vmatpush2.bf16.msra.mxu0 0
  %1305 = vmatprep.subr.bf16.mxu0 0
  %1306 = vmatpush2.bf16.msra.mxu0 0
  %1307 = vmatprep.subr.bf16.mxu0 0
  %1308 = vmatpush2.bf16.msra.mxu0 0
  %1309 = vmatprep.mubr.bf16.mxu0 0
  %1310 = vmatmul.mubr.bf16.gmra.mxu0 %v1254
  %v1311 = vpop.f32.mrf.mxu0
  %v1312 = vadd.f32 0.0, %v1311
  %v1313 = vpop.f32.mrf.mxu0
  %v1314 = vpop.f32.mrf.mxu0
  %v1315 = vadd.f32 0.0, %v1314
  %v1316 = vpop.f32.mrf.mxu0
  %1317 = vmatprep.mubr.bf16.mxu0 0
  %1318 = vmatmul.mubr.bf16.gmra.mxu0 %v1257
  %v1319 = vpop.f32.mrf.mxu0
  %v1320 = vadd.f32 0.0, %v1319
  %v1321 = vpop.f32.mrf.mxu0
  %v1322 = vpop.f32.mrf.mxu0
  %v1323 = vadd.f32 0.0, %v1322
  %v1324 = vpop.f32.mrf.mxu0
  %1325 = vmatprep.mubr.bf16.mxu0 0
  %1326 = vmatmul.mubr.bf16.gmra.mxu0 %v1260
  %v1327 = vpop.f32.mrf.mxu0
  %v1328 = vadd.f32 0.0, %v1327
  %v1329 = vpop.f32.mrf.mxu0
  %v1330 = vpop.f32.mrf.mxu0
  %v1331 = vadd.f32 0.0, %v1330
  %v1332 = vpop.f32.mrf.mxu0
  %1333 = vmatprep.mubr.bf16.mxu0 0
  %1334 = vmatmul.mubr.bf16.gmra.mxu0 %v1263
  %v1335 = vpop.f32.mrf.mxu0
  %v1336 = vadd.f32 0.0, %v1335
  %v1337 = vpop.f32.mrf.mxu0
  %v1338 = vpop.f32.mrf.mxu0
  %v1339 = vadd.f32 0.0, %v1338
  %v1340 = vpop.f32.mrf.mxu0
  %1341 = vmatprep.mubr.bf16.mxu0 0
  %1342 = vmatmul.mubr.bf16.gmra.mxu0 %v1266
  %v1343 = vpop.f32.mrf.mxu0
  %v1344 = vadd.f32 0.0, %v1343
  %v1345 = vpop.f32.mrf.mxu0
  %v1346 = vpop.f32.mrf.mxu0
  %v1347 = vadd.f32 0.0, %v1346
  %v1348 = vpop.f32.mrf.mxu0
  %1349 = vmatprep.mubr.bf16.mxu0 0
  %1350 = vmatmul.mubr.bf16.gmra.mxu0 %v1269
  %v1351 = vpop.f32.mrf.mxu0
  %v1352 = vadd.f32 0.0, %v1351
  %v1353 = vpop.f32.mrf.mxu0
  %v1354 = vpop.f32.mrf.mxu0
  %v1355 = vadd.f32 0.0, %v1354
  %v1356 = vpop.f32.mrf.mxu0
  %1357 = vmatprep.mubr.bf16.mxu0 0
  %1358 = vmatmul.mubr.bf16.gmra.mxu0 %v1272
  %v1359 = vpop.f32.mrf.mxu0
  %v1360 = vadd.f32 0.0, %v1359
  %v1361 = vpop.f32.mrf.mxu0
  %v1362 = vpop.f32.mrf.mxu0
  %v1363 = vadd.f32 0.0, %v1362
  %v1364 = vpop.f32.mrf.mxu0
  %1365 = vmatprep.mubr.bf16.mxu0 0
  %1366 = vmatmul.mubr.bf16.gmra.mxu0 %v1275
  %v1367 = vpop.f32.mrf.mxu0
  %v1368 = vadd.f32 0.0, %v1367
  %v1369 = vpop.f32.mrf.mxu0
  %v1370 = vpop.f32.mrf.mxu0
  %v1371 = vpop.f32.mrf.mxu0
  %1372 = vdwg.mxu0
  %v1388 = vrot.slane %v1312, 1
  %v1389 = vrot.slane %v1315, 1
  %v1390 = vsel %vm759, %v1388, %v1389
  %v1391 = vrot.slane %v1320, 1
  %v1392 = vsel %vm759, %v1389, %v1391
  %v1393 = vrot.slane %v1323, 1
  %v1394 = vsel %vm759, %v1391, %v1393
  %v1395 = vrot.slane %v1328, 1
  %v1396 = vsel %vm759, %v1393, %v1395
  %v1397 = vrot.slane %v1331, 1
  %v1398 = vsel %vm759, %v1395, %v1397
  %v1399 = vrot.slane %v1336, 1
  %v1400 = vsel %vm759, %v1397, %v1399
  %v1401 = vrot.slane %v1339, 1
  %v1402 = vsel %vm759, %v1399, %v1401
  %v1403 = vrot.slane %v1344, 1
  %v1404 = vsel %vm759, %v1401, %v1403
  %v1405 = vrot.slane %v1347, 1
  %v1406 = vsel %vm759, %v1403, %v1405
  %v1407 = vrot.slane %v1352, 1
  %v1408 = vsel %vm759, %v1405, %v1407
  %v1409 = vrot.slane %v1355, 1
  %v1410 = vsel %vm759, %v1407, %v1409
  %v1411 = vrot.slane %v1360, 1
  %v1412 = vsel %vm759, %v1409, %v1411
  %v1413 = vrot.slane %v1363, 1
  %v1414 = vsel %vm759, %v1411, %v1413
  %v1415 = vrot.slane %v1368, 1
  %v1416 = vsel %vm759, %v1413, %v1415
  %1417 = vrot.lane.b32.xlu0 %v1390, 96
  %v1418 = vpop.permute.xlu0 %1417
  %1419 = vrot.lane.b32.xlu0 %v1392, 96
  %v1420 = vpop.permute.xlu0 %1419
  %1421 = vrot.lane.b32.xlu0 %v1394, 96
  %v1422 = vpop.permute.xlu0 %1421
  %1423 = vrot.lane.b32.xlu0 %v1396, 96
  %v1424 = vpop.permute.xlu0 %1423
  %1425 = vrot.lane.b32.xlu0 %v1398, 96
  %v1426 = vpop.permute.xlu0 %1425
  %1427 = vrot.lane.b32.xlu0 %v1400, 96
  %v1428 = vpop.permute.xlu0 %1427
  %1429 = vrot.lane.b32.xlu0 %v1402, 96
  %v1430 = vpop.permute.xlu0 %1429
  %1431 = vrot.lane.b32.xlu0 %v1404, 96
  %v1432 = vpop.permute.xlu0 %1431
  %1433 = vrot.lane.b32.xlu0 %v1406, 96
  %v1434 = vpop.permute.xlu0 %1433
  %1435 = vrot.lane.b32.xlu0 %v1408, 96
  %v1436 = vpop.permute.xlu0 %1435
  %1437 = vrot.lane.b32.xlu0 %v1410, 96
  %v1438 = vpop.permute.xlu0 %1437
  %1439 = vrot.lane.b32.xlu0 %v1412, 96
  %v1440 = vpop.permute.xlu0 %1439
  %1441 = vrot.lane.b32.xlu0 %v1414, 96
  %v1442 = vpop.permute.xlu0 %1441
  %1443 = vrot.lane.b32.xlu0 %v1416, 96
  %v1444 = vpop.permute.xlu0 %1443
  %v1459 = vadd.f32 %v1312, %v1418
  %v1460 = vadd.f32 %v1315, %v1420
  %v1461 = vadd.f32 %v1320, %v1422
  %v1462 = vadd.f32 %v1323, %v1424
  %v1463 = vadd.f32 %v1328, %v1426
  %v1464 = vadd.f32 %v1331, %v1428
  %v1465 = vadd.f32 %v1336, %v1430
  %v1466 = vadd.f32 %v1339, %v1432
  %v1467 = vadd.f32 %v1344, %v1434
  %v1468 = vadd.f32 %v1347, %v1436
  %v1469 = vadd.f32 %v1352, %v1438
  %v1470 = vadd.f32 %v1355, %v1440
  %v1471 = vadd.f32 %v1360, %v1442
  %v1472 = vadd.f32 %v1363, %v1444
  %v1473 = vrot.slane %v1312, 2
  %v1474 = vrot.slane %v1315, 2
  %v1475 = vsel %vm869, %v1473, %v1474
  %v1476 = vrot.slane %v1320, 2
  %v1477 = vsel %vm869, %v1474, %v1476
  %v1478 = vrot.slane %v1323, 2
  %v1479 = vsel %vm869, %v1476, %v1478
  %v1480 = vrot.slane %v1328, 2
  %v1481 = vsel %vm869, %v1478, %v1480
  %v1482 = vrot.slane %v1331, 2
  %v1483 = vsel %vm869, %v1480, %v1482
  %v1484 = vrot.slane %v1336, 2
  %v1485 = vsel %vm869, %v1482, %v1484
  %v1486 = vrot.slane %v1339, 2
  %v1487 = vsel %vm869, %v1484, %v1486
  %v1488 = vrot.slane %v1344, 2
  %v1489 = vsel %vm869, %v1486, %v1488
  %v1490 = vrot.slane %v1347, 2
  %v1491 = vsel %vm869, %v1488, %v1490
  %v1492 = vrot.slane %v1352, 2
  %v1493 = vsel %vm869, %v1490, %v1492
  %v1494 = vrot.slane %v1355, 2
  %v1495 = vsel %vm869, %v1492, %v1494
  %v1496 = vrot.slane %v1360, 2
  %v1497 = vsel %vm869, %v1494, %v1496
  %v1498 = vrot.slane %v1363, 2
  %v1499 = vsel %vm869, %v1496, %v1498
  %v1500 = vrot.slane %v1368, 2
  %v1501 = vsel %vm869, %v1498, %v1500
  %1502 = vrot.lane.b32.xlu0 %v1475, 64
  %v1503 = vpop.permute.xlu0 %1502
  %1504 = vrot.lane.b32.xlu0 %v1477, 64
  %v1505 = vpop.permute.xlu0 %1504
  %1506 = vrot.lane.b32.xlu0 %v1479, 64
  %v1507 = vpop.permute.xlu0 %1506
  %1508 = vrot.lane.b32.xlu0 %v1481, 64
  %v1509 = vpop.permute.xlu0 %1508
  %1510 = vrot.lane.b32.xlu0 %v1483, 64
  %v1511 = vpop.permute.xlu0 %1510
  %1512 = vrot.lane.b32.xlu0 %v1485, 64
  %v1513 = vpop.permute.xlu0 %1512
  %1514 = vrot.lane.b32.xlu0 %v1487, 64
  %v1515 = vpop.permute.xlu0 %1514
  %1516 = vrot.lane.b32.xlu0 %v1489, 64
  %v1517 = vpop.permute.xlu0 %1516
  %1518 = vrot.lane.b32.xlu0 %v1491, 64
  %v1519 = vpop.permute.xlu0 %1518
  %1520 = vrot.lane.b32.xlu0 %v1493, 64
  %v1521 = vpop.permute.xlu0 %1520
  %1522 = vrot.lane.b32.xlu0 %v1495, 64
  %v1523 = vpop.permute.xlu0 %1522
  %1524 = vrot.lane.b32.xlu0 %v1497, 64
  %v1525 = vpop.permute.xlu0 %1524
  %1526 = vrot.lane.b32.xlu0 %v1499, 64
  %v1527 = vpop.permute.xlu0 %1526
  %1528 = vrot.lane.b32.xlu0 %v1501, 64
  %v1529 = vpop.permute.xlu0 %1528
  %v1544 = vadd.f32 %v1459, %v1503
  %v1545 = vadd.f32 %v1460, %v1505
  %v1546 = vadd.f32 %v1461, %v1507
  %v1547 = vadd.f32 %v1462, %v1509
  %v1548 = vadd.f32 %v1463, %v1511
  %v1549 = vadd.f32 %v1464, %v1513
  %v1550 = vadd.f32 %v1465, %v1515
  %v1551 = vadd.f32 %v1466, %v1517
  %v1552 = vadd.f32 %v1467, %v1519
  %v1553 = vadd.f32 %v1468, %v1521
  %v1554 = vadd.f32 %v1469, %v1523
  %v1555 = vadd.f32 %v1470, %v1525
  %v1556 = vadd.f32 %v1471, %v1527
  %v1557 = vadd.f32 %v1472, %v1529
  %v1558 = vld [vmem:[%s6] sm:$0x1]
  %v1560 = vlaneseq
  %v1561 = vshrl.u32 %v1560, 7
  %v1562 = vsub.s32 0, %v1561
  %v1563 = vrot.slane %v1558, %v1562
  %v1565 = vadd.f32 %v1544, %v1563
  %v1566 = vadd.f32 %v1545, %v1563
  %v1567 = vadd.f32 %v1546, %v1563
  %v1568 = vadd.f32 %v1547, %v1563
  %v1569 = vadd.f32 %v1548, %v1563
  %v1570 = vadd.f32 %v1549, %v1563
  %v1571 = vadd.f32 %v1550, %v1563
  %v1572 = vadd.f32 %v1551, %v1563
  %v1573 = vadd.f32 %v1552, %v1563
  %v1574 = vadd.f32 %v1553, %v1563
  %v1575 = vadd.f32 %v1554, %v1563
  %v1576 = vadd.f32 %v1555, %v1563
  %v1577 = vadd.f32 %v1556, %v1563
  %v1578 = vadd.f32 %v1557, %v1563
  %v1579 = vmax.f32 %v1565, 0.0
  %v1580 = vmax.f32 %v1566, 0.0
  %v1581 = vmax.f32 %v1567, 0.0
  %v1582 = vmax.f32 %v1568, 0.0
  %v1583 = vmax.f32 %v1569, 0.0
  %v1584 = vmax.f32 %v1570, 0.0
  %v1585 = vmax.f32 %v1571, 0.0
  %v1586 = vmax.f32 %v1572, 0.0
  %v1587 = vmax.f32 %v1573, 0.0
  %v1588 = vmax.f32 %v1574, 0.0
  %v1589 = vmax.f32 %v1575, 0.0
  %v1590 = vmax.f32 %v1576, 0.0
  %v1591 = vmax.f32 %v1577, 0.0
  %v1592 = vmax.f32 %v1578, 0.0
  %1593 = vst.msk [vmem:[#allocation4] sm:$0xff] %vm318, %v1579
  %1594 = vst.msk [vmem:[#allocation4 + $0x8] sm:$0xff] %vm318, %v1580
  %1595 = vst.msk [vmem:[#allocation4 + $0x10] sm:$0xff] %vm318, %v1581
  %1596 = vst.msk [vmem:[#allocation4 + $0x18] sm:$0xff] %vm318, %v1582
  %1597 = vst.msk [vmem:[#allocation4 + $0x20] sm:$0xff] %vm318, %v1583
  %1598 = vst.msk [vmem:[#allocation4 + $0x28] sm:$0xff] %vm318, %v1584
  %1599 = vst.msk [vmem:[#allocation4 + $0x30] sm:$0xff] %vm318, %v1585
  %1600 = vst.msk [vmem:[#allocation4 + $0x38] sm:$0xff] %vm318, %v1586
  %1601 = vst.msk [vmem:[#allocation4 + $0x40] sm:$0xff] %vm318, %v1587
  %1602 = vst.msk [vmem:[#allocation4 + $0x48] sm:$0xff] %vm318, %v1588
  %1603 = vst.msk [vmem:[#allocation4 + $0x50] sm:$0xff] %vm318, %v1589
  %1604 = vst.msk [vmem:[#allocation4 + $0x58] sm:$0xff] %vm318, %v1590
  %1605 = vst.msk [vmem:[#allocation4 + $0x60] sm:$0xff] %vm318, %v1591
  %1606 = vst.msk [vmem:[#allocation4 + $0x68] sm:$0xff] %vm318, %v1592
  %1607 = vst.msk [vmem:[#allocation4 + $0x70] sm:$0xff] %vm318, 0.0
  %v1608 = vld [vmem:[#allocation4] sm:$0xff]
  %v1609 = vld [vmem:[#allocation4 + $0x8] sm:$0xff]
  %v1610 = vld [vmem:[#allocation4 + $0x10] sm:$0xff]
  %v1611 = vld [vmem:[#allocation4 + $0x18] sm:$0xff]
  %v1612 = vld [vmem:[#allocation4 + $0x20] sm:$0xff]
  %v1613 = vld [vmem:[#allocation4 + $0x28] sm:$0xff]
  %v1614 = vld [vmem:[#allocation4 + $0x30] sm:$0xff]
  %v1615 = vld [vmem:[#allocation4 + $0x38] sm:$0xff]
  %v1616 = vld [vmem:[#allocation4 + $0x40] sm:$0xff]
  %v1617 = vld [vmem:[#allocation4 + $0x48] sm:$0xff]
  %v1618 = vld [vmem:[#allocation4 + $0x50] sm:$0xff]
  %v1619 = vld [vmem:[#allocation4 + $0x58] sm:$0xff]
  %v1620 = vld [vmem:[#allocation4 + $0x60] sm:$0xff]
  %v1621 = vld [vmem:[#allocation4 + $0x68] sm:$0xff]
  %v1622 = vld [vmem:[#allocation4 + $0x70] sm:$0xff]
  %1634 = vrot.lane.b32.xlu0 %v1610, 32
  %v1635 = vpop.permute.xlu0 %1634
  %1636 = vrot.lane.b32.xlu0 %v1611, 32
  %v1637 = vpop.permute.xlu0 %1636
  %1638 = vrot.lane.b32.xlu0 %v1612, 32
  %v1639 = vpop.permute.xlu0 %1638
  %1640 = vrot.lane.b32.xlu0 %v1613, 32
  %v1641 = vpop.permute.xlu0 %1640
  %1642 = vrot.lane.b32.xlu0 %v1614, 32
  %v1643 = vpop.permute.xlu0 %1642
  %1644 = vrot.lane.b32.xlu0 %v1615, 32
  %v1645 = vpop.permute.xlu0 %1644
  %1646 = vrot.lane.b32.xlu0 %v1616, 32
  %v1647 = vpop.permute.xlu0 %1646
  %1648 = vrot.lane.b32.xlu0 %v1617, 32
  %v1649 = vpop.permute.xlu0 %1648
  %1650 = vrot.lane.b32.xlu0 %v1618, 32
  %v1651 = vpop.permute.xlu0 %1650
  %1652 = vrot.lane.b32.xlu0 %v1619, 32
  %v1653 = vpop.permute.xlu0 %1652
  %1654 = vrot.lane.b32.xlu0 %v1620, 32
  %v1655 = vpop.permute.xlu0 %1654
  %1669 = vrot.lane.b32.xlu0 %v1612, 64
  %v1670 = vpop.permute.xlu0 %1669
  %1671 = vrot.lane.b32.xlu0 %v1613, 64
  %v1672 = vpop.permute.xlu0 %1671
  %1673 = vrot.lane.b32.xlu0 %v1614, 64
  %v1674 = vpop.permute.xlu0 %1673
  %1675 = vrot.lane.b32.xlu0 %v1615, 64
  %v1676 = vpop.permute.xlu0 %1675
  %1677 = vrot.lane.b32.xlu0 %v1616, 64
  %v1678 = vpop.permute.xlu0 %1677
  %1679 = vrot.lane.b32.xlu0 %v1617, 64
  %v1680 = vpop.permute.xlu0 %1679
  %1681 = vrot.lane.b32.xlu0 %v1618, 64
  %v1682 = vpop.permute.xlu0 %1681
  %1683 = vrot.lane.b32.xlu0 %v1619, 64
  %v1684 = vpop.permute.xlu0 %1683
  %1685 = vrot.lane.b32.xlu0 %v1620, 64
  %v1686 = vpop.permute.xlu0 %1685
  %1687 = vrot.lane.b32.xlu0 %v1621, 64
  %v1688 = vpop.permute.xlu0 %1687
  %1689 = vrot.lane.b32.xlu0 %v1622, 64
  %v1690 = vpop.permute.xlu0 %1689
  %v1702 = vsel %vm318, %v1608, %v1635
  %v1703 = vsel %vm318, %v1609, %v1637
  %v1704 = vsel %vm318, %v1610, %v1639
  %v1705 = vsel %vm318, %v1611, %v1641
  %v1706 = vsel %vm318, %v1612, %v1643
  %v1707 = vsel %vm318, %v1613, %v1645
  %v1708 = vsel %vm318, %v1614, %v1647
  %v1709 = vsel %vm318, %v1615, %v1649
  %v1710 = vsel %vm318, %v1616, %v1651
  %v1711 = vsel %vm318, %v1617, %v1653
  %v1712 = vsel %vm318, %v1618, %v1655
  %v1713 = vsel %vm519, %v1702, %v1670
  %v1714 = vsel %vm519, %v1703, %v1672
  %v1715 = vsel %vm519, %v1704, %v1674
  %v1716 = vsel %vm519, %v1705, %v1676
  %v1717 = vsel %vm519, %v1706, %v1678
  %v1718 = vsel %vm519, %v1707, %v1680
  %v1719 = vsel %vm519, %v1708, %v1682
  %v1720 = vsel %vm519, %v1709, %v1684
  %v1721 = vsel %vm519, %v1710, %v1686
  %v1722 = vsel %vm519, %v1711, %v1688
  %v1723 = vsel %vm519, %v1712, %v1690
  %v1724 = vpack.c.bf16 %v1714, %v1713
  %v1725 = vpack.c.bf16 %v1716, %v1715
  %v1726 = vpack.c.bf16 %v1718, %v1717
  %v1727 = vpack.c.bf16 %v1720, %v1719
  %v1728 = vpack.c.bf16 %v1722, %v1721
  %v1729 = vpack.c.bf16 %v1723, %v1723
  %v1730 = vld [vmem:[%s7] sm:$0xf]
  %v1731 = vld [vmem:[%s7 + $0x4] sm:$0xf]
  %v1732 = vld [vmem:[%s7 + $0x8] sm:$0xf]
  %v1733 = vld [vmem:[%s7 + $0xc] sm:$0xf]
  %v1734 = vld [vmem:[%s7 + $0x10] sm:$0xf]
  %v1735 = vld [vmem:[%s7 + $0x14] sm:$0xf]
  %v1736 = vld [vmem:[%s7 + $0x18] sm:$0xf]
  %v1737 = vld [vmem:[%s7 + $0x1c] sm:$0xf]
  %v1738 = vld [vmem:[%s7 + $0x20] sm:$0xf]
  %v1739 = vld [vmem:[%s7 + $0x24] sm:$0xf]
  %v1740 = vld [vmem:[%s7 + $0x28] sm:$0xf]
  %v1741 = vld [vmem:[%s7 + $0x2c] sm:$0xf]
  %v1754 = vunpack.c.l.b16 %v1730
  %v1755 = vunpack.c.l.b16 %v1731
  %v1756 = vunpack.c.l.b16 %v1732
  %v1757 = vunpack.c.l.b16 %v1733
  %v1758 = vunpack.c.l.b16 %v1734
  %v1759 = vunpack.c.l.b16 %v1735
  %v1760 = vunpack.c.l.b16 %v1736
  %v1761 = vunpack.c.l.b16 %v1737
  %v1762 = vunpack.c.l.b16 %v1738
  %v1763 = vunpack.c.l.b16 %v1739
  %v1764 = vunpack.c.l.b16 %v1740
  %v1765 = vunpack.c.l.b16 %v1741
  %v1766 = vpack.c.b16 %v1755, %v1754
  %v1767 = vpack.c.b16 %v1757, %v1756
  %v1768 = vpack.c.b16 %v1759, %v1758
  %v1769 = vpack.c.b16 %v1761, %v1760
  %v1770 = vpack.c.b16 %v1763, %v1762
  %v1771 = vpack.c.b16 %v1765, %v1764
  %v1779 = vsel %vm597, %v1724, 0
  %v1782 = vsel %vm597, %v1725, 0
  %v1785 = vsel %vm597, %v1726, 0
  %v1788 = vsel %vm597, %v1727, 0
  %v1791 = vsel %vm597, %v1728, 0
  %v1794 = vsel %vm597, %v1729, 0
  %1796 = vmatprep.subr.bf16.mxu0 0
  %1797 = vmatpush1.bf16.msra.mxu0 0
  %1798 = vmatprep.subr.bf16.mxu0 0
  %1799 = vmatpush1.bf16.msra.mxu0 0
  %1800 = vmatprep.subr.bf16.mxu0 0
  %1801 = vmatpush1.bf16.msra.mxu0 %v1771
  %1802 = vmatprep.subr.bf16.mxu0 0
  %1803 = vmatpush1.bf16.msra.mxu0 %v1770
  %1804 = vmatprep.subr.bf16.mxu0 0
  %1805 = vmatpush1.bf16.msra.mxu0 %v1769
  %1806 = vmatprep.subr.bf16.mxu0 0
  %1807 = vmatpush1.bf16.msra.mxu0 %v1768
  %1808 = vmatprep.subr.bf16.mxu0 0
  %1809 = vmatpush1.bf16.msra.mxu0 %v1767
  %1810 = vmatprep.subr.bf16.mxu0 0
  %1811 = vmatpush1.bf16.msra.mxu0 %v1766
  %1812 = vmatprep.subr.bf16.mxu0 0
  %1813 = vmatpush2.bf16.msra.mxu0 0
  %1814 = vmatprep.subr.bf16.mxu0 0
  %1815 = vmatpush2.bf16.msra.mxu0 0
  %1816 = vmatprep.subr.bf16.mxu0 0
  %1817 = vmatpush2.bf16.msra.mxu0 0
  %1818 = vmatprep.subr.bf16.mxu0 0
  %1819 = vmatpush2.bf16.msra.mxu0 0
  %1820 = vmatprep.subr.bf16.mxu0 0
  %1821 = vmatpush2.bf16.msra.mxu0 0
  %1822 = vmatprep.subr.bf16.mxu0 0
  %1823 = vmatpush2.bf16.msra.mxu0 0
  %1824 = vmatprep.subr.bf16.mxu0 0
  %1825 = vmatpush2.bf16.msra.mxu0 0
  %1826 = vmatprep.subr.bf16.mxu0 0
  %1827 = vmatpush2.bf16.msra.mxu0 0
  %1828 = vmatprep.mubr.bf16.mxu0 0
  %1829 = vmatmul.mubr.bf16.gmra.mxu0 %v1779
  %v1830 = vpop.f32.mrf.mxu0
  %v1831 = vadd.f32 0.0, %v1830
  %v1832 = vpop.f32.mrf.mxu0
  %v1833 = vpop.f32.mrf.mxu0
  %v1834 = vadd.f32 0.0, %v1833
  %v1835 = vpop.f32.mrf.mxu0
  %1836 = vmatprep.mubr.bf16.mxu0 0
  %1837 = vmatmul.mubr.bf16.gmra.mxu0 %v1782
  %v1838 = vpop.f32.mrf.mxu0
  %v1839 = vadd.f32 0.0, %v1838
  %v1840 = vpop.f32.mrf.mxu0
  %v1841 = vpop.f32.mrf.mxu0
  %v1842 = vadd.f32 0.0, %v1841
  %v1843 = vpop.f32.mrf.mxu0
  %1844 = vmatprep.mubr.bf16.mxu0 0
  %1845 = vmatmul.mubr.bf16.gmra.mxu0 %v1785
  %v1846 = vpop.f32.mrf.mxu0
  %v1847 = vadd.f32 0.0, %v1846
  %v1848 = vpop.f32.mrf.mxu0
  %v1849 = vpop.f32.mrf.mxu0
  %v1850 = vadd.f32 0.0, %v1849
  %v1851 = vpop.f32.mrf.mxu0
  %1852 = vmatprep.mubr.bf16.mxu0 0
  %1853 = vmatmul.mubr.bf16.gmra.mxu0 %v1788
  %v1854 = vpop.f32.mrf.mxu0
  %v1855 = vadd.f32 0.0, %v1854
  %v1856 = vpop.f32.mrf.mxu0
  %v1857 = vpop.f32.mrf.mxu0
  %v1858 = vadd.f32 0.0, %v1857
  %v1859 = vpop.f32.mrf.mxu0
  %1860 = vmatprep.mubr.bf16.mxu0 0
  %1861 = vmatmul.mubr.bf16.gmra.mxu0 %v1791
  %v1862 = vpop.f32.mrf.mxu0
  %v1863 = vadd.f32 0.0, %v1862
  %v1864 = vpop.f32.mrf.mxu0
  %v1865 = vpop.f32.mrf.mxu0
  %v1866 = vadd.f32 0.0, %v1865
  %v1867 = vpop.f32.mrf.mxu0
  %1868 = vmatprep.mubr.bf16.mxu0 0
  %1869 = vmatmul.mubr.bf16.gmra.mxu0 %v1794
  %v1870 = vpop.f32.mrf.mxu0
  %v1871 = vadd.f32 0.0, %v1870
  %v1872 = vpop.f32.mrf.mxu0
  %v1873 = vpop.f32.mrf.mxu0
  %v1874 = vpop.f32.mrf.mxu0
  %1875 = vdwg.mxu0
  %v1887 = vrot.slane %v1831, 1
  %v1888 = vrot.slane %v1834, 1
  %v1889 = vsel %vm759, %v1887, %v1888
  %v1890 = vrot.slane %v1839, 1
  %v1891 = vsel %vm759, %v1888, %v1890
  %v1892 = vrot.slane %v1842, 1
  %v1893 = vsel %vm759, %v1890, %v1892
  %v1894 = vrot.slane %v1847, 1
  %v1895 = vsel %vm759, %v1892, %v1894
  %v1896 = vrot.slane %v1850, 1
  %v1897 = vsel %vm759, %v1894, %v1896
  %v1898 = vrot.slane %v1855, 1
  %v1899 = vsel %vm759, %v1896, %v1898
  %v1900 = vrot.slane %v1858, 1
  %v1901 = vsel %vm759, %v1898, %v1900
  %v1902 = vrot.slane %v1863, 1
  %v1903 = vsel %vm759, %v1900, %v1902
  %v1904 = vrot.slane %v1866, 1
  %v1905 = vsel %vm759, %v1902, %v1904
  %v1906 = vrot.slane %v1871, 1
  %v1907 = vsel %vm759, %v1904, %v1906
  %1908 = vrot.lane.b32.xlu0 %v1889, 96
  %v1909 = vpop.permute.xlu0 %1908
  %1910 = vrot.lane.b32.xlu0 %v1891, 96
  %v1911 = vpop.permute.xlu0 %1910
  %1912 = vrot.lane.b32.xlu0 %v1893, 96
  %v1913 = vpop.permute.xlu0 %1912
  %1914 = vrot.lane.b32.xlu0 %v1895, 96
  %v1915 = vpop.permute.xlu0 %1914
  %1916 = vrot.lane.b32.xlu0 %v1897, 96
  %v1917 = vpop.permute.xlu0 %1916
  %1918 = vrot.lane.b32.xlu0 %v1899, 96
  %v1919 = vpop.permute.xlu0 %1918
  %1920 = vrot.lane.b32.xlu0 %v1901, 96
  %v1921 = vpop.permute.xlu0 %1920
  %1922 = vrot.lane.b32.xlu0 %v1903, 96
  %v1923 = vpop.permute.xlu0 %1922
  %1924 = vrot.lane.b32.xlu0 %v1905, 96
  %v1925 = vpop.permute.xlu0 %1924
  %1926 = vrot.lane.b32.xlu0 %v1907, 96
  %v1927 = vpop.permute.xlu0 %1926
  %v1938 = vadd.f32 %v1831, %v1909
  %v1939 = vadd.f32 %v1834, %v1911
  %v1940 = vadd.f32 %v1839, %v1913
  %v1941 = vadd.f32 %v1842, %v1915
  %v1942 = vadd.f32 %v1847, %v1917
  %v1943 = vadd.f32 %v1850, %v1919
  %v1944 = vadd.f32 %v1855, %v1921
  %v1945 = vadd.f32 %v1858, %v1923
  %v1946 = vadd.f32 %v1863, %v1925
  %v1947 = vadd.f32 %v1866, %v1927
  %v1948 = vrot.slane %v1831, 2
  %v1949 = vrot.slane %v1834, 2
  %v1950 = vsel %vm869, %v1948, %v1949
  %v1951 = vrot.slane %v1839, 2
  %v1952 = vsel %vm869, %v1949, %v1951
  %v1953 = vrot.slane %v1842, 2
  %v1954 = vsel %vm869, %v1951, %v1953
  %v1955 = vrot.slane %v1847, 2
  %v1956 = vsel %vm869, %v1953, %v1955
  %v1957 = vrot.slane %v1850, 2
  %v1958 = vsel %vm869, %v1955, %v1957
  %v1959 = vrot.slane %v1855, 2
  %v1960 = vsel %vm869, %v1957, %v1959
  %v1961 = vrot.slane %v1858, 2
  %v1962 = vsel %vm869, %v1959, %v1961
  %v1963 = vrot.slane %v1863, 2
  %v1964 = vsel %vm869, %v1961, %v1963
  %v1965 = vrot.slane %v1866, 2
  %v1966 = vsel %vm869, %v1963, %v1965
  %v1967 = vrot.slane %v1871, 2
  %v1968 = vsel %vm869, %v1965, %v1967
  %1969 = vrot.lane.b32.xlu0 %v1950, 64
  %v1970 = vpop.permute.xlu0 %1969
  %1971 = vrot.lane.b32.xlu0 %v1952, 64
  %v1972 = vpop.permute.xlu0 %1971
  %1973 = vrot.lane.b32.xlu0 %v1954, 64
  %v1974 = vpop.permute.xlu0 %1973
  %1975 = vrot.lane.b32.xlu0 %v1956, 64
  %v1976 = vpop.permute.xlu0 %1975
  %1977 = vrot.lane.b32.xlu0 %v1958, 64
  %v1978 = vpop.permute.xlu0 %1977
  %1979 = vrot.lane.b32.xlu0 %v1960, 64
  %v1980 = vpop.permute.xlu0 %1979
  %1981 = vrot.lane.b32.xlu0 %v1962, 64
  %v1982 = vpop.permute.xlu0 %1981
  %1983 = vrot.lane.b32.xlu0 %v1964, 64
  %v1984 = vpop.permute.xlu0 %1983
  %1985 = vrot.lane.b32.xlu0 %v1966, 64
  %v1986 = vpop.permute.xlu0 %1985
  %1987 = vrot.lane.b32.xlu0 %v1968, 64
  %v1988 = vpop.permute.xlu0 %1987
  %v1999 = vadd.f32 %v1938, %v1970
  %v2000 = vadd.f32 %v1939, %v1972
  %v2001 = vadd.f32 %v1940, %v1974
  %v2002 = vadd.f32 %v1941, %v1976
  %v2003 = vadd.f32 %v1942, %v1978
  %v2004 = vadd.f32 %v1943, %v1980
  %v2005 = vadd.f32 %v1944, %v1982
  %v2006 = vadd.f32 %v1945, %v1984
  %v2007 = vadd.f32 %v1946, %v1986
  %v2008 = vadd.f32 %v1947, %v1988
  %v2009 = vld [vmem:[%s8] sm:$0x1]
  %v2011 = vlaneseq
  %v2012 = vshrl.u32 %v2011, 7
  %v2013 = vsub.s32 0, %v2012
  %v2014 = vrot.slane %v2009, %v2013
  %v2016 = vadd.f32 %v1999, %v2014
  %v2017 = vadd.f32 %v2000, %v2014
  %v2018 = vadd.f32 %v2001, %v2014
  %v2019 = vadd.f32 %v2002, %v2014
  %v2020 = vadd.f32 %v2003, %v2014
  %v2021 = vadd.f32 %v2004, %v2014
  %v2022 = vadd.f32 %v2005, %v2014
  %v2023 = vadd.f32 %v2006, %v2014
  %v2024 = vadd.f32 %v2007, %v2014
  %v2025 = vadd.f32 %v2008, %v2014
  %v2026 = vmax.f32 %v2016, 0.0
  %v2027 = vmax.f32 %v2017, 0.0
  %v2028 = vmax.f32 %v2018, 0.0
  %v2029 = vmax.f32 %v2019, 0.0
  %v2030 = vmax.f32 %v2020, 0.0
  %v2031 = vmax.f32 %v2021, 0.0
  %v2032 = vmax.f32 %v2022, 0.0
  %v2033 = vmax.f32 %v2023, 0.0
  %v2034 = vmax.f32 %v2024, 0.0
  %v2035 = vmax.f32 %v2025, 0.0
  %2036 = vst.msk [vmem:[%s9] sm:$0xff] %vm318, %v2026
  %2037 = vst.msk [vmem:[%s9 + $0x8] sm:$0xff] %vm318, %v2027
  %2038 = vst.msk [vmem:[%s9 + $0x10] sm:$0xff] %vm318, %v2028
  %2039 = vst.msk [vmem:[%s9 + $0x18] sm:$0xff] %vm318, %v2029
  %2040 = vst.msk [vmem:[%s9 + $0x20] sm:$0xff] %vm318, %v2030
  %2041 = vst.msk [vmem:[%s9 + $0x28] sm:$0xff] %vm318, %v2031
  %2042 = vst.msk [vmem:[%s9 + $0x30] sm:$0xff] %vm318, %v2032
  %2043 = vst.msk [vmem:[%s9 + $0x38] sm:$0xff] %vm318, %v2033
  %2044 = vst.msk [vmem:[%s9 + $0x40] sm:$0xff] %vm318, %v2034
  %2045 = vst.msk [vmem:[%s9 + $0x48] sm:$0xff] %vm318, %v2035
  %s2046 = scalar_lea.vmem %s0, 92
  %v2047 = vld [vmem:[%s2046] sm:$0xf]
  %v2048 = vld [vmem:[%s2046 + $0x4] sm:$0xf]
  %v2049 = vld [vmem:[%s2046 + $0x8] sm:$0xf]
  %v2050 = vld [vmem:[%s2046 + $0xc] sm:$0xf]
  %v2051 = vld [vmem:[%s2046 + $0x10] sm:$0xf]
  %v2052 = vld [vmem:[%s2046 + $0x14] sm:$0xf]
  %v2053 = vld [vmem:[%s2046 + $0x18] sm:$0xf]
  %v2054 = vld [vmem:[%s2046 + $0x1c] sm:$0xf]
  %v2055 = vld [vmem:[%s2046 + $0x20] sm:$0xf]
  %v2056 = vld [vmem:[%s2046 + $0x24] sm:$0xf]
  %v2057 = vld [vmem:[%s2046 + $0x28] sm:$0xf]
  %v2058 = vld [vmem:[%s2046 + $0x2c] sm:$0xf]
  %v2059 = vld [vmem:[%s2046 + $0x30] sm:$0xf]
  %v2060 = vld [vmem:[%s2046 + $0x34] sm:$0xf]
  %v2061 = vld [vmem:[%s2046 + $0x38] sm:$0xf]
  %v2062 = vld [vmem:[%s2046 + $0x3c] sm:$0xf]
  %v2063 = vld [vmem:[%s2046 + $0x40] sm:$0xf]
  %v2064 = vld [vmem:[%s2046 + $0x44] sm:$0xf]
  %v2065 = vld [vmem:[%s2046 + $0x48] sm:$0xf]
  %v2066 = vld [vmem:[%s2046 + $0x4c] sm:$0xf]
  %v2067 = vld [vmem:[%s2046 + $0x50] sm:$0xf]
  %v2068 = vld [vmem:[%s2046 + $0x54] sm:$0xf]
  %v2069 = vld [vmem:[%s1] sm:$0xf]
  %v2070 = vld [vmem:[%s1 + $0x4] sm:$0xf]
  %v2071 = vld [vmem:[%s1 + $0x8] sm:$0xf]
  %v2072 = vld [vmem:[%s1 + $0xc] sm:$0xf]
  %v2073 = vld [vmem:[%s1 + $0x10] sm:$0x3]
  %v2074 = vld [vmem:[%s2] sm:$0x1]
  %v2076 = vlaneseq
  %v2077 = vshrl.u32 %v2076, 7
  %v2078 = vsub.s32 0, %v2077
  %v2079 = vrot.slane %v2074, %v2078
  %v2103 = vunpack.c.l.b16 %v2047
  %v2104 = vunpack.c.l.b16 %v2048
  %v2105 = vunpack.c.l.b16 %v2049
  %v2106 = vunpack.c.l.b16 %v2050
  %v2107 = vunpack.c.l.b16 %v2051
  %v2108 = vunpack.c.l.b16 %v2052
  %v2109 = vunpack.c.l.b16 %v2053
  %v2110 = vunpack.c.l.b16 %v2054
  %v2111 = vunpack.c.l.b16 %v2055
  %v2112 = vunpack.c.l.b16 %v2056
  %v2113 = vunpack.c.l.b16 %v2057
  %v2114 = vunpack.c.l.b16 %v2058
  %v2115 = vunpack.c.l.b16 %v2059
  %v2116 = vunpack.c.l.b16 %v2060
  %v2117 = vunpack.c.l.b16 %v2061
  %v2118 = vunpack.c.l.b16 %v2062
  %v2119 = vunpack.c.l.b16 %v2063
  %v2120 = vunpack.c.l.b16 %v2064
  %v2121 = vunpack.c.l.b16 %v2065
  %v2122 = vunpack.c.l.b16 %v2066
  %v2123 = vunpack.c.l.b16 %v2067
  %v2124 = vunpack.c.l.b16 %v2068
  %v2125 = vpack.c.b16 %v2104, %v2103
  %v2126 = vpack.c.b16 %v2106, %v2105
  %v2127 = vpack.c.b16 %v2108, %v2107
  %v2128 = vpack.c.b16 %v2110, %v2109
  %v2129 = vpack.c.b16 %v2112, %v2111
  %v2130 = vpack.c.b16 %v2114, %v2113
  %v2131 = vpack.c.b16 %v2116, %v2115
  %v2132 = vpack.c.b16 %v2118, %v2117
  %v2133 = vpack.c.b16 %v2120, %v2119
  %v2134 = vpack.c.b16 %v2122, %v2121
  %v2135 = vpack.c.b16 %v2124, %v2123
  %v2141 = vunpack.c.l.b16 %v2069
  %v2142 = vunpack.c.l.b16 %v2070
  %v2143 = vunpack.c.l.b16 %v2071
  %v2144 = vunpack.c.l.b16 %v2072
  %v2145 = vunpack.c.l.b16 %v2073
  %v2146 = vpack.c.b16 %v2142, %v2141
  %v2147 = vpack.c.b16 %v2144, %v2143
  %v2148 = vpack.c.b16 %v2145, %v2145
  %v2152 = vsel %vm137, %v2125, 0
  %v2155 = vsel %vm137, %v2126, 0
  %v2158 = vsel %vm137, %v2127, 0
  %v2161 = vsel %vm137, %v2128, 0
  %v2164 = vsel %vm137, %v2129, 0
  %v2167 = vsel %vm137, %v2130, 0
  %v2170 = vsel %vm137, %v2131, 0
  %v2173 = vsel %vm137, %v2132, 0
  %v2176 = vsel %vm137, %v2133, 0
  %v2179 = vsel %vm137, %v2134, 0
  %v2182 = vsel %vm137, %v2135, 0
  %v2185 = vsel %vm171, %v2148, 0
  %2187 = vmatprep.subr.bf16.mxu0 0
  %2188 = vmatpush1.bf16.msra.mxu0 0
  %2189 = vmatprep.subr.bf16.mxu0 0
  %2190 = vmatpush1.bf16.msra.mxu0 0
  %2191 = vmatprep.subr.bf16.mxu0 0
  %2192 = vmatpush1.bf16.msra.mxu0 0
  %2193 = vmatprep.subr.bf16.mxu0 0
  %2194 = vmatpush1.bf16.msra.mxu0 0
  %2195 = vmatprep.subr.bf16.mxu0 0
  %2196 = vmatpush1.bf16.msra.mxu0 0
  %2197 = vmatprep.subr.bf16.mxu0 0
  %2198 = vmatpush1.bf16.msra.mxu0 %v2185
  %2199 = vmatprep.subr.bf16.mxu0 0
  %2200 = vmatpush1.bf16.msra.mxu0 %v2147
  %2201 = vmatprep.subr.bf16.mxu0 0
  %2202 = vmatpush1.bf16.msra.mxu0 %v2146
  %2203 = vmatprep.subr.bf16.mxu0 0
  %2204 = vmatpush2.bf16.msra.mxu0 0
  %2205 = vmatprep.subr.bf16.mxu0 0
  %2206 = vmatpush2.bf16.msra.mxu0 0
  %2207 = vmatprep.subr.bf16.mxu0 0
  %2208 = vmatpush2.bf16.msra.mxu0 0
  %2209 = vmatprep.subr.bf16.mxu0 0
  %2210 = vmatpush2.bf16.msra.mxu0 0
  %2211 = vmatprep.subr.bf16.mxu0 0
  %2212 = vmatpush2.bf16.msra.mxu0 0
  %2213 = vmatprep.subr.bf16.mxu0 0
  %2214 = vmatpush2.bf16.msra.mxu0 0
  %2215 = vmatprep.subr.bf16.mxu0 0
  %2216 = vmatpush2.bf16.msra.mxu0 0
  %2217 = vmatprep.subr.bf16.mxu0 0
  %2218 = vmatpush2.bf16.msra.mxu0 0
  %2219 = vmatprep.mubr.bf16.mxu0 0
  %2220 = vmatmul.mubr.bf16.gmra.mxu0 %v2152
  %v2221 = vpop.f32.mrf.mxu0
  %v2222 = vadd.f32 %v2079, %v2221
  %v2223 = vpop.f32.mrf.mxu0
  %v2224 = vpop.f32.mrf.mxu0
  %v2225 = vadd.f32 %v2079, %v2224
  %v2226 = vpop.f32.mrf.mxu0
  %2227 = vmatprep.mubr.bf16.mxu0 0
  %2228 = vmatmul.mubr.bf16.gmra.mxu0 %v2155
  %v2229 = vpop.f32.mrf.mxu0
  %v2230 = vadd.f32 %v2079, %v2229
  %v2231 = vpop.f32.mrf.mxu0
  %v2232 = vpop.f32.mrf.mxu0
  %v2233 = vadd.f32 %v2079, %v2232
  %v2234 = vpop.f32.mrf.mxu0
  %2235 = vmatprep.mubr.bf16.mxu0 0
  %2236 = vmatmul.mubr.bf16.gmra.mxu0 %v2158
  %v2237 = vpop.f32.mrf.mxu0
  %v2238 = vadd.f32 %v2079, %v2237
  %v2239 = vpop.f32.mrf.mxu0
  %v2240 = vpop.f32.mrf.mxu0
  %v2241 = vadd.f32 %v2079, %v2240
  %v2242 = vpop.f32.mrf.mxu0
  %2243 = vmatprep.mubr.bf16.mxu0 0
  %2244 = vmatmul.mubr.bf16.gmra.mxu0 %v2161
  %v2245 = vpop.f32.mrf.mxu0
  %v2246 = vadd.f32 %v2079, %v2245
  %v2247 = vpop.f32.mrf.mxu0
  %v2248 = vpop.f32.mrf.mxu0
  %v2249 = vadd.f32 %v2079, %v2248
  %v2250 = vpop.f32.mrf.mxu0
  %2251 = vmatprep.mubr.bf16.mxu0 0
  %2252 = vmatmul.mubr.bf16.gmra.mxu0 %v2164
  %v2253 = vpop.f32.mrf.mxu0
  %v2254 = vadd.f32 %v2079, %v2253
  %v2255 = vpop.f32.mrf.mxu0
  %v2256 = vpop.f32.mrf.mxu0
  %v2257 = vadd.f32 %v2079, %v2256
  %v2258 = vpop.f32.mrf.mxu0
  %2259 = vmatprep.mubr.bf16.mxu0 0
  %2260 = vmatmul.mubr.bf16.gmra.mxu0 %v2167
  %v2261 = vpop.f32.mrf.mxu0
  %v2262 = vadd.f32 %v2079, %v2261
  %v2263 = vpop.f32.mrf.mxu0
  %v2264 = vpop.f32.mrf.mxu0
  %v2265 = vadd.f32 %v2079, %v2264
  %v2266 = vpop.f32.mrf.mxu0
  %2267 = vmatprep.mubr.bf16.mxu0 0
  %2268 = vmatmul.mubr.bf16.gmra.mxu0 %v2170
  %v2269 = vpop.f32.mrf.mxu0
  %v2270 = vadd.f32 %v2079, %v2269
  %v2271 = vpop.f32.mrf.mxu0
  %v2272 = vpop.f32.mrf.mxu0
  %v2273 = vadd.f32 %v2079, %v2272
  %v2274 = vpop.f32.mrf.mxu0
  %2275 = vmatprep.mubr.bf16.mxu0 0
  %2276 = vmatmul.mubr.bf16.gmra.mxu0 %v2173
  %v2277 = vpop.f32.mrf.mxu0
  %v2278 = vadd.f32 %v2079, %v2277
  %v2279 = vpop.f32.mrf.mxu0
  %v2280 = vpop.f32.mrf.mxu0
  %v2281 = vadd.f32 %v2079, %v2280
  %v2282 = vpop.f32.mrf.mxu0
  %2283 = vmatprep.mubr.bf16.mxu0 0
  %2284 = vmatmul.mubr.bf16.gmra.mxu0 %v2176
  %v2285 = vpop.f32.mrf.mxu0
  %v2286 = vadd.f32 %v2079, %v2285
  %v2287 = vpop.f32.mrf.mxu0
  %v2288 = vpop.f32.mrf.mxu0
  %v2289 = vadd.f32 %v2079, %v2288
  %v2290 = vpop.f32.mrf.mxu0
  %2291 = vmatprep.mubr.bf16.mxu0 0
  %2292 = vmatmul.mubr.bf16.gmra.mxu0 %v2179
  %v2293 = vpop.f32.mrf.mxu0
  %v2294 = vadd.f32 %v2079, %v2293
  %v2295 = vpop.f32.mrf.mxu0
  %v2296 = vpop.f32.mrf.mxu0
  %v2297 = vadd.f32 %v2079, %v2296
  %v2298 = vpop.f32.mrf.mxu0
  %2299 = vmatprep.mubr.bf16.mxu0 0
  %2300 = vmatmul.mubr.bf16.gmra.mxu0 %v2182
  %v2301 = vpop.f32.mrf.mxu0
  %v2302 = vadd.f32 %v2079, %v2301
  %v2303 = vpop.f32.mrf.mxu0
  %v2304 = vpop.f32.mrf.mxu0
  %v2305 = vadd.f32 %v2079, %v2304
  %v2306 = vpop.f32.mrf.mxu0
  %2307 = vdwg.mxu0
  %v2308 = vmax.f32 %v2222, 0.0
  %v2309 = vmax.f32 %v2225, 0.0
  %v2310 = vmax.f32 %v2230, 0.0
  %v2311 = vmax.f32 %v2233, 0.0
  %v2312 = vmax.f32 %v2238, 0.0
  %v2313 = vmax.f32 %v2241, 0.0
  %v2314 = vmax.f32 %v2246, 0.0
  %v2315 = vmax.f32 %v2249, 0.0
  %v2316 = vmax.f32 %v2254, 0.0
  %v2317 = vmax.f32 %v2257, 0.0
  %v2318 = vmax.f32 %v2262, 0.0
  %v2319 = vmax.f32 %v2265, 0.0
  %v2320 = vmax.f32 %v2270, 0.0
  %v2321 = vmax.f32 %v2273, 0.0
  %v2322 = vmax.f32 %v2278, 0.0
  %v2323 = vmax.f32 %v2281, 0.0
  %v2324 = vmax.f32 %v2286, 0.0
  %v2325 = vmax.f32 %v2289, 0.0
  %v2326 = vmax.f32 %v2294, 0.0
  %v2327 = vmax.f32 %v2297, 0.0
  %v2328 = vmax.f32 %v2302, 0.0
  %v2329 = vmax.f32 %v2305, 0.0
  %2330 = vst.msk [vmem:[#allocation2] sm:$0xff] %vm318, %v2308
  %2331 = vst.msk [vmem:[#allocation2 + $0x8] sm:$0xff] %vm318, %v2309
  %2332 = vst.msk [vmem:[#allocation2 + $0x10] sm:$0xff] %vm318, %v2310
  %2333 = vst.msk [vmem:[#allocation2 + $0x18] sm:$0xff] %vm318, %v2311
  %2334 = vst.msk [vmem:[#allocation2 + $0x20] sm:$0xff] %vm318, %v2312
  %2335 = vst.msk [vmem:[#allocation2 + $0x28] sm:$0xff] %vm318, %v2313
  %2336 = vst.msk [vmem:[#allocation2 + $0x30] sm:$0xff] %vm318, %v2314
  %2337 = vst.msk [vmem:[#allocation2 + $0x38] sm:$0xff] %vm318, %v2315
  %2338 = vst.msk [vmem:[#allocation2 + $0x40] sm:$0xff] %vm318, %v2316
  %2339 = vst.msk [vmem:[#allocation2 + $0x48] sm:$0xff] %vm318, %v2317
  %2340 = vst.msk [vmem:[#allocation2 + $0x50] sm:$0xff] %vm318, %v2318
  %2341 = vst.msk [vmem:[#allocation2 + $0x58] sm:$0xff] %vm318, %v2319
  %2342 = vst.msk [vmem:[#allocation2 + $0x60] sm:$0xff] %vm318, %v2320
  %2343 = vst.msk [vmem:[#allocation2 + $0x68] sm:$0xff] %vm318, %v2321
  %2344 = vst.msk [vmem:[#allocation2 + $0x70] sm:$0xff] %vm318, %v2322
  %2345 = vst.msk [vmem:[#allocation2 + $0x78] sm:$0xff] %vm318, %v2323
  %2346 = vst.msk [vmem:[#allocation2 + $0x80] sm:$0xff] %vm318, %v2324
  %2347 = vst.msk [vmem:[#allocation2 + $0x88] sm:$0xff] %vm318, %v2325
  %2348 = vst.msk [vmem:[#allocation2 + $0x90] sm:$0xff] %vm318, %v2326
  %2349 = vst.msk [vmem:[#allocation2 + $0x98] sm:$0xff] %vm318, %v2327
  %2350 = vst.msk [vmem:[#allocation2 + $0xa0] sm:$0xff] %vm318, %v2328
  %2351 = vst.msk [vmem:[#allocation2 + $0xa8] sm:$0xff] %vm318, %v2329
  %2352 = vst.msk [vmem:[#allocation2 + $0xb0] sm:$0xff] %vm318, 0.0
  %v2353 = vld [vmem:[#allocation2] sm:$0xff]
  %v2354 = vld [vmem:[#allocation2 + $0x8] sm:$0xff]
  %v2355 = vld [vmem:[#allocation2 + $0x10] sm:$0xff]
  %v2356 = vld [vmem:[#allocation2 + $0x18] sm:$0xff]
  %v2357 = vld [vmem:[#allocation2 + $0x20] sm:$0xff]
  %v2358 = vld [vmem:[#allocation2 + $0x28] sm:$0xff]
  %v2359 = vld [vmem:[#allocation2 + $0x30] sm:$0xff]
  %v2360 = vld [vmem:[#allocation2 + $0x38] sm:$0xff]
  %v2361 = vld [vmem:[#allocation2 + $0x40] sm:$0xff]
  %v2362 = vld [vmem:[#allocation2 + $0x48] sm:$0xff]
  %v2363 = vld [vmem:[#allocation2 + $0x50] sm:$0xff]
  %v2364 = vld [vmem:[#allocation2 + $0x58] sm:$0xff]
  %v2365 = vld [vmem:[#allocation2 + $0x60] sm:$0xff]
  %v2366 = vld [vmem:[#allocation2 + $0x68] sm:$0xff]
  %v2367 = vld [vmem:[#allocation2 + $0x70] sm:$0xff]
  %v2368 = vld [vmem:[#allocation2 + $0x78] sm:$0xff]
  %v2369 = vld [vmem:[#allocation2 + $0x80] sm:$0xff]
  %v2370 = vld [vmem:[#allocation2 + $0x88] sm:$0xff]
  %v2371 = vld [vmem:[#allocation2 + $0x90] sm:$0xff]
  %v2372 = vld [vmem:[#allocation2 + $0x98] sm:$0xff]
  %v2373 = vld [vmem:[#allocation2 + $0xa0] sm:$0xff]
  %v2374 = vld [vmem:[#allocation2 + $0xa8] sm:$0xff]
  %v2375 = vld [vmem:[#allocation2 + $0xb0] sm:$0xff]
  %2395 = vrot.lane.b32.xlu0 %v2355, 32
  %v2396 = vpop.permute.xlu0 %2395
  %2397 = vrot.lane.b32.xlu0 %v2356, 32
  %v2398 = vpop.permute.xlu0 %2397
  %2399 = vrot.lane.b32.xlu0 %v2357, 32
  %v2400 = vpop.permute.xlu0 %2399
  %2401 = vrot.lane.b32.xlu0 %v2358, 32
  %v2402 = vpop.permute.xlu0 %2401
  %2403 = vrot.lane.b32.xlu0 %v2359, 32
  %v2404 = vpop.permute.xlu0 %2403
  %2405 = vrot.lane.b32.xlu0 %v2360, 32
  %v2406 = vpop.permute.xlu0 %2405
  %2407 = vrot.lane.b32.xlu0 %v2361, 32
  %v2408 = vpop.permute.xlu0 %2407
  %2409 = vrot.lane.b32.xlu0 %v2362, 32
  %v2410 = vpop.permute.xlu0 %2409
  %2411 = vrot.lane.b32.xlu0 %v2363, 32
  %v2412 = vpop.permute.xlu0 %2411
  %2413 = vrot.lane.b32.xlu0 %v2364, 32
  %v2414 = vpop.permute.xlu0 %2413
  %2415 = vrot.lane.b32.xlu0 %v2365, 32
  %v2416 = vpop.permute.xlu0 %2415
  %2417 = vrot.lane.b32.xlu0 %v2366, 32
  %v2418 = vpop.permute.xlu0 %2417
  %2419 = vrot.lane.b32.xlu0 %v2367, 32
  %v2420 = vpop.permute.xlu0 %2419
  %2421 = vrot.lane.b32.xlu0 %v2368, 32
  %v2422 = vpop.permute.xlu0 %2421
  %2423 = vrot.lane.b32.xlu0 %v2369, 32
  %v2424 = vpop.permute.xlu0 %2423
  %2425 = vrot.lane.b32.xlu0 %v2370, 32
  %v2426 = vpop.permute.xlu0 %2425
  %2427 = vrot.lane.b32.xlu0 %v2371, 32
  %v2428 = vpop.permute.xlu0 %2427
  %2429 = vrot.lane.b32.xlu0 %v2372, 32
  %v2430 = vpop.permute.xlu0 %2429
  %2431 = vrot.lane.b32.xlu0 %v2373, 32
  %v2432 = vpop.permute.xlu0 %2431
  %2454 = vrot.lane.b32.xlu0 %v2357, 64
  %v2455 = vpop.permute.xlu0 %2454
  %2456 = vrot.lane.b32.xlu0 %v2358, 64
  %v2457 = vpop.permute.xlu0 %2456
  %2458 = vrot.lane.b32.xlu0 %v2359, 64
  %v2459 = vpop.permute.xlu0 %2458
  %2460 = vrot.lane.b32.xlu0 %v2360, 64
  %v2461 = vpop.permute.xlu0 %2460
  %2462 = vrot.lane.b32.xlu0 %v2361, 64
  %v2463 = vpop.permute.xlu0 %2462
  %2464 = vrot.lane.b32.xlu0 %v2362, 64
  %v2465 = vpop.permute.xlu0 %2464
  %2466 = vrot.lane.b32.xlu0 %v2363, 64
  %v2467 = vpop.permute.xlu0 %2466
  %2468 = vrot.lane.b32.xlu0 %v2364, 64
  %v2469 = vpop.permute.xlu0 %2468
  %2470 = vrot.lane.b32.xlu0 %v2365, 64
  %v2471 = vpop.permute.xlu0 %2470
  %2472 = vrot.lane.b32.xlu0 %v2366, 64
  %v2473 = vpop.permute.xlu0 %2472
  %2474 = vrot.lane.b32.xlu0 %v2367, 64
  %v2475 = vpop.permute.xlu0 %2474
  %2476 = vrot.lane.b32.xlu0 %v2368, 64
  %v2477 = vpop.permute.xlu0 %2476
  %2478 = vrot.lane.b32.xlu0 %v2369, 64
  %v2479 = vpop.permute.xlu0 %2478
  %2480 = vrot.lane.b32.xlu0 %v2370, 64
  %v2481 = vpop.permute.xlu0 %2480
  %2482 = vrot.lane.b32.xlu0 %v2371, 64
  %v2483 = vpop.permute.xlu0 %2482
  %2484 = vrot.lane.b32.xlu0 %v2372, 64
  %v2485 = vpop.permute.xlu0 %2484
  %2486 = vrot.lane.b32.xlu0 %v2373, 64
  %v2487 = vpop.permute.xlu0 %2486
  %2488 = vrot.lane.b32.xlu0 %v2374, 64
  %v2489 = vpop.permute.xlu0 %2488
  %2490 = vrot.lane.b32.xlu0 %v2375, 64
  %v2491 = vpop.permute.xlu0 %2490
  %v2511 = vsel %vm318, %v2353, %v2396
  %v2512 = vsel %vm318, %v2354, %v2398
  %v2513 = vsel %vm318, %v2355, %v2400
  %v2514 = vsel %vm318, %v2356, %v2402
  %v2515 = vsel %vm318, %v2357, %v2404
  %v2516 = vsel %vm318, %v2358, %v2406
  %v2517 = vsel %vm318, %v2359, %v2408
  %v2518 = vsel %vm318, %v2360, %v2410
  %v2519 = vsel %vm318, %v2361, %v2412
  %v2520 = vsel %vm318, %v2362, %v2414
  %v2521 = vsel %vm318, %v2363, %v2416
  %v2522 = vsel %vm318, %v2364, %v2418
  %v2523 = vsel %vm318, %v2365, %v2420
  %v2524 = vsel %vm318, %v2366, %v2422
  %v2525 = vsel %vm318, %v2367, %v2424
  %v2526 = vsel %vm318, %v2368, %v2426
  %v2527 = vsel %vm318, %v2369, %v2428
  %v2528 = vsel %vm318, %v2370, %v2430
  %v2529 = vsel %vm318, %v2371, %v2432
  %v2530 = vsel %vm519, %v2511, %v2455
  %v2531 = vsel %vm519, %v2512, %v2457
  %v2532 = vsel %vm519, %v2513, %v2459
  %v2533 = vsel %vm519, %v2514, %v2461
  %v2534 = vsel %vm519, %v2515, %v2463
  %v2535 = vsel %vm519, %v2516, %v2465
  %v2536 = vsel %vm519, %v2517, %v2467
  %v2537 = vsel %vm519, %v2518, %v2469
  %v2538 = vsel %vm519, %v2519, %v2471
  %v2539 = vsel %vm519, %v2520, %v2473
  %v2540 = vsel %vm519, %v2521, %v2475
  %v2541 = vsel %vm519, %v2522, %v2477
  %v2542 = vsel %vm519, %v2523, %v2479
  %v2543 = vsel %vm519, %v2524, %v2481
  %v2544 = vsel %vm519, %v2525, %v2483
  %v2545 = vsel %vm519, %v2526, %v2485
  %v2546 = vsel %vm519, %v2527, %v2487
  %v2547 = vsel %vm519, %v2528, %v2489
  %v2548 = vsel %vm519, %v2529, %v2491
  %v2549 = vpack.c.bf16 %v2531, %v2530
  %v2550 = vpack.c.bf16 %v2533, %v2532
  %v2551 = vpack.c.bf16 %v2535, %v2534
  %v2552 = vpack.c.bf16 %v2537, %v2536
  %v2553 = vpack.c.bf16 %v2539, %v2538
  %v2554 = vpack.c.bf16 %v2541, %v2540
  %v2555 = vpack.c.bf16 %v2543, %v2542
  %v2556 = vpack.c.bf16 %v2545, %v2544
  %v2557 = vpack.c.bf16 %v2547, %v2546
  %v2558 = vpack.c.bf16 %v2548, %v2548
  %v2559 = vld [vmem:[%s3] sm:$0xf]
  %v2560 = vld [vmem:[%s3 + $0x4] sm:$0xf]
  %v2561 = vld [vmem:[%s3 + $0x8] sm:$0xf]
  %v2562 = vld [vmem:[%s3 + $0xc] sm:$0xf]
  %v2563 = vld [vmem:[%s3 + $0x10] sm:$0xf]
  %v2564 = vld [vmem:[%s3 + $0x14] sm:$0xf]
  %v2565 = vld [vmem:[%s3 + $0x18] sm:$0xf]
  %v2566 = vld [vmem:[%s3 + $0x1c] sm:$0xf]
  %v2567 = vld [vmem:[%s3 + $0x20] sm:$0xf]
  %v2568 = vld [vmem:[%s3 + $0x24] sm:$0xf]
  %v2569 = vld [vmem:[%s3 + $0x28] sm:$0xf]
  %v2570 = vld [vmem:[%s3 + $0x2c] sm:$0xf]
  %v2583 = vunpack.c.l.b16 %v2559
  %v2584 = vunpack.c.l.b16 %v2560
  %v2585 = vunpack.c.l.b16 %v2561
  %v2586 = vunpack.c.l.b16 %v2562
  %v2587 = vunpack.c.l.b16 %v2563
  %v2588 = vunpack.c.l.b16 %v2564
  %v2589 = vunpack.c.l.b16 %v2565
  %v2590 = vunpack.c.l.b16 %v2566
  %v2591 = vunpack.c.l.b16 %v2567
  %v2592 = vunpack.c.l.b16 %v2568
  %v2593 = vunpack.c.l.b16 %v2569
  %v2594 = vunpack.c.l.b16 %v2570
  %v2595 = vpack.c.b16 %v2584, %v2583
  %v2596 = vpack.c.b16 %v2586, %v2585
  %v2597 = vpack.c.b16 %v2588, %v2587
  %v2598 = vpack.c.b16 %v2590, %v2589
  %v2599 = vpack.c.b16 %v2592, %v2591
  %v2600 = vpack.c.b16 %v2594, %v2593
  %v2608 = vsel %vm597, %v2549, 0
  %v2611 = vsel %vm597, %v2550, 0
  %v2614 = vsel %vm597, %v2551, 0
  %v2617 = vsel %vm597, %v2552, 0
  %v2620 = vsel %vm597, %v2553, 0
  %v2623 = vsel %vm597, %v2554, 0
  %v2626 = vsel %vm597, %v2555, 0
  %v2629 = vsel %vm597, %v2556, 0
  %v2632 = vsel %vm597, %v2557, 0
  %v2635 = vsel %vm597, %v2558, 0
  %2637 = vmatprep.subr.bf16.mxu0 0
  %2638 = vmatpush1.bf16.msra.mxu0 0
  %2639 = vmatprep.subr.bf16.mxu0 0
  %2640 = vmatpush1.bf16.msra.mxu0 0
  %2641 = vmatprep.subr.bf16.mxu0 0
  %2642 = vmatpush1.bf16.msra.mxu0 %v2600
  %2643 = vmatprep.subr.bf16.mxu0 0
  %2644 = vmatpush1.bf16.msra.mxu0 %v2599
  %2645 = vmatprep.subr.bf16.mxu0 0
  %2646 = vmatpush1.bf16.msra.mxu0 %v2598
  %2647 = vmatprep.subr.bf16.mxu0 0
  %2648 = vmatpush1.bf16.msra.mxu0 %v2597
  %2649 = vmatprep.subr.bf16.mxu0 0
  %2650 = vmatpush1.bf16.msra.mxu0 %v2596
  %2651 = vmatprep.subr.bf16.mxu0 0
  %2652 = vmatpush1.bf16.msra.mxu0 %v2595
  %2653 = vmatprep.subr.bf16.mxu0 0
  %2654 = vmatpush2.bf16.msra.mxu0 0
  %2655 = vmatprep.subr.bf16.mxu0 0
  %2656 = vmatpush2.bf16.msra.mxu0 0
  %2657 = vmatprep.subr.bf16.mxu0 0
  %2658 = vmatpush2.bf16.msra.mxu0 0
  %2659 = vmatprep.subr.bf16.mxu0 0
  %2660 = vmatpush2.bf16.msra.mxu0 0
  %2661 = vmatprep.subr.bf16.mxu0 0
  %2662 = vmatpush2.bf16.msra.mxu0 0
  %2663 = vmatprep.subr.bf16.mxu0 0
  %2664 = vmatpush2.bf16.msra.mxu0 0
  %2665 = vmatprep.subr.bf16.mxu0 0
  %2666 = vmatpush2.bf16.msra.mxu0 0
  %2667 = vmatprep.subr.bf16.mxu0 0
  %2668 = vmatpush2.bf16.msra.mxu0 0
  %2669 = vmatprep.mubr.bf16.mxu0 0
  %2670 = vmatmul.mubr.bf16.gmra.mxu0 %v2608
  %v2671 = vpop.f32.mrf.mxu0
  %v2672 = vadd.f32 0.0, %v2671
  %v2673 = vpop.f32.mrf.mxu0
  %v2674 = vpop.f32.mrf.mxu0
  %v2675 = vadd.f32 0.0, %v2674
  %v2676 = vpop.f32.mrf.mxu0
  %2677 = vmatprep.mubr.bf16.mxu0 0
  %2678 = vmatmul.mubr.bf16.gmra.mxu0 %v2611
  %v2679 = vpop.f32.mrf.mxu0
  %v2680 = vadd.f32 0.0, %v2679
  %v2681 = vpop.f32.mrf.mxu0
  %v2682 = vpop.f32.mrf.mxu0
  %v2683 = vadd.f32 0.0, %v2682
  %v2684 = vpop.f32.mrf.mxu0
  %2685 = vmatprep.mubr.bf16.mxu0 0
  %2686 = vmatmul.mubr.bf16.gmra.mxu0 %v2614
  %v2687 = vpop.f32.mrf.mxu0
  %v2688 = vadd.f32 0.0, %v2687
  %v2689 = vpop.f32.mrf.mxu0
  %v2690 = vpop.f32.mrf.mxu0
  %v2691 = vadd.f32 0.0, %v2690
  %v2692 = vpop.f32.mrf.mxu0
  %2693 = vmatprep.mubr.bf16.mxu0 0
  %2694 = vmatmul.mubr.bf16.gmra.mxu0 %v2617
  %v2695 = vpop.f32.mrf.mxu0
  %v2696 = vadd.f32 0.0, %v2695
  %v2697 = vpop.f32.mrf.mxu0
  %v2698 = vpop.f32.mrf.mxu0
  %v2699 = vadd.f32 0.0, %v2698
  %v2700 = vpop.f32.mrf.mxu0
  %2701 = vmatprep.mubr.bf16.mxu0 0
  %2702 = vmatmul.mubr.bf16.gmra.mxu0 %v2620
  %v2703 = vpop.f32.mrf.mxu0
  %v2704 = vadd.f32 0.0, %v2703
  %v2705 = vpop.f32.mrf.mxu0
  %v2706 = vpop.f32.mrf.mxu0
  %v2707 = vadd.f32 0.0, %v2706
  %v2708 = vpop.f32.mrf.mxu0
  %2709 = vmatprep.mubr.bf16.mxu0 0
  %2710 = vmatmul.mubr.bf16.gmra.mxu0 %v2623
  %v2711 = vpop.f32.mrf.mxu0
  %v2712 = vadd.f32 0.0, %v2711
  %v2713 = vpop.f32.mrf.mxu0
  %v2714 = vpop.f32.mrf.mxu0
  %v2715 = vadd.f32 0.0, %v2714
  %v2716 = vpop.f32.mrf.mxu0
  %2717 = vmatprep.mubr.bf16.mxu0 0
  %2718 = vmatmul.mubr.bf16.gmra.mxu0 %v2626
  %v2719 = vpop.f32.mrf.mxu0
  %v2720 = vadd.f32 0.0, %v2719
  %v2721 = vpop.f32.mrf.mxu0
  %v2722 = vpop.f32.mrf.mxu0
  %v2723 = vadd.f32 0.0, %v2722
  %v2724 = vpop.f32.mrf.mxu0
  %2725 = vmatprep.mubr.bf16.mxu0 0
  %2726 = vmatmul.mubr.bf16.gmra.mxu0 %v2629
  %v2727 = vpop.f32.mrf.mxu0
  %v2728 = vadd.f32 0.0, %v2727
  %v2729 = vpop.f32.mrf.mxu0
  %v2730 = vpop.f32.mrf.mxu0
  %v2731 = vadd.f32 0.0, %v2730
  %v2732 = vpop.f32.mrf.mxu0
  %2733 = vmatprep.mubr.bf16.mxu0 0
  %2734 = vmatmul.mubr.bf16.gmra.mxu0 %v2632
  %v2735 = vpop.f32.mrf.mxu0
  %v2736 = vadd.f32 0.0, %v2735
  %v2737 = vpop.f32.mrf.mxu0
  %v2738 = vpop.f32.mrf.mxu0
  %v2739 = vadd.f32 0.0, %v2738
  %v2740 = vpop.f32.mrf.mxu0
  %2741 = vmatprep.mubr.bf16.mxu0 0
  %2742 = vmatmul.mubr.bf16.gmra.mxu0 %v2635
  %v2743 = vpop.f32.mrf.mxu0
  %v2744 = vadd.f32 0.0, %v2743
  %v2745 = vpop.f32.mrf.mxu0
  %v2746 = vpop.f32.mrf.mxu0
  %v2747 = vpop.f32.mrf.mxu0
  %2748 = vdwg.mxu0
  %v2768 = vrot.slane %v2672, 1
  %v2769 = vrot.slane %v2675, 1
  %v2770 = vsel %vm759, %v2768, %v2769
  %v2771 = vrot.slane %v2680, 1
  %v2772 = vsel %vm759, %v2769, %v2771
  %v2773 = vrot.slane %v2683, 1
  %v2774 = vsel %vm759, %v2771, %v2773
  %v2775 = vrot.slane %v2688, 1
  %v2776 = vsel %vm759, %v2773, %v2775
  %v2777 = vrot.slane %v2691, 1
  %v2778 = vsel %vm759, %v2775, %v2777
  %v2779 = vrot.slane %v2696, 1
  %v2780 = vsel %vm759, %v2777, %v2779
  %v2781 = vrot.slane %v2699, 1
  %v2782 = vsel %vm759, %v2779, %v2781
  %v2783 = vrot.slane %v2704, 1
  %v2784 = vsel %vm759, %v2781, %v2783
  %v2785 = vrot.slane %v2707, 1
  %v2786 = vsel %vm759, %v2783, %v2785
  %v2787 = vrot.slane %v2712, 1
  %v2788 = vsel %vm759, %v2785, %v2787
  %v2789 = vrot.slane %v2715, 1
  %v2790 = vsel %vm759, %v2787, %v2789
  %v2791 = vrot.slane %v2720, 1
  %v2792 = vsel %vm759, %v2789, %v2791
  %v2793 = vrot.slane %v2723, 1
  %v2794 = vsel %vm759, %v2791, %v2793
  %v2795 = vrot.slane %v2728, 1
  %v2796 = vsel %vm759, %v2793, %v2795
  %v2797 = vrot.slane %v2731, 1
  %v2798 = vsel %vm759, %v2795, %v2797
  %v2799 = vrot.slane %v2736, 1
  %v2800 = vsel %vm759, %v2797, %v2799
  %v2801 = vrot.slane %v2739, 1
  %v2802 = vsel %vm759, %v2799, %v2801
  %v2803 = vrot.slane %v2744, 1
  %v2804 = vsel %vm759, %v2801, %v2803
  %2805 = vrot.lane.b32.xlu0 %v2770, 96
  %v2806 = vpop.permute.xlu0 %2805
  %2807 = vrot.lane.b32.xlu0 %v2772, 96
  %v2808 = vpop.permute.xlu0 %2807
  %2809 = vrot.lane.b32.xlu0 %v2774, 96
  %v2810 = vpop.permute.xlu0 %2809
  %2811 = vrot.lane.b32.xlu0 %v2776, 96
  %v2812 = vpop.permute.xlu0 %2811
  %2813 = vrot.lane.b32.xlu0 %v2778, 96
  %v2814 = vpop.permute.xlu0 %2813
  %2815 = vrot.lane.b32.xlu0 %v2780, 96
  %v2816 = vpop.permute.xlu0 %2815
  %2817 = vrot.lane.b32.xlu0 %v2782, 96
  %v2818 = vpop.permute.xlu0 %2817
  %2819 = vrot.lane.b32.xlu0 %v2784, 96
  %v2820 = vpop.permute.xlu0 %2819
  %2821 = vrot.lane.b32.xlu0 %v2786, 96
  %v2822 = vpop.permute.xlu0 %2821
  %2823 = vrot.lane.b32.xlu0 %v2788, 96
  %v2824 = vpop.permute.xlu0 %2823
  %2825 = vrot.lane.b32.xlu0 %v2790, 96
  %v2826 = vpop.permute.xlu0 %2825
  %2827 = vrot.lane.b32.xlu0 %v2792, 96
  %v2828 = vpop.permute.xlu0 %2827
  %2829 = vrot.lane.b32.xlu0 %v2794, 96
  %v2830 = vpop.permute.xlu0 %2829
  %2831 = vrot.lane.b32.xlu0 %v2796, 96
  %v2832 = vpop.permute.xlu0 %2831
  %2833 = vrot.lane.b32.xlu0 %v2798, 96
  %v2834 = vpop.permute.xlu0 %2833
  %2835 = vrot.lane.b32.xlu0 %v2800, 96
  %v2836 = vpop.permute.xlu0 %2835
  %2837 = vrot.lane.b32.xlu0 %v2802, 96
  %v2838 = vpop.permute.xlu0 %2837
  %2839 = vrot.lane.b32.xlu0 %v2804, 96
  %v2840 = vpop.permute.xlu0 %2839
  %v2859 = vadd.f32 %v2672, %v2806
  %v2860 = vadd.f32 %v2675, %v2808
  %v2861 = vadd.f32 %v2680, %v2810
  %v2862 = vadd.f32 %v2683, %v2812
  %v2863 = vadd.f32 %v2688, %v2814
  %v2864 = vadd.f32 %v2691, %v2816
  %v2865 = vadd.f32 %v2696, %v2818
  %v2866 = vadd.f32 %v2699, %v2820
  %v2867 = vadd.f32 %v2704, %v2822
  %v2868 = vadd.f32 %v2707, %v2824
  %v2869 = vadd.f32 %v2712, %v2826
  %v2870 = vadd.f32 %v2715, %v2828
  %v2871 = vadd.f32 %v2720, %v2830
  %v2872 = vadd.f32 %v2723, %v2832
  %v2873 = vadd.f32 %v2728, %v2834
  %v2874 = vadd.f32 %v2731, %v2836
  %v2875 = vadd.f32 %v2736, %v2838
  %v2876 = vadd.f32 %v2739, %v2840
  %v2877 = vrot.slane %v2672, 2
  %v2878 = vrot.slane %v2675, 2
  %v2879 = vsel %vm869, %v2877, %v2878
  %v2880 = vrot.slane %v2680, 2
  %v2881 = vsel %vm869, %v2878, %v2880
  %v2882 = vrot.slane %v2683, 2
  %v2883 = vsel %vm869, %v2880, %v2882
  %v2884 = vrot.slane %v2688, 2
  %v2885 = vsel %vm869, %v2882, %v2884
  %v2886 = vrot.slane %v2691, 2
  %v2887 = vsel %vm869, %v2884, %v2886
  %v2888 = vrot.slane %v2696, 2
  %v2889 = vsel %vm869, %v2886, %v2888
  %v2890 = vrot.slane %v2699, 2
  %v2891 = vsel %vm869, %v2888, %v2890
  %v2892 = vrot.slane %v2704, 2
  %v2893 = vsel %vm869, %v2890, %v2892
  %v2894 = vrot.slane %v2707, 2
  %v2895 = vsel %vm869, %v2892, %v2894
  %v2896 = vrot.slane %v2712, 2
  %v2897 = vsel %vm869, %v2894, %v2896
  %v2898 = vrot.slane %v2715, 2
  %v2899 = vsel %vm869, %v2896, %v2898
  %v2900 = vrot.slane %v2720, 2
  %v2901 = vsel %vm869, %v2898, %v2900
  %v2902 = vrot.slane %v2723, 2
  %v2903 = vsel %vm869, %v2900, %v2902
  %v2904 = vrot.slane %v2728, 2
  %v2905 = vsel %vm869, %v2902, %v2904
  %v2906 = vrot.slane %v2731, 2
  %v2907 = vsel %vm869, %v2904, %v2906
  %v2908 = vrot.slane %v2736, 2
  %v2909 = vsel %vm869, %v2906, %v2908
  %v2910 = vrot.slane %v2739, 2
  %v2911 = vsel %vm869, %v2908, %v2910
  %v2912 = vrot.slane %v2744, 2
  %v2913 = vsel %vm869, %v2910, %v2912
  %2914 = vrot.lane.b32.xlu0 %v2879, 64
  %v2915 = vpop.permute.xlu0 %2914
  %2916 = vrot.lane.b32.xlu0 %v2881, 64
  %v2917 = vpop.permute.xlu0 %2916
  %2918 = vrot.lane.b32.xlu0 %v2883, 64
  %v2919 = vpop.permute.xlu0 %2918
  %2920 = vrot.lane.b32.xlu0 %v2885, 64
  %v2921 = vpop.permute.xlu0 %2920
  %2922 = vrot.lane.b32.xlu0 %v2887, 64
  %v2923 = vpop.permute.xlu0 %2922
  %2924 = vrot.lane.b32.xlu0 %v2889, 64
  %v2925 = vpop.permute.xlu0 %2924
  %2926 = vrot.lane.b32.xlu0 %v2891, 64
  %v2927 = vpop.permute.xlu0 %2926
  %2928 = vrot.lane.b32.xlu0 %v2893, 64
  %v2929 = vpop.permute.xlu0 %2928
  %2930 = vrot.lane.b32.xlu0 %v2895, 64
  %v2931 = vpop.permute.xlu0 %2930
  %2932 = vrot.lane.b32.xlu0 %v2897, 64
  %v2933 = vpop.permute.xlu0 %2932
  %2934 = vrot.lane.b32.xlu0 %v2899, 64
  %v2935 = vpop.permute.xlu0 %2934
  %2936 = vrot.lane.b32.xlu0 %v2901, 64
  %v2937 = vpop.permute.xlu0 %2936
  %2938 = vrot.lane.b32.xlu0 %v2903, 64
  %v2939 = vpop.permute.xlu0 %2938
  %2940 = vrot.lane.b32.xlu0 %v2905, 64
  %v2941 = vpop.permute.xlu0 %2940
  %2942 = vrot.lane.b32.xlu0 %v2907, 64
  %v2943 = vpop.permute.xlu0 %2942
  %2944 = vrot.lane.b32.xlu0 %v2909, 64
  %v2945 = vpop.permute.xlu0 %2944
  %2946 = vrot.lane.b32.xlu0 %v2911, 64
  %v2947 = vpop.permute.xlu0 %2946
  %2948 = vrot.lane.b32.xlu0 %v2913, 64
  %v2949 = vpop.permute.xlu0 %2948
  %v2968 = vadd.f32 %v2859, %v2915
  %v2969 = vadd.f32 %v2860, %v2917
  %v2970 = vadd.f32 %v2861, %v2919
  %v2971 = vadd.f32 %v2862, %v2921
  %v2972 = vadd.f32 %v2863, %v2923
  %v2973 = vadd.f32 %v2864, %v2925
  %v2974 = vadd.f32 %v2865, %v2927
  %v2975 = vadd.f32 %v2866, %v2929
  %v2976 = vadd.f32 %v2867, %v2931
  %v2977 = vadd.f32 %v2868, %v2933
  %v2978 = vadd.f32 %v2869, %v2935
  %v2979 = vadd.f32 %v2870, %v2937
  %v2980 = vadd.f32 %v2871, %v2939
  %v2981 = vadd.f32 %v2872, %v2941
  %v2982 = vadd.f32 %v2873, %v2943
  %v2983 = vadd.f32 %v2874, %v2945
  %v2984 = vadd.f32 %v2875, %v2947
  %v2985 = vadd.f32 %v2876, %v2949
  %v2986 = vld [vmem:[%s4] sm:$0x1]
  %v2988 = vlaneseq
  %v2989 = vshrl.u32 %v2988, 7
  %v2990 = vsub.s32 0, %v2989
  %v2991 = vrot.slane %v2986, %v2990
  %v2993 = vadd.f32 %v2968, %v2991
  %v2994 = vadd.f32 %v2969, %v2991
  %v2995 = vadd.f32 %v2970, %v2991
  %v2996 = vadd.f32 %v2971, %v2991
  %v2997 = vadd.f32 %v2972, %v2991
  %v2998 = vadd.f32 %v2973, %v2991
  %v2999 = vadd.f32 %v2974, %v2991
  %v3000 = vadd.f32 %v2975, %v2991
  %v3001 = vadd.f32 %v2976, %v2991
  %v3002 = vadd.f32 %v2977, %v2991
  %v3003 = vadd.f32 %v2978, %v2991
  %v3004 = vadd.f32 %v2979, %v2991
  %v3005 = vadd.f32 %v2980, %v2991
  %v3006 = vadd.f32 %v2981, %v2991
  %v3007 = vadd.f32 %v2982, %v2991
  %v3008 = vadd.f32 %v2983, %v2991
  %v3009 = vadd.f32 %v2984, %v2991
  %v3010 = vadd.f32 %v2985, %v2991
  %v3011 = vmax.f32 %v2993, 0.0
  %v3012 = vmax.f32 %v2994, 0.0
  %v3013 = vmax.f32 %v2995, 0.0
  %v3014 = vmax.f32 %v2996, 0.0
  %v3015 = vmax.f32 %v2997, 0.0
  %v3016 = vmax.f32 %v2998, 0.0
  %v3017 = vmax.f32 %v2999, 0.0
  %v3018 = vmax.f32 %v3000, 0.0
  %v3019 = vmax.f32 %v3001, 0.0
  %v3020 = vmax.f32 %v3002, 0.0
  %v3021 = vmax.f32 %v3003, 0.0
  %v3022 = vmax.f32 %v3004, 0.0
  %v3023 = vmax.f32 %v3005, 0.0
  %v3024 = vmax.f32 %v3006, 0.0
  %v3025 = vmax.f32 %v3007, 0.0
  %v3026 = vmax.f32 %v3008, 0.0
  %v3027 = vmax.f32 %v3009, 0.0
  %v3028 = vmax.f32 %v3010, 0.0
  %3029 = vst.msk [vmem:[#allocation3] sm:$0xff] %vm318, %v3011
  %3030 = vst.msk [vmem:[#allocation3 + $0x8] sm:$0xff] %vm318, %v3012
  %3031 = vst.msk [vmem:[#allocation3 + $0x10] sm:$0xff] %vm318, %v3013
  %3032 = vst.msk [vmem:[#allocation3 + $0x18] sm:$0xff] %vm318, %v3014
  %3033 = vst.msk [vmem:[#allocation3 + $0x20] sm:$0xff] %vm318, %v3015
  %3034 = vst.msk [vmem:[#allocation3 + $0x28] sm:$0xff] %vm318, %v3016
  %3035 = vst.msk [vmem:[#allocation3 + $0x30] sm:$0xff] %vm318, %v3017
  %3036 = vst.msk [vmem:[#allocation3 + $0x38] sm:$0xff] %vm318, %v3018
  %3037 = vst.msk [vmem:[#allocation3 + $0x40] sm:$0xff] %vm318, %v3019
  %3038 = vst.msk [vmem:[#allocation3 + $0x48] sm:$0xff] %vm318, %v3020
  %3039 = vst.msk [vmem:[#allocation3 + $0x50] sm:$0xff] %vm318, %v3021
  %3040 = vst.msk [vmem:[#allocation3 + $0x58] sm:$0xff] %vm318, %v3022
  %3041 = vst.msk [vmem:[#allocation3 + $0x60] sm:$0xff] %vm318, %v3023
  %3042 = vst.msk [vmem:[#allocation3 + $0x68] sm:$0xff] %vm318, %v3024
  %3043 = vst.msk [vmem:[#allocation3 + $0x70] sm:$0xff] %vm318, %v3025
  %3044 = vst.msk [vmem:[#allocation3 + $0x78] sm:$0xff] %vm318, %v3026
  %3045 = vst.msk [vmem:[#allocation3 + $0x80] sm:$0xff] %vm318, %v3027
  %3046 = vst.msk [vmem:[#allocation3 + $0x88] sm:$0xff] %vm318, %v3028
  %3047 = vst.msk [vmem:[#allocation3 + $0x90] sm:$0xff] %vm318, 0.0
  %v3048 = vld [vmem:[#allocation3] sm:$0xff]
  %v3049 = vld [vmem:[#allocation3 + $0x8] sm:$0xff]
  %v3050 = vld [vmem:[#allocation3 + $0x10] sm:$0xff]
  %v3051 = vld [vmem:[#allocation3 + $0x18] sm:$0xff]
  %v3052 = vld [vmem:[#allocation3 + $0x20] sm:$0xff]
  %v3053 = vld [vmem:[#allocation3 + $0x28] sm:$0xff]
  %v3054 = vld [vmem:[#allocation3 + $0x30] sm:$0xff]
  %v3055 = vld [vmem:[#allocation3 + $0x38] sm:$0xff]
  %v3056 = vld [vmem:[#allocation3 + $0x40] sm:$0xff]
  %v3057 = vld [vmem:[#allocation3 + $0x48] sm:$0xff]
  %v3058 = vld [vmem:[#allocation3 + $0x50] sm:$0xff]
  %v3059 = vld [vmem:[#allocation3 + $0x58] sm:$0xff]
  %v3060 = vld [vmem:[#allocation3 + $0x60] sm:$0xff]
  %v3061 = vld [vmem:[#allocation3 + $0x68] sm:$0xff]
  %v3062 = vld [vmem:[#allocation3 + $0x70] sm:$0xff]
  %v3063 = vld [vmem:[#allocation3 + $0x78] sm:$0xff]
  %v3064 = vld [vmem:[#allocation3 + $0x80] sm:$0xff]
  %v3065 = vld [vmem:[#allocation3 + $0x88] sm:$0xff]
  %v3066 = vld [vmem:[#allocation3 + $0x90] sm:$0xff]
  %3082 = vrot.lane.b32.xlu0 %v3050, 32
  %v3083 = vpop.permute.xlu0 %3082
  %3084 = vrot.lane.b32.xlu0 %v3051, 32
  %v3085 = vpop.permute.xlu0 %3084
  %3086 = vrot.lane.b32.xlu0 %v3052, 32
  %v3087 = vpop.permute.xlu0 %3086
  %3088 = vrot.lane.b32.xlu0 %v3053, 32
  %v3089 = vpop.permute.xlu0 %3088
  %3090 = vrot.lane.b32.xlu0 %v3054, 32
  %v3091 = vpop.permute.xlu0 %3090
  %3092 = vrot.lane.b32.xlu0 %v3055, 32
  %v3093 = vpop.permute.xlu0 %3092
  %3094 = vrot.lane.b32.xlu0 %v3056, 32
  %v3095 = vpop.permute.xlu0 %3094
  %3096 = vrot.lane.b32.xlu0 %v3057, 32
  %v3097 = vpop.permute.xlu0 %3096
  %3098 = vrot.lane.b32.xlu0 %v3058, 32
  %v3099 = vpop.permute.xlu0 %3098
  %3100 = vrot.lane.b32.xlu0 %v3059, 32
  %v3101 = vpop.permute.xlu0 %3100
  %3102 = vrot.lane.b32.xlu0 %v3060, 32
  %v3103 = vpop.permute.xlu0 %3102
  %3104 = vrot.lane.b32.xlu0 %v3061, 32
  %v3105 = vpop.permute.xlu0 %3104
  %3106 = vrot.lane.b32.xlu0 %v3062, 32
  %v3107 = vpop.permute.xlu0 %3106
  %3108 = vrot.lane.b32.xlu0 %v3063, 32
  %v3109 = vpop.permute.xlu0 %3108
  %3110 = vrot.lane.b32.xlu0 %v3064, 32
  %v3111 = vpop.permute.xlu0 %3110
  %3129 = vrot.lane.b32.xlu0 %v3052, 64
  %v3130 = vpop.permute.xlu0 %3129
  %3131 = vrot.lane.b32.xlu0 %v3053, 64
  %v3132 = vpop.permute.xlu0 %3131
  %3133 = vrot.lane.b32.xlu0 %v3054, 64
  %v3134 = vpop.permute.xlu0 %3133
  %3135 = vrot.lane.b32.xlu0 %v3055, 64
  %v3136 = vpop.permute.xlu0 %3135
  %3137 = vrot.lane.b32.xlu0 %v3056, 64
  %v3138 = vpop.permute.xlu0 %3137
  %3139 = vrot.lane.b32.xlu0 %v3057, 64
  %v3140 = vpop.permute.xlu0 %3139
  %3141 = vrot.lane.b32.xlu0 %v3058, 64
  %v3142 = vpop.permute.xlu0 %3141
  %3143 = vrot.lane.b32.xlu0 %v3059, 64
  %v3144 = vpop.permute.xlu0 %3143
  %3145 = vrot.lane.b32.xlu0 %v3060, 64
  %v3146 = vpop.permute.xlu0 %3145
  %3147 = vrot.lane.b32.xlu0 %v3061, 64
  %v3148 = vpop.permute.xlu0 %3147
  %3149 = vrot.lane.b32.xlu0 %v3062, 64
  %v3150 = vpop.permute.xlu0 %3149
  %3151 = vrot.lane.b32.xlu0 %v3063, 64
  %v3152 = vpop.permute.xlu0 %3151
  %3153 = vrot.lane.b32.xlu0 %v3064, 64
  %v3154 = vpop.permute.xlu0 %3153
  %3155 = vrot.lane.b32.xlu0 %v3065, 64
  %v3156 = vpop.permute.xlu0 %3155
  %3157 = vrot.lane.b32.xlu0 %v3066, 64
  %v3158 = vpop.permute.xlu0 %3157
  %v3174 = vsel %vm318, %v3048, %v3083
  %v3175 = vsel %vm318, %v3049, %v3085
  %v3176 = vsel %vm318, %v3050, %v3087
  %v3177 = vsel %vm318, %v3051, %v3089
  %v3178 = vsel %vm318, %v3052, %v3091
  %v3179 = vsel %vm318, %v3053, %v3093
  %v3180 = vsel %vm318, %v3054, %v3095
  %v3181 = vsel %vm318, %v3055, %v3097
  %v3182 = vsel %vm318, %v3056, %v3099
  %v3183 = vsel %vm318, %v3057, %v3101
  %v3184 = vsel %vm318, %v3058, %v3103
  %v3185 = vsel %vm318, %v3059, %v3105
  %v3186 = vsel %vm318, %v3060, %v3107
  %v3187 = vsel %vm318, %v3061, %v3109
  %v3188 = vsel %vm318, %v3062, %v3111
  %v3189 = vsel %vm519, %v3174, %v3130
  %v3190 = vsel %vm519, %v3175, %v3132
  %v3191 = vsel %vm519, %v3176, %v3134
  %v3192 = vsel %vm519, %v3177, %v3136
  %v3193 = vsel %vm519, %v3178, %v3138
  %v3194 = vsel %vm519, %v3179, %v3140
  %v3195 = vsel %vm519, %v3180, %v3142
  %v3196 = vsel %vm519, %v3181, %v3144
  %v3197 = vsel %vm519, %v3182, %v3146
  %v3198 = vsel %vm519, %v3183, %v3148
  %v3199 = vsel %vm519, %v3184, %v3150
  %v3200 = vsel %vm519, %v3185, %v3152
  %v3201 = vsel %vm519, %v3186, %v3154
  %v3202 = vsel %vm519, %v3187, %v3156
  %v3203 = vsel %vm519, %v3188, %v3158
  %v3204 = vpack.c.bf16 %v3190, %v3189
  %v3205 = vpack.c.bf16 %v3192, %v3191
  %v3206 = vpack.c.bf16 %v3194, %v3193
  %v3207 = vpack.c.bf16 %v3196, %v3195
  %v3208 = vpack.c.bf16 %v3198, %v3197
  %v3209 = vpack.c.bf16 %v3200, %v3199
  %v3210 = vpack.c.bf16 %v3202, %v3201
  %v3211 = vpack.c.bf16 %v3203, %v3203
  %v3212 = vld [vmem:[%s5] sm:$0xf]
  %v3213 = vld [vmem:[%s5 + $0x4] sm:$0xf]
  %v3214 = vld [vmem:[%s5 + $0x8] sm:$0xf]
  %v3215 = vld [vmem:[%s5 + $0xc] sm:$0xf]
  %v3216 = vld [vmem:[%s5 + $0x10] sm:$0xf]
  %v3217 = vld [vmem:[%s5 + $0x14] sm:$0xf]
  %v3218 = vld [vmem:[%s5 + $0x18] sm:$0xf]
  %v3219 = vld [vmem:[%s5 + $0x1c] sm:$0xf]
  %v3220 = vld [vmem:[%s5 + $0x20] sm:$0xf]
  %v3221 = vld [vmem:[%s5 + $0x24] sm:$0xf]
  %v3222 = vld [vmem:[%s5 + $0x28] sm:$0xf]
  %v3223 = vld [vmem:[%s5 + $0x2c] sm:$0xf]
  %v3236 = vunpack.c.l.b16 %v3212
  %v3237 = vunpack.c.l.b16 %v3213
  %v3238 = vunpack.c.l.b16 %v3214
  %v3239 = vunpack.c.l.b16 %v3215
  %v3240 = vunpack.c.l.b16 %v3216
  %v3241 = vunpack.c.l.b16 %v3217
  %v3242 = vunpack.c.l.b16 %v3218
  %v3243 = vunpack.c.l.b16 %v3219
  %v3244 = vunpack.c.l.b16 %v3220
  %v3245 = vunpack.c.l.b16 %v3221
  %v3246 = vunpack.c.l.b16 %v3222
  %v3247 = vunpack.c.l.b16 %v3223
  %v3248 = vpack.c.b16 %v3237, %v3236
  %v3249 = vpack.c.b16 %v3239, %v3238
  %v3250 = vpack.c.b16 %v3241, %v3240
  %v3251 = vpack.c.b16 %v3243, %v3242
  %v3252 = vpack.c.b16 %v3245, %v3244
  %v3253 = vpack.c.b16 %v3247, %v3246
  %v3261 = vsel %vm597, %v3204, 0
  %v3264 = vsel %vm597, %v3205, 0
  %v3267 = vsel %vm597, %v3206, 0
  %v3270 = vsel %vm597, %v3207, 0
  %v3273 = vsel %vm597, %v3208, 0
  %v3276 = vsel %vm597, %v3209, 0
  %v3279 = vsel %vm597, %v3210, 0
  %v3282 = vsel %vm597, %v3211, 0
  %3284 = vmatprep.subr.bf16.mxu0 0
  %3285 = vmatpush1.bf16.msra.mxu0 0
  %3286 = vmatprep.subr.bf16.mxu0 0
  %3287 = vmatpush1.bf16.msra.mxu0 0
  %3288 = vmatprep.subr.bf16.mxu0 0
  %3289 = vmatpush1.bf16.msra.mxu0 %v3253
  %3290 = vmatprep.subr.bf16.mxu0 0
  %3291 = vmatpush1.bf16.msra.mxu0 %v3252
  %3292 = vmatprep.subr.bf16.mxu0 0
  %3293 = vmatpush1.bf16.msra.mxu0 %v3251
  %3294 = vmatprep.subr.bf16.mxu0 0
  %3295 = vmatpush1.bf16.msra.mxu0 %v3250
  %3296 = vmatprep.subr.bf16.mxu0 0
  %3297 = vmatpush1.bf16.msra.mxu0 %v3249
  %3298 = vmatprep.subr.bf16.mxu0 0
  %3299 = vmatpush1.bf16.msra.mxu0 %v3248
  %3300 = vmatprep.subr.bf16.mxu0 0
  %3301 = vmatpush2.bf16.msra.mxu0 0
  %3302 = vmatprep.subr.bf16.mxu0 0
  %3303 = vmatpush2.bf16.msra.mxu0 0
  %3304 = vmatprep.subr.bf16.mxu0 0
  %3305 = vmatpush2.bf16.msra.mxu0 0
  %3306 = vmatprep.subr.bf16.mxu0 0
  %3307 = vmatpush2.bf16.msra.mxu0 0
  %3308 = vmatprep.subr.bf16.mxu0 0
  %3309 = vmatpush2.bf16.msra.mxu0 0
  %3310 = vmatprep.subr.bf16.mxu0 0
  %3311 = vmatpush2.bf16.msra.mxu0 0
  %3312 = vmatprep.subr.bf16.mxu0 0
  %3313 = vmatpush2.bf16.msra.mxu0 0
  %3314 = vmatprep.subr.bf16.mxu0 0
  %3315 = vmatpush2.bf16.msra.mxu0 0
  %3316 = vmatprep.mubr.bf16.mxu0 0
  %3317 = vmatmul.mubr.bf16.gmra.mxu0 %v3261
  %v3318 = vpop.f32.mrf.mxu0
  %v3319 = vadd.f32 0.0, %v3318
  %v3320 = vpop.f32.mrf.mxu0
  %v3321 = vpop.f32.mrf.mxu0
  %v3322 = vadd.f32 0.0, %v3321
  %v3323 = vpop.f32.mrf.mxu0
  %3324 = vmatprep.mubr.bf16.mxu0 0
  %3325 = vmatmul.mubr.bf16.gmra.mxu0 %v3264
  %v3326 = vpop.f32.mrf.mxu0
  %v3327 = vadd.f32 0.0, %v3326
  %v3328 = vpop.f32.mrf.mxu0
  %v3329 = vpop.f32.mrf.mxu0
  %v3330 = vadd.f32 0.0, %v3329
  %v3331 = vpop.f32.mrf.mxu0
  %3332 = vmatprep.mubr.bf16.mxu0 0
  %3333 = vmatmul.mubr.bf16.gmra.mxu0 %v3267
  %v3334 = vpop.f32.mrf.mxu0
  %v3335 = vadd.f32 0.0, %v3334
  %v3336 = vpop.f32.mrf.mxu0
  %v3337 = vpop.f32.mrf.mxu0
  %v3338 = vadd.f32 0.0, %v3337
  %v3339 = vpop.f32.mrf.mxu0
  %3340 = vmatprep.mubr.bf16.mxu0 0
  %3341 = vmatmul.mubr.bf16.gmra.mxu0 %v3270
  %v3342 = vpop.f32.mrf.mxu0
  %v3343 = vadd.f32 0.0, %v3342
  %v3344 = vpop.f32.mrf.mxu0
  %v3345 = vpop.f32.mrf.mxu0
  %v3346 = vadd.f32 0.0, %v3345
  %v3347 = vpop.f32.mrf.mxu0
  %3348 = vmatprep.mubr.bf16.mxu0 0
  %3349 = vmatmul.mubr.bf16.gmra.mxu0 %v3273
  %v3350 = vpop.f32.mrf.mxu0
  %v3351 = vadd.f32 0.0, %v3350
  %v3352 = vpop.f32.mrf.mxu0
  %v3353 = vpop.f32.mrf.mxu0
  %v3354 = vadd.f32 0.0, %v3353
  %v3355 = vpop.f32.mrf.mxu0
  %3356 = vmatprep.mubr.bf16.mxu0 0
  %3357 = vmatmul.mubr.bf16.gmra.mxu0 %v3276
  %v3358 = vpop.f32.mrf.mxu0
  %v3359 = vadd.f32 0.0, %v3358
  %v3360 = vpop.f32.mrf.mxu0
  %v3361 = vpop.f32.mrf.mxu0
  %v3362 = vadd.f32 0.0, %v3361
  %v3363 = vpop.f32.mrf.mxu0
  %3364 = vmatprep.mubr.bf16.mxu0 0
  %3365 = vmatmul.mubr.bf16.gmra.mxu0 %v3279
  %v3366 = vpop.f32.mrf.mxu0
  %v3367 = vadd.f32 0.0, %v3366
  %v3368 = vpop.f32.mrf.mxu0
  %v3369 = vpop.f32.mrf.mxu0
  %v3370 = vadd.f32 0.0, %v3369
  %v3371 = vpop.f32.mrf.mxu0
  %3372 = vmatprep.mubr.bf16.mxu0 0
  %3373 = vmatmul.mubr.bf16.gmra.mxu0 %v3282
  %v3374 = vpop.f32.mrf.mxu0
  %v3375 = vadd.f32 0.0, %v3374
  %v3376 = vpop.f32.mrf.mxu0
  %v3377 = vpop.f32.mrf.mxu0
  %v3378 = vpop.f32.mrf.mxu0
  %3379 = vdwg.mxu0
  %v3395 = vrot.slane %v3319, 1
  %v3396 = vrot.slane %v3322, 1
  %v3397 = vsel %vm759, %v3395, %v3396
  %v3398 = vrot.slane %v3327, 1
  %v3399 = vsel %vm759, %v3396, %v3398
  %v3400 = vrot.slane %v3330, 1
  %v3401 = vsel %vm759, %v3398, %v3400
  %v3402 = vrot.slane %v3335, 1
  %v3403 = vsel %vm759, %v3400, %v3402
  %v3404 = vrot.slane %v3338, 1
  %v3405 = vsel %vm759, %v3402, %v3404
  %v3406 = vrot.slane %v3343, 1
  %v3407 = vsel %vm759, %v3404, %v3406
  %v3408 = vrot.slane %v3346, 1
  %v3409 = vsel %vm759, %v3406, %v3408
  %v3410 = vrot.slane %v3351, 1
  %v3411 = vsel %vm759, %v3408, %v3410
  %v3412 = vrot.slane %v3354, 1
  %v3413 = vsel %vm759, %v3410, %v3412
  %v3414 = vrot.slane %v3359, 1
  %v3415 = vsel %vm759, %v3412, %v3414
  %v3416 = vrot.slane %v3362, 1
  %v3417 = vsel %vm759, %v3414, %v3416
  %v3418 = vrot.slane %v3367, 1
  %v3419 = vsel %vm759, %v3416, %v3418
  %v3420 = vrot.slane %v3370, 1
  %v3421 = vsel %vm759, %v3418, %v3420
  %v3422 = vrot.slane %v3375, 1
  %v3423 = vsel %vm759, %v3420, %v3422
  %3424 = vrot.lane.b32.xlu0 %v3397, 96
  %v3425 = vpop.permute.xlu0 %3424
  %3426 = vrot.lane.b32.xlu0 %v3399, 96
  %v3427 = vpop.permute.xlu0 %3426
  %3428 = vrot.lane.b32.xlu0 %v3401, 96
  %v3429 = vpop.permute.xlu0 %3428
  %3430 = vrot.lane.b32.xlu0 %v3403, 96
  %v3431 = vpop.permute.xlu0 %3430
  %3432 = vrot.lane.b32.xlu0 %v3405, 96
  %v3433 = vpop.permute.xlu0 %3432
  %3434 = vrot.lane.b32.xlu0 %v3407, 96
  %v3435 = vpop.permute.xlu0 %3434
  %3436 = vrot.lane.b32.xlu0 %v3409, 96
  %v3437 = vpop.permute.xlu0 %3436
  %3438 = vrot.lane.b32.xlu0 %v3411, 96
  %v3439 = vpop.permute.xlu0 %3438
  %3440 = vrot.lane.b32.xlu0 %v3413, 96
  %v3441 = vpop.permute.xlu0 %3440
  %3442 = vrot.lane.b32.xlu0 %v3415, 96
  %v3443 = vpop.permute.xlu0 %3442
  %3444 = vrot.lane.b32.xlu0 %v3417, 96
  %v3445 = vpop.permute.xlu0 %3444
  %3446 = vrot.lane.b32.xlu0 %v3419, 96
  %v3447 = vpop.permute.xlu0 %3446
  %3448 = vrot.lane.b32.xlu0 %v3421, 96
  %v3449 = vpop.permute.xlu0 %3448
  %3450 = vrot.lane.b32.xlu0 %v3423, 96
  %v3451 = vpop.permute.xlu0 %3450
  %v3466 = vadd.f32 %v3319, %v3425
  %v3467 = vadd.f32 %v3322, %v3427
  %v3468 = vadd.f32 %v3327, %v3429
  %v3469 = vadd.f32 %v3330, %v3431
  %v3470 = vadd.f32 %v3335, %v3433
  %v3471 = vadd.f32 %v3338, %v3435
  %v3472 = vadd.f32 %v3343, %v3437
  %v3473 = vadd.f32 %v3346, %v3439
  %v3474 = vadd.f32 %v3351, %v3441
  %v3475 = vadd.f32 %v3354, %v3443
  %v3476 = vadd.f32 %v3359, %v3445
  %v3477 = vadd.f32 %v3362, %v3447
  %v3478 = vadd.f32 %v3367, %v3449
  %v3479 = vadd.f32 %v3370, %v3451
  %v3480 = vrot.slane %v3319, 2
  %v3481 = vrot.slane %v3322, 2
  %v3482 = vsel %vm869, %v3480, %v3481
  %v3483 = vrot.slane %v3327, 2
  %v3484 = vsel %vm869, %v3481, %v3483
  %v3485 = vrot.slane %v3330, 2
  %v3486 = vsel %vm869, %v3483, %v3485
  %v3487 = vrot.slane %v3335, 2
  %v3488 = vsel %vm869, %v3485, %v3487
  %v3489 = vrot.slane %v3338, 2
  %v3490 = vsel %vm869, %v3487, %v3489
  %v3491 = vrot.slane %v3343, 2
  %v3492 = vsel %vm869, %v3489, %v3491
  %v3493 = vrot.slane %v3346, 2
  %v3494 = vsel %vm869, %v3491, %v3493
  %v3495 = vrot.slane %v3351, 2
  %v3496 = vsel %vm869, %v3493, %v3495
  %v3497 = vrot.slane %v3354, 2
  %v3498 = vsel %vm869, %v3495, %v3497
  %v3499 = vrot.slane %v3359, 2
  %v3500 = vsel %vm869, %v3497, %v3499
  %v3501 = vrot.slane %v3362, 2
  %v3502 = vsel %vm869, %v3499, %v3501
  %v3503 = vrot.slane %v3367, 2
  %v3504 = vsel %vm869, %v3501, %v3503
  %v3505 = vrot.slane %v3370, 2
  %v3506 = vsel %vm869, %v3503, %v3505
  %v3507 = vrot.slane %v3375, 2
  %v3508 = vsel %vm869, %v3505, %v3507
  %3509 = vrot.lane.b32.xlu0 %v3482, 64
  %v3510 = vpop.permute.xlu0 %3509
  %3511 = vrot.lane.b32.xlu0 %v3484, 64
  %v3512 = vpop.permute.xlu0 %3511
  %3513 = vrot.lane.b32.xlu0 %v3486, 64
  %v3514 = vpop.permute.xlu0 %3513
  %3515 = vrot.lane.b32.xlu0 %v3488, 64
  %v3516 = vpop.permute.xlu0 %3515
  %3517 = vrot.lane.b32.xlu0 %v3490, 64
  %v3518 = vpop.permute.xlu0 %3517
  %3519 = vrot.lane.b32.xlu0 %v3492, 64
  %v3520 = vpop.permute.xlu0 %3519
  %3521 = vrot.lane.b32.xlu0 %v3494, 64
  %v3522 = vpop.permute.xlu0 %3521
  %3523 = vrot.lane.b32.xlu0 %v3496, 64
  %v3524 = vpop.permute.xlu0 %3523
  %3525 = vrot.lane.b32.xlu0 %v3498, 64
  %v3526 = vpop.permute.xlu0 %3525
  %3527 = vrot.lane.b32.xlu0 %v3500, 64
  %v3528 = vpop.permute.xlu0 %3527
  %3529 = vrot.lane.b32.xlu0 %v3502, 64
  %v3530 = vpop.permute.xlu0 %3529
  %3531 = vrot.lane.b32.xlu0 %v3504, 64
  %v3532 = vpop.permute.xlu0 %3531
  %3533 = vrot.lane.b32.xlu0 %v3506, 64
  %v3534 = vpop.permute.xlu0 %3533
  %3535 = vrot.lane.b32.xlu0 %v3508, 64
  %v3536 = vpop.permute.xlu0 %3535
  %v3551 = vadd.f32 %v3466, %v3510
  %v3552 = vadd.f32 %v3467, %v3512
  %v3553 = vadd.f32 %v3468, %v3514
  %v3554 = vadd.f32 %v3469, %v3516
  %v3555 = vadd.f32 %v3470, %v3518
  %v3556 = vadd.f32 %v3471, %v3520
  %v3557 = vadd.f32 %v3472, %v3522
  %v3558 = vadd.f32 %v3473, %v3524
  %v3559 = vadd.f32 %v3474, %v3526
  %v3560 = vadd.f32 %v3475, %v3528
  %v3561 = vadd.f32 %v3476, %v3530
  %v3562 = vadd.f32 %v3477, %v3532
  %v3563 = vadd.f32 %v3478, %v3534
  %v3564 = vadd.f32 %v3479, %v3536
  %v3565 = vld [vmem:[%s6] sm:$0x1]
  %v3567 = vlaneseq
  %v3568 = vshrl.u32 %v3567, 7
  %v3569 = vsub.s32 0, %v3568
  %v3570 = vrot.slane %v3565, %v3569
  %v3572 = vadd.f32 %v3551, %v3570
  %v3573 = vadd.f32 %v3552, %v3570
  %v3574 = vadd.f32 %v3553, %v3570
  %v3575 = vadd.f32 %v3554, %v3570
  %v3576 = vadd.f32 %v3555, %v3570
  %v3577 = vadd.f32 %v3556, %v3570
  %v3578 = vadd.f32 %v3557, %v3570
  %v3579 = vadd.f32 %v3558, %v3570
  %v3580 = vadd.f32 %v3559, %v3570
  %v3581 = vadd.f32 %v3560, %v3570
  %v3582 = vadd.f32 %v3561, %v3570
  %v3583 = vadd.f32 %v3562, %v3570
  %v3584 = vadd.f32 %v3563, %v3570
  %v3585 = vadd.f32 %v3564, %v3570
  %v3586 = vmax.f32 %v3572, 0.0
  %v3587 = vmax.f32 %v3573, 0.0
  %v3588 = vmax.f32 %v3574, 0.0
  %v3589 = vmax.f32 %v3575, 0.0
  %v3590 = vmax.f32 %v3576, 0.0
  %v3591 = vmax.f32 %v3577, 0.0
  %v3592 = vmax.f32 %v3578, 0.0
  %v3593 = vmax.f32 %v3579, 0.0
  %v3594 = vmax.f32 %v3580, 0.0
  %v3595 = vmax.f32 %v3581, 0.0
  %v3596 = vmax.f32 %v3582, 0.0
  %v3597 = vmax.f32 %v3583, 0.0
  %v3598 = vmax.f32 %v3584, 0.0
  %v3599 = vmax.f32 %v3585, 0.0
  %3600 = vst.msk [vmem:[#allocation4] sm:$0xff] %vm318, %v3586
  %3601 = vst.msk [vmem:[#allocation4 + $0x8] sm:$0xff] %vm318, %v3587
  %3602 = vst.msk [vmem:[#allocation4 + $0x10] sm:$0xff] %vm318, %v3588
  %3603 = vst.msk [vmem:[#allocation4 + $0x18] sm:$0xff] %vm318, %v3589
  %3604 = vst.msk [vmem:[#allocation4 + $0x20] sm:$0xff] %vm318, %v3590
  %3605 = vst.msk [vmem:[#allocation4 + $0x28] sm:$0xff] %vm318, %v3591
  %3606 = vst.msk [vmem:[#allocation4 + $0x30] sm:$0xff] %vm318, %v3592
  %3607 = vst.msk [vmem:[#allocation4 + $0x38] sm:$0xff] %vm318, %v3593
  %3608 = vst.msk [vmem:[#allocation4 + $0x40] sm:$0xff] %vm318, %v3594
  %3609 = vst.msk [vmem:[#allocation4 + $0x48] sm:$0xff] %vm318, %v3595
  %3610 = vst.msk [vmem:[#allocation4 + $0x50] sm:$0xff] %vm318, %v3596
  %3611 = vst.msk [vmem:[#allocation4 + $0x58] sm:$0xff] %vm318, %v3597
  %3612 = vst.msk [vmem:[#allocation4 + $0x60] sm:$0xff] %vm318, %v3598
  %3613 = vst.msk [vmem:[#allocation4 + $0x68] sm:$0xff] %vm318, %v3599
  %3614 = vst.msk [vmem:[#allocation4 + $0x70] sm:$0xff] %vm318, 0.0
  %v3615 = vld [vmem:[#allocation4] sm:$0xff]
  %v3616 = vld [vmem:[#allocation4 + $0x8] sm:$0xff]
  %v3617 = vld [vmem:[#allocation4 + $0x10] sm:$0xff]
  %v3618 = vld [vmem:[#allocation4 + $0x18] sm:$0xff]
  %v3619 = vld [vmem:[#allocation4 + $0x20] sm:$0xff]
  %v3620 = vld [vmem:[#allocation4 + $0x28] sm:$0xff]
  %v3621 = vld [vmem:[#allocation4 + $0x30] sm:$0xff]
  %v3622 = vld [vmem:[#allocation4 + $0x38] sm:$0xff]
  %v3623 = vld [vmem:[#allocation4 + $0x40] sm:$0xff]
  %v3624 = vld [vmem:[#allocation4 + $0x48] sm:$0xff]
  %v3625 = vld [vmem:[#allocation4 + $0x50] sm:$0xff]
  %v3626 = vld [vmem:[#allocation4 + $0x58] sm:$0xff]
  %v3627 = vld [vmem:[#allocation4 + $0x60] sm:$0xff]
  %v3628 = vld [vmem:[#allocation4 + $0x68] sm:$0xff]
  %v3629 = vld [vmem:[#allocation4 + $0x70] sm:$0xff]
  %3641 = vrot.lane.b32.xlu0 %v3617, 32
  %v3642 = vpop.permute.xlu0 %3641
  %3643 = vrot.lane.b32.xlu0 %v3618, 32
  %v3644 = vpop.permute.xlu0 %3643
  %3645 = vrot.lane.b32.xlu0 %v3619, 32
  %v3646 = vpop.permute.xlu0 %3645
  %3647 = vrot.lane.b32.xlu0 %v3620, 32
  %v3648 = vpop.permute.xlu0 %3647
  %3649 = vrot.lane.b32.xlu0 %v3621, 32
  %v3650 = vpop.permute.xlu0 %3649
  %3651 = vrot.lane.b32.xlu0 %v3622, 32
  %v3652 = vpop.permute.xlu0 %3651
  %3653 = vrot.lane.b32.xlu0 %v3623, 32
  %v3654 = vpop.permute.xlu0 %3653
  %3655 = vrot.lane.b32.xlu0 %v3624, 32
  %v3656 = vpop.permute.xlu0 %3655
  %3657 = vrot.lane.b32.xlu0 %v3625, 32
  %v3658 = vpop.permute.xlu0 %3657
  %3659 = vrot.lane.b32.xlu0 %v3626, 32
  %v3660 = vpop.permute.xlu0 %3659
  %3661 = vrot.lane.b32.xlu0 %v3627, 32
  %v3662 = vpop.permute.xlu0 %3661
  %3676 = vrot.lane.b32.xlu0 %v3619, 64
  %v3677 = vpop.permute.xlu0 %3676
  %3678 = vrot.lane.b32.xlu0 %v3620, 64
  %v3679 = vpop.permute.xlu0 %3678
  %3680 = vrot.lane.b32.xlu0 %v3621, 64
  %v3681 = vpop.permute.xlu0 %3680
  %3682 = vrot.lane.b32.xlu0 %v3622, 64
  %v3683 = vpop.permute.xlu0 %3682
  %3684 = vrot.lane.b32.xlu0 %v3623, 64
  %v3685 = vpop.permute.xlu0 %3684
  %3686 = vrot.lane.b32.xlu0 %v3624, 64
  %v3687 = vpop.permute.xlu0 %3686
  %3688 = vrot.lane.b32.xlu0 %v3625, 64
  %v3689 = vpop.permute.xlu0 %3688
  %3690 = vrot.lane.b32.xlu0 %v3626, 64
  %v3691 = vpop.permute.xlu0 %3690
  %3692 = vrot.lane.b32.xlu0 %v3627, 64
  %v3693 = vpop.permute.xlu0 %3692
  %3694 = vrot.lane.b32.xlu0 %v3628, 64
  %v3695 = vpop.permute.xlu0 %3694
  %3696 = vrot.lane.b32.xlu0 %v3629, 64
  %v3697 = vpop.permute.xlu0 %3696
  %v3709 = vsel %vm318, %v3615, %v3642
  %v3710 = vsel %vm318, %v3616, %v3644
  %v3711 = vsel %vm318, %v3617, %v3646
  %v3712 = vsel %vm318, %v3618, %v3648
  %v3713 = vsel %vm318, %v3619, %v3650
  %v3714 = vsel %vm318, %v3620, %v3652
  %v3715 = vsel %vm318, %v3621, %v3654
  %v3716 = vsel %vm318, %v3622, %v3656
  %v3717 = vsel %vm318, %v3623, %v3658
  %v3718 = vsel %vm318, %v3624, %v3660
  %v3719 = vsel %vm318, %v3625, %v3662
  %v3720 = vsel %vm519, %v3709, %v3677
  %v3721 = vsel %vm519, %v3710, %v3679
  %v3722 = vsel %vm519, %v3711, %v3681
  %v3723 = vsel %vm519, %v3712, %v3683
  %v3724 = vsel %vm519, %v3713, %v3685
  %v3725 = vsel %vm519, %v3714, %v3687
  %v3726 = vsel %vm519, %v3715, %v3689
  %v3727 = vsel %vm519, %v3716, %v3691
  %v3728 = vsel %vm519, %v3717, %v3693
  %v3729 = vsel %vm519, %v3718, %v3695
  %v3730 = vsel %vm519, %v3719, %v3697
  %v3731 = vpack.c.bf16 %v3721, %v3720
  %v3732 = vpack.c.bf16 %v3723, %v3722
  %v3733 = vpack.c.bf16 %v3725, %v3724
  %v3734 = vpack.c.bf16 %v3727, %v3726
  %v3735 = vpack.c.bf16 %v3729, %v3728
  %v3736 = vpack.c.bf16 %v3730, %v3730
  %v3737 = vld [vmem:[%s7] sm:$0xf]
  %v3738 = vld [vmem:[%s7 + $0x4] sm:$0xf]
  %v3739 = vld [vmem:[%s7 + $0x8] sm:$0xf]
  %v3740 = vld [vmem:[%s7 + $0xc] sm:$0xf]
  %v3741 = vld [vmem:[%s7 + $0x10] sm:$0xf]
  %v3742 = vld [vmem:[%s7 + $0x14] sm:$0xf]
  %v3743 = vld [vmem:[%s7 + $0x18] sm:$0xf]
  %v3744 = vld [vmem:[%s7 + $0x1c] sm:$0xf]
  %v3745 = vld [vmem:[%s7 + $0x20] sm:$0xf]
  %v3746 = vld [vmem:[%s7 + $0x24] sm:$0xf]
  %v3747 = vld [vmem:[%s7 + $0x28] sm:$0xf]
  %v3748 = vld [vmem:[%s7 + $0x2c] sm:$0xf]
  %v3761 = vunpack.c.l.b16 %v3737
  %v3762 = vunpack.c.l.b16 %v3738
  %v3763 = vunpack.c.l.b16 %v3739
  %v3764 = vunpack.c.l.b16 %v3740
  %v3765 = vunpack.c.l.b16 %v3741
  %v3766 = vunpack.c.l.b16 %v3742
  %v3767 = vunpack.c.l.b16 %v3743
  %v3768 = vunpack.c.l.b16 %v3744
  %v3769 = vunpack.c.l.b16 %v3745
  %v3770 = vunpack.c.l.b16 %v3746
  %v3771 = vunpack.c.l.b16 %v3747
  %v3772 = vunpack.c.l.b16 %v3748
  %v3773 = vpack.c.b16 %v3762, %v3761
  %v3774 = vpack.c.b16 %v3764, %v3763
  %v3775 = vpack.c.b16 %v3766, %v3765
  %v3776 = vpack.c.b16 %v3768, %v3767
  %v3777 = vpack.c.b16 %v3770, %v3769
  %v3778 = vpack.c.b16 %v3772, %v3771
  %v3786 = vsel %vm597, %v3731, 0
  %v3789 = vsel %vm597, %v3732, 0
  %v3792 = vsel %vm597, %v3733, 0
  %v3795 = vsel %vm597, %v3734, 0
  %v3798 = vsel %vm597, %v3735, 0
  %v3801 = vsel %vm597, %v3736, 0
  %3803 = vmatprep.subr.bf16.mxu0 0
  %3804 = vmatpush1.bf16.msra.mxu0 0
  %3805 = vmatprep.subr.bf16.mxu0 0
  %3806 = vmatpush1.bf16.msra.mxu0 0
  %3807 = vmatprep.subr.bf16.mxu0 0
  %3808 = vmatpush1.bf16.msra.mxu0 %v3778
  %3809 = vmatprep.subr.bf16.mxu0 0
  %3810 = vmatpush1.bf16.msra.mxu0 %v3777
  %3811 = vmatprep.subr.bf16.mxu0 0
  %3812 = vmatpush1.bf16.msra.mxu0 %v3776
  %3813 = vmatprep.subr.bf16.mxu0 0
  %3814 = vmatpush1.bf16.msra.mxu0 %v3775
  %3815 = vmatprep.subr.bf16.mxu0 0
  %3816 = vmatpush1.bf16.msra.mxu0 %v3774
  %3817 = vmatprep.subr.bf16.mxu0 0
  %3818 = vmatpush1.bf16.msra.mxu0 %v3773
  %3819 = vmatprep.subr.bf16.mxu0 0
  %3820 = vmatpush2.bf16.msra.mxu0 0
  %3821 = vmatprep.subr.bf16.mxu0 0
  %3822 = vmatpush2.bf16.msra.mxu0 0
  %3823 = vmatprep.subr.bf16.mxu0 0
  %3824 = vmatpush2.bf16.msra.mxu0 0
  %3825 = vmatprep.subr.bf16.mxu0 0
  %3826 = vmatpush2.bf16.msra.mxu0 0
  %3827 = vmatprep.subr.bf16.mxu0 0
  %3828 = vmatpush2.bf16.msra.mxu0 0
  %3829 = vmatprep.subr.bf16.mxu0 0
  %3830 = vmatpush2.bf16.msra.mxu0 0
  %3831 = vmatprep.subr.bf16.mxu0 0
  %3832 = vmatpush2.bf16.msra.mxu0 0
  %3833 = vmatprep.subr.bf16.mxu0 0
  %3834 = vmatpush2.bf16.msra.mxu0 0
  %3835 = vmatprep.mubr.bf16.mxu0 0
  %3836 = vmatmul.mubr.bf16.gmra.mxu0 %v3786
  %v3837 = vpop.f32.mrf.mxu0
  %v3838 = vadd.f32 0.0, %v3837
  %v3839 = vpop.f32.mrf.mxu0
  %v3840 = vpop.f32.mrf.mxu0
  %v3841 = vadd.f32 0.0, %v3840
  %v3842 = vpop.f32.mrf.mxu0
  %3843 = vmatprep.mubr.bf16.mxu0 0
  %3844 = vmatmul.mubr.bf16.gmra.mxu0 %v3789
  %v3845 = vpop.f32.mrf.mxu0
  %v3846 = vadd.f32 0.0, %v3845
  %v3847 = vpop.f32.mrf.mxu0
  %v3848 = vpop.f32.mrf.mxu0
  %v3849 = vadd.f32 0.0, %v3848
  %v3850 = vpop.f32.mrf.mxu0
  %3851 = vmatprep.mubr.bf16.mxu0 0
  %3852 = vmatmul.mubr.bf16.gmra.mxu0 %v3792
  %v3853 = vpop.f32.mrf.mxu0
  %v3854 = vadd.f32 0.0, %v3853
  %v3855 = vpop.f32.mrf.mxu0
  %v3856 = vpop.f32.mrf.mxu0
  %v3857 = vadd.f32 0.0, %v3856
  %v3858 = vpop.f32.mrf.mxu0
  %3859 = vmatprep.mubr.bf16.mxu0 0
  %3860 = vmatmul.mubr.bf16.gmra.mxu0 %v3795
  %v3861 = vpop.f32.mrf.mxu0
  %v3862 = vadd.f32 0.0, %v3861
  %v3863 = vpop.f32.mrf.mxu0
  %v3864 = vpop.f32.mrf.mxu0
  %v3865 = vadd.f32 0.0, %v3864
  %v3866 = vpop.f32.mrf.mxu0
  %3867 = vmatprep.mubr.bf16.mxu0 0
  %3868 = vmatmul.mubr.bf16.gmra.mxu0 %v3798
  %v3869 = vpop.f32.mrf.mxu0
  %v3870 = vadd.f32 0.0, %v3869
  %v3871 = vpop.f32.mrf.mxu0
  %v3872 = vpop.f32.mrf.mxu0
  %v3873 = vadd.f32 0.0, %v3872
  %v3874 = vpop.f32.mrf.mxu0
  %3875 = vmatprep.mubr.bf16.mxu0 0
  %3876 = vmatmul.mubr.bf16.gmra.mxu0 %v3801
  %v3877 = vpop.f32.mrf.mxu0
  %v3878 = vadd.f32 0.0, %v3877
  %v3879 = vpop.f32.mrf.mxu0
  %v3880 = vpop.f32.mrf.mxu0
  %v3881 = vpop.f32.mrf.mxu0
  %3882 = vdwg.mxu0
  %v3894 = vrot.slane %v3838, 1
  %v3895 = vrot.slane %v3841, 1
  %v3896 = vsel %vm759, %v3894, %v3895
  %v3897 = vrot.slane %v3846, 1
  %v3898 = vsel %vm759, %v3895, %v3897
  %v3899 = vrot.slane %v3849, 1
  %v3900 = vsel %vm759, %v3897, %v3899
  %v3901 = vrot.slane %v3854, 1
  %v3902 = vsel %vm759, %v3899, %v3901
  %v3903 = vrot.slane %v3857, 1
  %v3904 = vsel %vm759, %v3901, %v3903
  %v3905 = vrot.slane %v3862, 1
  %v3906 = vsel %vm759, %v3903, %v3905
  %v3907 = vrot.slane %v3865, 1
  %v3908 = vsel %vm759, %v3905, %v3907
  %v3909 = vrot.slane %v3870, 1
  %v3910 = vsel %vm759, %v3907, %v3909
  %v3911 = vrot.slane %v3873, 1
  %v3912 = vsel %vm759, %v3909, %v3911
  %v3913 = vrot.slane %v3878, 1
  %v3914 = vsel %vm759, %v3911, %v3913
  %3915 = vrot.lane.b32.xlu0 %v3896, 96
  %v3916 = vpop.permute.xlu0 %3915
  %3917 = vrot.lane.b32.xlu0 %v3898, 96
  %v3918 = vpop.permute.xlu0 %3917
  %3919 = vrot.lane.b32.xlu0 %v3900, 96
  %v3920 = vpop.permute.xlu0 %3919
  %3921 = vrot.lane.b32.xlu0 %v3902, 96
  %v3922 = vpop.permute.xlu0 %3921
  %3923 = vrot.lane.b32.xlu0 %v3904, 96
  %v3924 = vpop.permute.xlu0 %3923
  %3925 = vrot.lane.b32.xlu0 %v3906, 96
  %v3926 = vpop.permute.xlu0 %3925
  %3927 = vrot.lane.b32.xlu0 %v3908, 96
  %v3928 = vpop.permute.xlu0 %3927
  %3929 = vrot.lane.b32.xlu0 %v3910, 96
  %v3930 = vpop.permute.xlu0 %3929
  %3931 = vrot.lane.b32.xlu0 %v3912, 96
  %v3932 = vpop.permute.xlu0 %3931
  %3933 = vrot.lane.b32.xlu0 %v3914, 96
  %v3934 = vpop.permute.xlu0 %3933
  %v3945 = vadd.f32 %v3838, %v3916
  %v3946 = vadd.f32 %v3841, %v3918
  %v3947 = vadd.f32 %v3846, %v3920
  %v3948 = vadd.f32 %v3849, %v3922
  %v3949 = vadd.f32 %v3854, %v3924
  %v3950 = vadd.f32 %v3857, %v3926
  %v3951 = vadd.f32 %v3862, %v3928
  %v3952 = vadd.f32 %v3865, %v3930
  %v3953 = vadd.f32 %v3870, %v3932
  %v3954 = vadd.f32 %v3873, %v3934
  %v3955 = vrot.slane %v3838, 2
  %v3956 = vrot.slane %v3841, 2
  %v3957 = vsel %vm869, %v3955, %v3956
  %v3958 = vrot.slane %v3846, 2
  %v3959 = vsel %vm869, %v3956, %v3958
  %v3960 = vrot.slane %v3849, 2
  %v3961 = vsel %vm869, %v3958, %v3960
  %v3962 = vrot.slane %v3854, 2
  %v3963 = vsel %vm869, %v3960, %v3962
  %v3964 = vrot.slane %v3857, 2
  %v3965 = vsel %vm869, %v3962, %v3964
  %v3966 = vrot.slane %v3862, 2
  %v3967 = vsel %vm869, %v3964, %v3966
  %v3968 = vrot.slane %v3865, 2
  %v3969 = vsel %vm869, %v3966, %v3968
  %v3970 = vrot.slane %v3870, 2
  %v3971 = vsel %vm869, %v3968, %v3970
  %v3972 = vrot.slane %v3873, 2
  %v3973 = vsel %vm869, %v3970, %v3972
  %v3974 = vrot.slane %v3878, 2
  %v3975 = vsel %vm869, %v3972, %v3974
  %3976 = vrot.lane.b32.xlu0 %v3957, 64
  %v3977 = vpop.permute.xlu0 %3976
  %3978 = vrot.lane.b32.xlu0 %v3959, 64
  %v3979 = vpop.permute.xlu0 %3978
  %3980 = vrot.lane.b32.xlu0 %v3961, 64
  %v3981 = vpop.permute.xlu0 %3980
  %3982 = vrot.lane.b32.xlu0 %v3963, 64
  %v3983 = vpop.permute.xlu0 %3982
  %3984 = vrot.lane.b32.xlu0 %v3965, 64
  %v3985 = vpop.permute.xlu0 %3984
  %3986 = vrot.lane.b32.xlu0 %v3967, 64
  %v3987 = vpop.permute.xlu0 %3986
  %3988 = vrot.lane.b32.xlu0 %v3969, 64
  %v3989 = vpop.permute.xlu0 %3988
  %3990 = vrot.lane.b32.xlu0 %v3971, 64
  %v3991 = vpop.permute.xlu0 %3990
  %3992 = vrot.lane.b32.xlu0 %v3973, 64
  %v3993 = vpop.permute.xlu0 %3992
  %3994 = vrot.lane.b32.xlu0 %v3975, 64
  %v3995 = vpop.permute.xlu0 %3994
  %v4006 = vadd.f32 %v3945, %v3977
  %v4007 = vadd.f32 %v3946, %v3979
  %v4008 = vadd.f32 %v3947, %v3981
  %v4009 = vadd.f32 %v3948, %v3983
  %v4010 = vadd.f32 %v3949, %v3985
  %v4011 = vadd.f32 %v3950, %v3987
  %v4012 = vadd.f32 %v3951, %v3989
  %v4013 = vadd.f32 %v3952, %v3991
  %v4014 = vadd.f32 %v3953, %v3993
  %v4015 = vadd.f32 %v3954, %v3995
  %v4016 = vld [vmem:[%s8] sm:$0x1]
  %v4018 = vlaneseq
  %v4019 = vshrl.u32 %v4018, 7
  %v4020 = vsub.s32 0, %v4019
  %v4021 = vrot.slane %v4016, %v4020
  %v4023 = vadd.f32 %v4006, %v4021
  %v4024 = vadd.f32 %v4007, %v4021
  %v4025 = vadd.f32 %v4008, %v4021
  %v4026 = vadd.f32 %v4009, %v4021
  %v4027 = vadd.f32 %v4010, %v4021
  %v4028 = vadd.f32 %v4011, %v4021
  %v4029 = vadd.f32 %v4012, %v4021
  %v4030 = vadd.f32 %v4013, %v4021
  %v4031 = vadd.f32 %v4014, %v4021
  %v4032 = vadd.f32 %v4015, %v4021
  %v4033 = vmax.f32 %v4023, 0.0
  %v4034 = vmax.f32 %v4024, 0.0
  %v4035 = vmax.f32 %v4025, 0.0
  %v4036 = vmax.f32 %v4026, 0.0
  %v4037 = vmax.f32 %v4027, 0.0
  %v4038 = vmax.f32 %v4028, 0.0
  %v4039 = vmax.f32 %v4029, 0.0
  %v4040 = vmax.f32 %v4030, 0.0
  %v4041 = vmax.f32 %v4031, 0.0
  %v4042 = vmax.f32 %v4032, 0.0
  %s4043 = scalar_lea.vmem %s9, 80
  %4044 = vst.msk [vmem:[%s4043] sm:$0xff] %vm318, %v4033
  %4045 = vst.msk [vmem:[%s4043 + $0x8] sm:$0xff] %vm318, %v4034
  %4046 = vst.msk [vmem:[%s4043 + $0x10] sm:$0xff] %vm318, %v4035
  %4047 = vst.msk [vmem:[%s4043 + $0x18] sm:$0xff] %vm318, %v4036
  %4048 = vst.msk [vmem:[%s4043 + $0x20] sm:$0xff] %vm318, %v4037
  %4049 = vst.msk [vmem:[%s4043 + $0x28] sm:$0xff] %vm318, %v4038
  %4050 = vst.msk [vmem:[%s4043 + $0x30] sm:$0xff] %vm318, %v4039
  %4051 = vst.msk [vmem:[%s4043 + $0x38] sm:$0xff] %vm318, %v4040
  %4052 = vst.msk [vmem:[%s4043 + $0x40] sm:$0xff] %vm318, %v4041
  %4053 = vst.msk [vmem:[%s4043 + $0x48] sm:$0xff] %vm318, %v4042
  // Predicated region
  $region38: #{encoder_forward.1} parent=0 // pred_check
    _
  $region39: #{encoder_forward.1} parent=0 // pred_check_branch
    %4055 = sbr.rel (0) target = $region41
  $region40: #{encoder_forward.1} parent=0 // pred_region
    _
  $region41: #{encoder_forward.1} parent=0 // pred_fallthru
    _
  // Predicated region
  $region42: #{encoder_forward.1} parent=0 // pred_check
    _
  $region43: #{encoder_forward.1} parent=0 // pred_check_branch
    %4057 = sbr.rel (0) target = $region45
  $region44: #{encoder_forward.1} parent=0 // pred_region
    _
  $region45: #{encoder_forward.1} parent=0 // pred_fallthru
    _

</llo_original>
